<compile_context>
chip_gen: v5e
topology: v5e:2x2
jax: 0.10.0
libtpu: 0.0.40
codegen_flags: <defaults>
</compile_context>

<pallas_src>
import jax
import jax.numpy as jnp
from jax.experimental import pallas as pl
from jax.experimental.pallas import tpu as pltpu

NUM_LAYERS = 2  # matches `num_layers = 2` in the reference script; kernel is specialized to 2

_VMEM = pl.BlockSpec(memory_space=pltpu.MemorySpace.VMEM)


# ----------------------------------------------------------------------------
# Single fused Pallas kernel: biLSTM x2 + head
# ----------------------------------------------------------------------------
def _rcnn_kernel(x_ref,
                 wih0_ref, b0_ref, whhf0_ref, whhb0_ref,
                 wih1_ref, b1_ref, whhf1_ref, whhb1_ref,
                 whid_ref, wemb_ref, hb_ref,
                 lw_ref, lb_ref,
                 out_ref,
                 xg_ref, act0_ref, act1_ref):
    """Whole RCNN forward on one TensorCore.

    x_ref:        (S, Bp, E)   time-major embeddings (batch padded to sublane multiple)
    wih{0,1}_ref: (Din, 8H)    [fwd | bwd] input->gates weights, gate cols (i, f, o, g)
    b{0,1}_ref:   (1, 8H)      combined biases (b_ih + b_hh), same column layout
    whhf/whhb:    (H, 4H)      per-direction hidden->gates weights, gate cols (i, f, o, g)
    whid_ref:     (2H, H)      folded (l1 . W2) weight, hidden-columns part
    wemb_ref:     (E, H)       folded (l1 . W2) weight, embedding-columns part
    hb_ref:       (1, H)       folded head bias
    lw_ref:       (H, O), lb_ref: (1, O)
    out_ref:      (Bp, O)
    xg_ref:       (S, Bp, 8H)  scratch: hoisted input projections (reused by both layers)
    act0/act1:    (S, Bp, 2H)  scratch: time-aligned layer outputs [h_fwd | h_bwd]
    """
    S, Bp, E = x_ref.shape
    H = whhf0_ref.shape[0]
    H2, H3, H4, H8 = 2 * H, 3 * H, 4 * H, 8 * H

    def run_bilstm(inp2d, wih_ref, b_ref, whhf_ref, whhb_ref, act_ref):
        # Hoist the input projections of BOTH directions out of the recurrence:
        # one lane-dense (S*Bp, Din) @ (Din, 8H) MXU matmul into VMEM scratch.
        xg_ref[...] = (jnp.dot(inp2d, wih_ref[...], preferred_element_type=jnp.float32)
                       + b_ref[...]).reshape(S, Bp, H8)

        def cell(g, c):
            # Gate columns pre-permuted to (i, f, o, g): one sigmoid over the contiguous
            # 3H slice, one tanh over the trailing H slice.
            sig = jax.nn.sigmoid(g[:, 0:H3])
            gg = jnp.tanh(g[:, H3:H4])
            c_new = sig[:, H:H2] * c + sig[:, 0:H] * gg
            h_new = sig[:, H2:H3] * jnp.tanh(c_new)
            return h_new, c_new

        z = jnp.zeros((Bp, H), jnp.float32)
        h_f, c_f, h_b, c_b = z, z, z, z
        # Fully unrolled static time loop (short S) -> straight-line code, static slices.
        for t in range(S):
            s_rev = S - 1 - t
            g_f = xg_ref[t, :, 0:H4] + jnp.dot(
                h_f, whhf_ref[...], preferred_element_type=jnp.float32)
            g_b = xg_ref[s_rev, :, H4:H8] + jnp.dot(
                h_b, whhb_ref[...], preferred_element_type=jnp.float32)
            h_f, c_f = cell(g_f, c_f)
            h_b, c_b = cell(g_b, c_b)
            act_ref[t, :, 0:H] = h_f          # forward hidden at time t
            act_ref[s_rev, :, H:H2] = h_b     # backward hidden at time S-1-t

    x2d = x_ref[...].reshape(S * Bp, E)

    # Layer 0 (input = embeddings), layer 1 (input = layer-0 output, already time-aligned).
    run_bilstm(x2d, wih0_ref, b0_ref, whhf0_ref, whhb0_ref, act0_ref)
    run_bilstm(act0_ref[...].reshape(S * Bp, H2),
               wih1_ref, b1_ref, whhf1_ref, whhb1_ref, act1_ref)

    # Head: cat(output, emb) @ W2 -> l1 folded into one affine map, split by input block so
    # the concatenated encoding never has to be built.  Then relu -> max over time -> label
    # -> sigmoid (matches torch.relu / F.max_pool1d over the full seq / label / sigmoid).
    y = (jnp.dot(act1_ref[...].reshape(S * Bp, H2), whid_ref[...],
                 preferred_element_type=jnp.float32)
         + jnp.dot(x2d, wemb_ref[...], preferred_element_type=jnp.float32)
         + hb_ref[...])
    y = jnp.maximum(y, 0.0)
    y = jnp.max(y.reshape(S, Bp, H), axis=0)                       # (Bp, H)
    logits = jnp.dot(y, lw_ref[...], preferred_element_type=jnp.float32) + lb_ref[...]
    out_ref[...] = jax.nn.sigmoid(logits).astype(out_ref.dtype)


# ----------------------------------------------------------------------------
# One-time weight preparation (call once at model-load time, NOT per forward)
# ----------------------------------------------------------------------------
def _reorder_gate_cols(w, H):
    """Permute gate column blocks from PyTorch order (i, f, g, o) to (i, f, o, g)."""
    return jnp.concatenate([w[:, 0 * H:1 * H], w[:, 1 * H:2 * H],
                            w[:, 3 * H:4 * H], w[:, 2 * H:3 * H]], axis=1)


def prepare_params(params):
    H = params["lstm"][0]["whh_f"].shape[1]
    lstm = []
    for p in params["lstm"]:
        wih_f_t = _reorder_gate_cols(p["wih_f"].T, H)          # (Din, 4H)
        wih_b_t = _reorder_gate_cols(p["wih_b"].T, H)          # (Din, 4H)
        lstm.append({
            "wih_cat": jnp.concatenate([wih_f_t, wih_b_t], axis=1),           # (Din, 8H)
            "b_cat": jnp.concatenate([_reorder_gate_cols(p["b_f"], H),
                                      _reorder_gate_cols(p["b_b"], H)], axis=1),  # (1, 8H)
            "whh_f_t": _reorder_gate_cols(p["whh_f"].T, H),    # (H, 4H)
            "whh_b_t": _reorder_gate_cols(p["whh_b"].T, H),    # (H, 4H)
        })
    # W2 and l1 are back-to-back affine maps (no activation between them in the reference)
    # -> fold exactly, then split by input block (LSTM-output columns vs embedding columns).
    fused_w_t = (params["l1_w"] @ params["w2_w"]).T            # (2H+E, H)
    fused_b = params["w2_b"] @ params["l1_w"].T + params["l1_b"]   # (1, H)
    return {
        "embedding": params["embedding"],
        "lstm": lstm,
        "w_hid": fused_w_t[:2 * H, :],        # (2H, H)
        "w_emb": fused_w_t[2 * H:, :],        # (E, H)
        "head_b": fused_b,                    # (1, H)
        "label_w_t": params["label_w"].T,     # (H, O)
        "label_b": params["label_b"],         # (1, O)
    }


# ----------------------------------------------------------------------------
# Forward wrapper (jitted; takes the pre-prepared params)
# ----------------------------------------------------------------------------
@jax.jit
def rcnn_forward(input_sentence, kp):
    """input_sentence: (batch, seq) int32 ids -> (batch, 1, output_size) sigmoid logits."""
    # Embedding gather + time-major permute -- plain JAX glue (.squeeze(1) is a no-op).
    emb = jnp.take(kp["embedding"], input_sentence, axis=0)       # (B, S, E)
    x = jnp.transpose(emb, (1, 0, 2)).astype(jnp.float32)         # (S, B, E)  time-major

    S, B, E = x.shape
    Bp = -(-B // 8) * 8                                           # pad batch to f32 sublanes
    if Bp != B:
        x = jnp.pad(x, ((0, 0), (0, Bp - B), (0, 0)))

    H = kp["lstm"][0]["whh_f_t"].shape[0]
    O = kp["label_w_t"].shape[1]
    l0, l1 = kp["lstm"]

    args = (x,
            l0["wih_cat"], l0["b_cat"], l0["whh_f_t"], l0["whh_b_t"],
            l1["wih_cat"], l1["b_cat"], l1["whh_f_t"], l1["whh_b_t"],
            kp["w_hid"], kp["w_emb"], kp["head_b"],
            kp["label_w_t"], kp["label_b"])

    out = pl.pallas_call(
        _rcnn_kernel,
        out_shape=jax.ShapeDtypeStruct((Bp, O), jnp.float32),
        in_specs=[_VMEM] * len(args),
        out_specs=_VMEM,
        scratch_shapes=[
            pltpu.VMEM((S, Bp, 8 * H), jnp.float32),   # hoisted input projections
            pltpu.VMEM((S, Bp, 2 * H), jnp.float32),   # layer-0 output (time-aligned)
            pltpu.VMEM((S, Bp, 2 * H), jnp.float32),   # layer-1 output (time-aligned)
        ],
    )(*args)

    # TODO(synk): nn.LSTM inter-layer dropout (p=0.8) only acts in training mode; this
    # kernel implements the inference (eval) path, so it is omitted.
    return out[:B, None, :]                                       # unsqueeze(1), drop pad


# ----------------------------------------------------------------------------
# Deterministic parameter construction (PyTorch-layout params)
# ----------------------------------------------------------------------------
def init_params(key, vocab_size, embedding_length, hidden_size, output_size):
    E, H, O = embedding_length, hidden_size, output_size
    keys = iter(jax.random.split(key, 64))

    def unif(shape, scale):
        return jax.random.uniform(next(keys), shape, jnp.float32, -scale, scale)

    k = 1.0 / float(jnp.sqrt(H))
    lstm = []
    for layer in range(NUM_LAYERS):
        din = E if layer == 0 else 2 * H
        lstm.append({
            "wih_f": unif((4 * H, din), k), "whh_f": unif((4 * H, H), k), "b_f": unif((1, 4 * H), k),
            "wih_b": unif((4 * H, din), k), "whh_b": unif((4 * H, H), k), "b_b": unif((1, 4 * H), k),
        })

    params = {
        "embedding": jax.random.normal(next(keys), (vocab_size, E), jnp.float32),
        "lstm": lstm,
        # W2: Linear(2H + E -> H + E)
        "w2_w": unif((H + E, 2 * H + E), 1.0 / float(jnp.sqrt(2 * H + E))),
        "w2_b": unif((1, H + E), 1.0 / float(jnp.sqrt(2 * H + E))),
        # l1: Linear(H + E -> H), xavier_normal init
        "l1_w": jax.random.normal(next(keys), (H, H + E), jnp.float32)
                * jnp.sqrt(2.0 / (H + (H + E))),
        "l1_b": unif((1, H), 1.0 / float(jnp.sqrt(H + E))),
        # label: Linear(H -> O)
        "label_w": unif((O, H), 1.0 / float(jnp.sqrt(H))),
        "label_b": unif((1, O), 1.0 / float(jnp.sqrt(H))),
    }
    return params


# ----------------------------------------------------------------------------
if __name__ == "__main__":
    batch = 4
    seq = 8
    vocab_size = 50
    embedding_length = 32
    hidden_size = 32
    output_size = 2

    root = jax.random.PRNGKey(0)
    k_tok, k_par = jax.random.split(root)

    params = init_params(k_par, vocab_size, embedding_length, hidden_size, output_size)
    kernel_params = prepare_params(params)          # one-time, outside the jitted forward
    input_sentence = jax.random.randint(k_tok, (batch, seq), 0, vocab_size, dtype=jnp.int32)

    out = rcnn_forward(input_sentence, kernel_params)
    out = jax.block_until_ready(out)

    assert out.shape == (batch, 1, output_size), out.shape
    assert bool(jnp.all(jnp.isfinite(out)))
    assert bool(jnp.all((out >= 0.0) & (out <= 1.0)))
    print("KERNEL_OK")
</pallas_src>

<mosaic_0001>
module attributes {stable_mosaic.version = 11 : i64} {
  func.func @_rcnn_kernel(%arg0: memref<8x8x32xf32, #tpu.memory_space<vmem>>, %arg1: memref<32x256xf32, #tpu.memory_space<vmem>>, %arg2: memref<1x256xf32, #tpu.memory_space<vmem>>, %arg3: memref<32x128xf32, #tpu.memory_space<vmem>>, %arg4: memref<32x128xf32, #tpu.memory_space<vmem>>, %arg5: memref<64x256xf32, #tpu.memory_space<vmem>>, %arg6: memref<1x256xf32, #tpu.memory_space<vmem>>, %arg7: memref<32x128xf32, #tpu.memory_space<vmem>>, %arg8: memref<32x128xf32, #tpu.memory_space<vmem>>, %arg9: memref<64x32xf32, #tpu.memory_space<vmem>>, %arg10: memref<32x32xf32, #tpu.memory_space<vmem>>, %arg11: memref<1x32xf32, #tpu.memory_space<vmem>>, %arg12: memref<32x2xf32, #tpu.memory_space<vmem>>, %arg13: memref<1x2xf32, #tpu.memory_space<vmem>>, %arg14: memref<8x2xf32, #tpu.memory_space<vmem>>, %arg15: memref<8x8x256xf32, #tpu.memory_space<vmem>>, %arg16: memref<8x8x64xf32, #tpu.memory_space<vmem>>, %arg17: memref<8x8x64xf32, #tpu.memory_space<vmem>>) attributes {dimension_semantics = [], scalar_prefetch = 0 : i64, scratch_operands = 3 : i64, tpu.core_type = #tpu.core_type<tc>} {
    %c0 = arith.constant 0 : index
    %c0_0 = arith.constant 0 : index
    %c0_1 = arith.constant 0 : index
    %0 = vector.load %arg0[%c0, %c0_0, %c0_1] : memref<8x8x32xf32, #tpu.memory_space<vmem>>, vector<8x8x32xf32>
    %1 = vector.shape_cast %0 : vector<8x8x32xf32> to vector<64x32xf32>
    %c0_2 = arith.constant 0 : index
    %c0_3 = arith.constant 0 : index
    %2 = vector.load %arg1[%c0_2, %c0_3] : memref<32x256xf32, #tpu.memory_space<vmem>>, vector<32x256xf32>
    %cst = arith.constant dense<0.000000e+00> : vector<64x256xf32>
    %3 = tpu.matmul %1, %2, %cst {dimension_numbers = #tpu.dot_dimension_numbers<[1], [0], [0], [1], [0, 0, 1, 1], [], []>} : vector<64x32xf32>, vector<32x256xf32>, vector<64x256xf32> -> vector<64x256xf32>
    %c0_4 = arith.constant 0 : index
    %c0_5 = arith.constant 0 : index
    %4 = vector.load %arg2[%c0_4, %c0_5] : memref<1x256xf32, #tpu.memory_space<vmem>>, vector<1x256xf32>
    %5 = vector.broadcast %4 : vector<1x256xf32> to vector<64x256xf32>
    %6 = arith.addf %3, %5 : vector<64x256xf32>
    %7 = vector.shape_cast %6 : vector<64x256xf32> to vector<8x8x256xf32>
    %c0_6 = arith.constant 0 : index
    %c0_7 = arith.constant 0 : index
    %c0_8 = arith.constant 0 : index
    %8 = vector.load %arg15[%c0_6, %c0_7, %c0_8] : memref<8x8x256xf32, #tpu.memory_space<vmem>>, vector<8x8x256xf32>
    tpu.vector_store %arg15[%c0_6, %c0_7, %c0_8], %7 {strides = array<i32>} : memref<8x8x256xf32, #tpu.memory_space<vmem>>, vector<8x8x256xf32>,
    %cst_9 = arith.constant 0.000000e+00 : f32
    %9 = vector.broadcast %cst_9 : f32 to vector<8x32xf32>
    %c0_10 = arith.constant 0 : index
    %c0_11 = arith.constant 0 : index
    %c0_12 = arith.constant 0 : index
    %10 = vector.load %arg15[%c0_10, %c0_11, %c0_12] : memref<8x8x256xf32, #tpu.memory_space<vmem>>, vector<1x8x128xf32>
    %11 = vector.shape_cast %10 : vector<1x8x128xf32> to vector<8x128xf32>
    %c0_13 = arith.constant 0 : index
    %c0_14 = arith.constant 0 : index
    %12 = vector.load %arg3[%c0_13, %c0_14] : memref<32x128xf32, #tpu.memory_space<vmem>>, vector<32x128xf32>
    %cst_15 = arith.constant dense<0.000000e+00> : vector<8x128xf32>
    %13 = tpu.matmul %9, %12, %cst_15 {dimension_numbers = #tpu.dot_dimension_numbers<[1], [0], [0], [1], [0, 0, 1, 1], [], []>} : vector<8x32xf32>, vector<32x128xf32>, vector<8x128xf32> -> vector<8x128xf32>
    %14 = arith.addf %11, %13 : vector<8x128xf32>
    %c7 = arith.constant 7 : index
    %c0_16 = arith.constant 0 : index
    %c128 = arith.constant 128 : index
    %15 = vector.load %arg15[%c7, %c0_16, %c128] : memref<8x8x256xf32, #tpu.memory_space<vmem>>, vector<1x8x128xf32>
    %16 = vector.shape_cast %15 : vector<1x8x128xf32> to vector<8x128xf32>
    %c0_17 = arith.constant 0 : index
    %c0_18 = arith.constant 0 : index
    %17 = vector.load %arg4[%c0_17, %c0_18] : memref<32x128xf32, #tpu.memory_space<vmem>>, vector<32x128xf32>
    %cst_19 = arith.constant dense<0.000000e+00> : vector<8x128xf32>
    %18 = tpu.matmul %9, %17, %cst_19 {dimension_numbers = #tpu.dot_dimension_numbers<[1], [0], [0], [1], [0, 0, 1, 1], [], []>} : vector<8x32xf32>, vector<32x128xf32>, vector<8x128xf32> -> vector<8x128xf32>
    %19 = arith.addf %16, %18 : vector<8x128xf32>
    %20 = vector.extract_strided_slice %14 {offsets = [0, 0], sizes = [8, 96], strides = [1, 1]} : vector<8x128xf32> to vector<8x96xf32>
    %21 = arith.negf %20 : vector<8x96xf32>
    %22 = math.exp %21 : vector<8x96xf32>
    %cst_20 = arith.constant 1.000000e+00 : f32
    %23 = vector.broadcast %cst_20 : f32 to vector<8x96xf32>
    %24 = arith.addf %23, %22 : vector<8x96xf32>
    %25 = arith.divf %23, %24 : vector<8x96xf32>
    %26 = vector.extract_strided_slice %14 {offsets = [0, 96], sizes = [8, 32], strides = [1, 1]} : vector<8x128xf32> to vector<8x32xf32>
    %27 = math.tanh %26 : vector<8x32xf32>
    %28 = vector.extract_strided_slice %25 {offsets = [0, 32], sizes = [8, 32], strides = [1, 1]} : vector<8x96xf32> to vector<8x32xf32>
    %29 = arith.mulf %28, %9 : vector<8x32xf32>
    %30 = vector.extract_strided_slice %25 {offsets = [0, 0], sizes = [8, 32], strides = [1, 1]} : vector<8x96xf32> to vector<8x32xf32>
    %31 = arith.mulf %30, %27 : vector<8x32xf32>
    %32 = arith.addf %29, %31 : vector<8x32xf32>
    %33 = vector.extract_strided_slice %25 {offsets = [0, 64], sizes = [8, 32], strides = [1, 1]} : vector<8x96xf32> to vector<8x32xf32>
    %34 = math.tanh %32 : vector<8x32xf32>
    %35 = arith.mulf %33, %34 : vector<8x32xf32>
    %36 = vector.extract_strided_slice %19 {offsets = [0, 0], sizes = [8, 96], strides = [1, 1]} : vector<8x128xf32> to vector<8x96xf32>
    %37 = arith.negf %36 : vector<8x96xf32>
    %38 = math.exp %37 : vector<8x96xf32>
    %cst_21 = arith.constant 1.000000e+00 : f32
    %39 = vector.broadcast %cst_21 : f32 to vector<8x96xf32>
    %40 = arith.addf %39, %38 : vector<8x96xf32>
    %41 = arith.divf %39, %40 : vector<8x96xf32>
    %42 = vector.extract_strided_slice %19 {offsets = [0, 96], sizes = [8, 32], strides = [1, 1]} : vector<8x128xf32> to vector<8x32xf32>
    %43 = math.tanh %42 : vector<8x32xf32>
    %44 = vector.extract_strided_slice %41 {offsets = [0, 32], sizes = [8, 32], strides = [1, 1]} : vector<8x96xf32> to vector<8x32xf32>
    %45 = arith.mulf %44, %9 : vector<8x32xf32>
    %46 = vector.extract_strided_slice %41 {offsets = [0, 0], sizes = [8, 32], strides = [1, 1]} : vector<8x96xf32> to vector<8x32xf32>
    %47 = arith.mulf %46, %43 : vector<8x32xf32>
    %48 = arith.addf %45, %47 : vector<8x32xf32>
    %49 = vector.extract_strided_slice %41 {offsets = [0, 64], sizes = [8, 32], strides = [1, 1]} : vector<8x96xf32> to vector<8x32xf32>
    %50 = math.tanh %48 : vector<8x32xf32>
    %51 = arith.mulf %49, %50 : vector<8x32xf32>
    %c0_22 = arith.constant 0 : index
    %c0_23 = arith.constant 0 : index
    %c0_24 = arith.constant 0 : index
    %52 = vector.load %arg16[%c0_22, %c0_23, %c0_24] : memref<8x8x64xf32, #tpu.memory_space<vmem>>, vector<1x8x32xf32>
    %53 = vector.shape_cast %52 : vector<1x8x32xf32> to vector<8x32xf32>
    %54 = vector.shape_cast %35 : vector<8x32xf32> to vector<1x8x32xf32>
    tpu.vector_store %arg16[%c0_22, %c0_23, %c0_24], %54 {strides = array<i32>} : memref<8x8x64xf32, #tpu.memory_space<vmem>>, vector<1x8x32xf32>,
    %c7_25 = arith.constant 7 : index
    %c0_26 = arith.constant 0 : index
    %c32 = arith.constant 32 : index
    %55 = vector.load %arg16[%c7_25, %c0_26, %c32] : memref<8x8x64xf32, #tpu.memory_space<vmem>>, vector<1x8x32xf32>
    %56 = vector.shape_cast %55 : vector<1x8x32xf32> to vector<8x32xf32>
    %57 = vector.shape_cast %51 : vector<8x32xf32> to vector<1x8x32xf32>
    tpu.vector_store %arg16[%c7_25, %c0_26, %c32], %57 {strides = array<i32>} : memref<8x8x64xf32, #tpu.memory_space<vmem>>, vector<1x8x32xf32>,
    %c1 = arith.constant 1 : index
    %c0_27 = arith.constant 0 : index
    %c0_28 = arith.constant 0 : index
    %58 = vector.load %arg15[%c1, %c0_27, %c0_28] : memref<8x8x256xf32, #tpu.memory_space<vmem>>, vector<1x8x128xf32>
    %59 = vector.shape_cast %58 : vector<1x8x128xf32> to vector<8x128xf32>
    %c0_29 = arith.constant 0 : index
    %c0_30 = arith.constant 0 : index
    %60 = vector.load %arg3[%c0_29, %c0_30] : memref<32x128xf32, #tpu.memory_space<vmem>>, vector<32x128xf32>
    %cst_31 = arith.constant dense<0.000000e+00> : vector<8x128xf32>
    %61 = tpu.matmul %35, %60, %cst_31 {dimension_numbers = #tpu.dot_dimension_numbers<[1], [0], [0], [1], [0, 0, 1, 1], [], []>} : vector<8x32xf32>, vector<32x128xf32>, vector<8x128xf32> -> vector<8x128xf32>
    %62 = arith.addf %59, %61 : vector<8x128xf32>
    %c6 = arith.constant 6 : index
    %c0_32 = arith.constant 0 : index
    %c128_33 = arith.constant 128 : index
    %63 = vector.load %arg15[%c6, %c0_32, %c128_33] : memref<8x8x256xf32, #tpu.memory_space<vmem>>, vector<1x8x128xf32>
    %64 = vector.shape_cast %63 : vector<1x8x128xf32> to vector<8x128xf32>
    %c0_34 = arith.constant 0 : index
    %c0_35 = arith.constant 0 : index
    %65 = vector.load %arg4[%c0_34, %c0_35] : memref<32x128xf32, #tpu.memory_space<vmem>>, vector<32x128xf32>
    %cst_36 = arith.constant dense<0.000000e+00> : vector<8x128xf32>
    %66 = tpu.matmul %51, %65, %cst_36 {dimension_numbers = #tpu.dot_dimension_numbers<[1], [0], [0], [1], [0, 0, 1, 1], [], []>} : vector<8x32xf32>, vector<32x128xf32>, vector<8x128xf32> -> vector<8x128xf32>
    %67 = arith.addf %64, %66 : vector<8x128xf32>
    %68 = vector.extract_strided_slice %62 {offsets = [0, 0], sizes = [8, 96], strides = [1, 1]} : vector<8x128xf32> to vector<8x96xf32>
    %69 = arith.negf %68 : vector<8x96xf32>
    %70 = math.exp %69 : vector<8x96xf32>
    %cst_37 = arith.constant 1.000000e+00 : f32
    %71 = vector.broadcast %cst_37 : f32 to vector<8x96xf32>
    %72 = arith.addf %71, %70 : vector<8x96xf32>
    %73 = arith.divf %71, %72 : vector<8x96xf32>
    %74 = vector.extract_strided_slice %62 {offsets = [0, 96], sizes = [8, 32], strides = [1, 1]} : vector<8x128xf32> to vector<8x32xf32>
    %75 = math.tanh %74 : vector<8x32xf32>
    %76 = vector.extract_strided_slice %73 {offsets = [0, 32], sizes = [8, 32], strides = [1, 1]} : vector<8x96xf32> to vector<8x32xf32>
    %77 = arith.mulf %76, %32 : vector<8x32xf32>
    %78 = vector.extract_strided_slice %73 {offsets = [0, 0], sizes = [8, 32], strides = [1, 1]} : vector<8x96xf32> to vector<8x32xf32>
    %79 = arith.mulf %78, %75 : vector<8x32xf32>
    %80 = arith.addf %77, %79 : vector<8x32xf32>
    %81 = vector.extract_strided_slice %73 {offsets = [0, 64], sizes = [8, 32], strides = [1, 1]} : vector<8x96xf32> to vector<8x32xf32>
    %82 = math.tanh %80 : vector<8x32xf32>
    %83 = arith.mulf %81, %82 : vector<8x32xf32>
    %84 = vector.extract_strided_slice %67 {offsets = [0, 0], sizes = [8, 96], strides = [1, 1]} : vector<8x128xf32> to vector<8x96xf32>
    %85 = arith.negf %84 : vector<8x96xf32>
    %86 = math.exp %85 : vector<8x96xf32>
    %cst_38 = arith.constant 1.000000e+00 : f32
    %87 = vector.broadcast %cst_38 : f32 to vector<8x96xf32>
    %88 = arith.addf %87, %86 : vector<8x96xf32>
    %89 = arith.divf %87, %88 : vector<8x96xf32>
    %90 = vector.extract_strided_slice %67 {offsets = [0, 96], sizes = [8, 32], strides = [1, 1]} : vector<8x128xf32> to vector<8x32xf32>
    %91 = math.tanh %90 : vector<8x32xf32>
    %92 = vector.extract_strided_slice %89 {offsets = [0, 32], sizes = [8, 32], strides = [1, 1]} : vector<8x96xf32> to vector<8x32xf32>
    %93 = arith.mulf %92, %48 : vector<8x32xf32>
    %94 = vector.extract_strided_slice %89 {offsets = [0, 0], sizes = [8, 32], strides = [1, 1]} : vector<8x96xf32> to vector<8x32xf32>
    %95 = arith.mulf %94, %91 : vector<8x32xf32>
    %96 = arith.addf %93, %95 : vector<8x32xf32>
    %97 = vector.extract_strided_slice %89 {offsets = [0, 64], sizes = [8, 32], strides = [1, 1]} : vector<8x96xf32> to vector<8x32xf32>
    %98 = math.tanh %96 : vector<8x32xf32>
    %99 = arith.mulf %97, %98 : vector<8x32xf32>
    %c1_39 = arith.constant 1 : index
    %c0_40 = arith.constant 0 : index
    %c0_41 = arith.constant 0 : index
    %100 = vector.load %arg16[%c1_39, %c0_40, %c0_41] : memref<8x8x64xf32, #tpu.memory_space<vmem>>, vector<1x8x32xf32>
    %101 = vector.shape_cast %100 : vector<1x8x32xf32> to vector<8x32xf32>
    %102 = vector.shape_cast %83 : vector<8x32xf32> to vector<1x8x32xf32>
    tpu.vector_store %arg16[%c1_39, %c0_40, %c0_41], %102 {strides = array<i32>} : memref<8x8x64xf32, #tpu.memory_space<vmem>>, vector<1x8x32xf32>,
    %c6_42 = arith.constant 6 : index
    %c0_43 = arith.constant 0 : index
    %c32_44 = arith.constant 32 : index
    %103 = vector.load %arg16[%c6_42, %c0_43, %c32_44] : memref<8x8x64xf32, #tpu.memory_space<vmem>>, vector<1x8x32xf32>
    %104 = vector.shape_cast %103 : vector<1x8x32xf32> to vector<8x32xf32>
    %105 = vector.shape_cast %99 : vector<8x32xf32> to vector<1x8x32xf32>
    tpu.vector_store %arg16[%c6_42, %c0_43, %c32_44], %105 {strides = array<i32>} : memref<8x8x64xf32, #tpu.memory_space<vmem>>, vector<1x8x32xf32>,
    %c2 = arith.constant 2 : index
    %c0_45 = arith.constant 0 : index
    %c0_46 = arith.constant 0 : index
    %106 = vector.load %arg15[%c2, %c0_45, %c0_46] : memref<8x8x256xf32, #tpu.memory_space<vmem>>, vector<1x8x128xf32>
    %107 = vector.shape_cast %106 : vector<1x8x128xf32> to vector<8x128xf32>
    %c0_47 = arith.constant 0 : index
    %c0_48 = arith.constant 0 : index
    %108 = vector.load %arg3[%c0_47, %c0_48] : memref<32x128xf32, #tpu.memory_space<vmem>>, vector<32x128xf32>
    %cst_49 = arith.constant dense<0.000000e+00> : vector<8x128xf32>
    %109 = tpu.matmul %83, %108, %cst_49 {dimension_numbers = #tpu.dot_dimension_numbers<[1], [0], [0], [1], [0, 0, 1, 1], [], []>} : vector<8x32xf32>, vector<32x128xf32>, vector<8x128xf32> -> vector<8x128xf32>
    %110 = arith.addf %107, %109 : vector<8x128xf32>
    %c5 = arith.constant 5 : index
    %c0_50 = arith.constant 0 : index
    %c128_51 = arith.constant 128 : index
    %111 = vector.load %arg15[%c5, %c0_50, %c128_51] : memref<8x8x256xf32, #tpu.memory_space<vmem>>, vector<1x8x128xf32>
    %112 = vector.shape_cast %111 : vector<1x8x128xf32> to vector<8x128xf32>
    %c0_52 = arith.constant 0 : index
    %c0_53 = arith.constant 0 : index
    %113 = vector.load %arg4[%c0_52, %c0_53] : memref<32x128xf32, #tpu.memory_space<vmem>>, vector<32x128xf32>
    %cst_54 = arith.constant dense<0.000000e+00> : vector<8x128xf32>
    %114 = tpu.matmul %99, %113, %cst_54 {dimension_numbers = #tpu.dot_dimension_numbers<[1], [0], [0], [1], [0, 0, 1, 1], [], []>} : vector<8x32xf32>, vector<32x128xf32>, vector<8x128xf32> -> vector<8x128xf32>
    %115 = arith.addf %112, %114 : vector<8x128xf32>
    %116 = vector.extract_strided_slice %110 {offsets = [0, 0], sizes = [8, 96], strides = [1, 1]} : vector<8x128xf32> to vector<8x96xf32>
    %117 = arith.negf %116 : vector<8x96xf32>
    %118 = math.exp %117 : vector<8x96xf32>
    %cst_55 = arith.constant 1.000000e+00 : f32
    %119 = vector.broadcast %cst_55 : f32 to vector<8x96xf32>
    %120 = arith.addf %119, %118 : vector<8x96xf32>
    %121 = arith.divf %119, %120 : vector<8x96xf32>
    %122 = vector.extract_strided_slice %110 {offsets = [0, 96], sizes = [8, 32], strides = [1, 1]} : vector<8x128xf32> to vector<8x32xf32>
    %123 = math.tanh %122 : vector<8x32xf32>
    %124 = vector.extract_strided_slice %121 {offsets = [0, 32], sizes = [8, 32], strides = [1, 1]} : vector<8x96xf32> to vector<8x32xf32>
    %125 = arith.mulf %124, %80 : vector<8x32xf32>
    %126 = vector.extract_strided_slice %121 {offsets = [0, 0], sizes = [8, 32], strides = [1, 1]} : vector<8x96xf32> to vector<8x32xf32>
    %127 = arith.mulf %126, %123 : vector<8x32xf32>
    %128 = arith.addf %125, %127 : vector<8x32xf32>
    %129 = vector.extract_strided_slice %121 {offsets = [0, 64], sizes = [8, 32], strides = [1, 1]} : vector<8x96xf32> to vector<8x32xf32>
    %130 = math.tanh %128 : vector<8x32xf32>
    %131 = arith.mulf %129, %130 : vector<8x32xf32>
    %132 = vector.extract_strided_slice %115 {offsets = [0, 0], sizes = [8, 96], strides = [1, 1]} : vector<8x128xf32> to vector<8x96xf32>
    %133 = arith.negf %132 : vector<8x96xf32>
    %134 = math.exp %133 : vector<8x96xf32>
    %cst_56 = arith.constant 1.000000e+00 : f32
    %135 = vector.broadcast %cst_56 : f32 to vector<8x96xf32>
    %136 = arith.addf %135, %134 : vector<8x96xf32>
    %137 = arith.divf %135, %136 : vector<8x96xf32>
    %138 = vector.extract_strided_slice %115 {offsets = [0, 96], sizes = [8, 32], strides = [1, 1]} : vector<8x128xf32> to vector<8x32xf32>
    %139 = math.tanh %138 : vector<8x32xf32>
    %140 = vector.extract_strided_slice %137 {offsets = [0, 32], sizes = [8, 32], strides = [1, 1]} : vector<8x96xf32> to vector<8x32xf32>
    %141 = arith.mulf %140, %96 : vector<8x32xf32>
    %142 = vector.extract_strided_slice %137 {offsets = [0, 0], sizes = [8, 32], strides = [1, 1]} : vector<8x96xf32> to vector<8x32xf32>
    %143 = arith.mulf %142, %139 : vector<8x32xf32>
    %144 = arith.addf %141, %143 : vector<8x32xf32>
    %145 = vector.extract_strided_slice %137 {offsets = [0, 64], sizes = [8, 32], strides = [1, 1]} : vector<8x96xf32> to vector<8x32xf32>
    %146 = math.tanh %144 : vector<8x32xf32>
    %147 = arith.mulf %145, %146 : vector<8x32xf32>
    %c2_57 = arith.constant 2 : index
    %c0_58 = arith.constant 0 : index
    %c0_59 = arith.constant 0 : index
    %148 = vector.load %arg16[%c2_57, %c0_58, %c0_59] : memref<8x8x64xf32, #tpu.memory_space<vmem>>, vector<1x8x32xf32>
    %149 = vector.shape_cast %148 : vector<1x8x32xf32> to vector<8x32xf32>
    %150 = vector.shape_cast %131 : vector<8x32xf32> to vector<1x8x32xf32>
    tpu.vector_store %arg16[%c2_57, %c0_58, %c0_59], %150 {strides = array<i32>} : memref<8x8x64xf32, #tpu.memory_space<vmem>>, vector<1x8x32xf32>,
    %c5_60 = arith.constant 5 : index
    %c0_61 = arith.constant 0 : index
    %c32_62 = arith.constant 32 : index
    %151 = vector.load %arg16[%c5_60, %c0_61, %c32_62] : memref<8x8x64xf32, #tpu.memory_space<vmem>>, vector<1x8x32xf32>
    %152 = vector.shape_cast %151 : vector<1x8x32xf32> to vector<8x32xf32>
    %153 = vector.shape_cast %147 : vector<8x32xf32> to vector<1x8x32xf32>
    tpu.vector_store %arg16[%c5_60, %c0_61, %c32_62], %153 {strides = array<i32>} : memref<8x8x64xf32, #tpu.memory_space<vmem>>, vector<1x8x32xf32>,
    %c3 = arith.constant 3 : index
    %c0_63 = arith.constant 0 : index
    %c0_64 = arith.constant 0 : index
    %154 = vector.load %arg15[%c3, %c0_63, %c0_64] : memref<8x8x256xf32, #tpu.memory_space<vmem>>, vector<1x8x128xf32>
    %155 = vector.shape_cast %154 : vector<1x8x128xf32> to vector<8x128xf32>
    %c0_65 = arith.constant 0 : index
    %c0_66 = arith.constant 0 : index
    %156 = vector.load %arg3[%c0_65, %c0_66] : memref<32x128xf32, #tpu.memory_space<vmem>>, vector<32x128xf32>
    %cst_67 = arith.constant dense<0.000000e+00> : vector<8x128xf32>
    %157 = tpu.matmul %131, %156, %cst_67 {dimension_numbers = #tpu.dot_dimension_numbers<[1], [0], [0], [1], [0, 0, 1, 1], [], []>} : vector<8x32xf32>, vector<32x128xf32>, vector<8x128xf32> -> vector<8x128xf32>
    %158 = arith.addf %155, %157 : vector<8x128xf32>
    %c4 = arith.constant 4 : index
    %c0_68 = arith.constant 0 : index
    %c128_69 = arith.constant 128 : index
    %159 = vector.load %arg15[%c4, %c0_68, %c128_69] : memref<8x8x256xf32, #tpu.memory_space<vmem>>, vector<1x8x128xf32>
    %160 = vector.shape_cast %159 : vector<1x8x128xf32> to vector<8x128xf32>
    %c0_70 = arith.constant 0 : index
    %c0_71 = arith.constant 0 : index
    %161 = vector.load %arg4[%c0_70, %c0_71] : memref<32x128xf32, #tpu.memory_space<vmem>>, vector<32x128xf32>
    %cst_72 = arith.constant dense<0.000000e+00> : vector<8x128xf32>
    %162 = tpu.matmul %147, %161, %cst_72 {dimension_numbers = #tpu.dot_dimension_numbers<[1], [0], [0], [1], [0, 0, 1, 1], [], []>} : vector<8x32xf32>, vector<32x128xf32>, vector<8x128xf32> -> vector<8x128xf32>
    %163 = arith.addf %160, %162 : vector<8x128xf32>
    %164 = vector.extract_strided_slice %158 {offsets = [0, 0], sizes = [8, 96], strides = [1, 1]} : vector<8x128xf32> to vector<8x96xf32>
    %165 = arith.negf %164 : vector<8x96xf32>
    %166 = math.exp %165 : vector<8x96xf32>
    %cst_73 = arith.constant 1.000000e+00 : f32
    %167 = vector.broadcast %cst_73 : f32 to vector<8x96xf32>
    %168 = arith.addf %167, %166 : vector<8x96xf32>
    %169 = arith.divf %167, %168 : vector<8x96xf32>
    %170 = vector.extract_strided_slice %158 {offsets = [0, 96], sizes = [8, 32], strides = [1, 1]} : vector<8x128xf32> to vector<8x32xf32>
    %171 = math.tanh %170 : vector<8x32xf32>
    %172 = vector.extract_strided_slice %169 {offsets = [0, 32], sizes = [8, 32], strides = [1, 1]} : vector<8x96xf32> to vector<8x32xf32>
    %173 = arith.mulf %172, %128 : vector<8x32xf32>
    %174 = vector.extract_strided_slice %169 {offsets = [0, 0], sizes = [8, 32], strides = [1, 1]} : vector<8x96xf32> to vector<8x32xf32>
    %175 = arith.mulf %174, %171 : vector<8x32xf32>
    %176 = arith.addf %173, %175 : vector<8x32xf32>
    %177 = vector.extract_strided_slice %169 {offsets = [0, 64], sizes = [8, 32], strides = [1, 1]} : vector<8x96xf32> to vector<8x32xf32>
    %178 = math.tanh %176 : vector<8x32xf32>
    %179 = arith.mulf %177, %178 : vector<8x32xf32>
    %180 = vector.extract_strided_slice %163 {offsets = [0, 0], sizes = [8, 96], strides = [1, 1]} : vector<8x128xf32> to vector<8x96xf32>
    %181 = arith.negf %180 : vector<8x96xf32>
    %182 = math.exp %181 : vector<8x96xf32>
    %cst_74 = arith.constant 1.000000e+00 : f32
    %183 = vector.broadcast %cst_74 : f32 to vector<8x96xf32>
    %184 = arith.addf %183, %182 : vector<8x96xf32>
    %185 = arith.divf %183, %184 : vector<8x96xf32>
    %186 = vector.extract_strided_slice %163 {offsets = [0, 96], sizes = [8, 32], strides = [1, 1]} : vector<8x128xf32> to vector<8x32xf32>
    %187 = math.tanh %186 : vector<8x32xf32>
    %188 = vector.extract_strided_slice %185 {offsets = [0, 32], sizes = [8, 32], strides = [1, 1]} : vector<8x96xf32> to vector<8x32xf32>
    %189 = arith.mulf %188, %144 : vector<8x32xf32>
    %190 = vector.extract_strided_slice %185 {offsets = [0, 0], sizes = [8, 32], strides = [1, 1]} : vector<8x96xf32> to vector<8x32xf32>
    %191 = arith.mulf %190, %187 : vector<8x32xf32>
    %192 = arith.addf %189, %191 : vector<8x32xf32>
    %193 = vector.extract_strided_slice %185 {offsets = [0, 64], sizes = [8, 32], strides = [1, 1]} : vector<8x96xf32> to vector<8x32xf32>
    %194 = math.tanh %192 : vector<8x32xf32>
    %195 = arith.mulf %193, %194 : vector<8x32xf32>
    %c3_75 = arith.constant 3 : index
    %c0_76 = arith.constant 0 : index
    %c0_77 = arith.constant 0 : index
    %196 = vector.load %arg16[%c3_75, %c0_76, %c0_77] : memref<8x8x64xf32, #tpu.memory_space<vmem>>, vector<1x8x32xf32>
    %197 = vector.shape_cast %196 : vector<1x8x32xf32> to vector<8x32xf32>
    %198 = vector.shape_cast %179 : vector<8x32xf32> to vector<1x8x32xf32>
    tpu.vector_store %arg16[%c3_75, %c0_76, %c0_77], %198 {strides = array<i32>} : memref<8x8x64xf32, #tpu.memory_space<vmem>>, vector<1x8x32xf32>,
    %c4_78 = arith.constant 4 : index
    %c0_79 = arith.constant 0 : index
    %c32_80 = arith.constant 32 : index
    %199 = vector.load %arg16[%c4_78, %c0_79, %c32_80] : memref<8x8x64xf32, #tpu.memory_space<vmem>>, vector<1x8x32xf32>
    %200 = vector.shape_cast %199 : vector<1x8x32xf32> to vector<8x32xf32>
    %201 = vector.shape_cast %195 : vector<8x32xf32> to vector<1x8x32xf32>
    tpu.vector_store %arg16[%c4_78, %c0_79, %c32_80], %201 {strides = array<i32>} : memref<8x8x64xf32, #tpu.memory_space<vmem>>, vector<1x8x32xf32>,
    %c4_81 = arith.constant 4 : index
    %c0_82 = arith.constant 0 : index
    %c0_83 = arith.constant 0 : index
    %202 = vector.load %arg15[%c4_81, %c0_82, %c0_83] : memref<8x8x256xf32, #tpu.memory_space<vmem>>, vector<1x8x128xf32>
    %203 = vector.shape_cast %202 : vector<1x8x128xf32> to vector<8x128xf32>
    %c0_84 = arith.constant 0 : index
    %c0_85 = arith.constant 0 : index
    %204 = vector.load %arg3[%c0_84, %c0_85] : memref<32x128xf32, #tpu.memory_space<vmem>>, vector<32x128xf32>
    %cst_86 = arith.constant dense<0.000000e+00> : vector<8x128xf32>
    %205 = tpu.matmul %179, %204, %cst_86 {dimension_numbers = #tpu.dot_dimension_numbers<[1], [0], [0], [1], [0, 0, 1, 1], [], []>} : vector<8x32xf32>, vector<32x128xf32>, vector<8x128xf32> -> vector<8x128xf32>
    %206 = arith.addf %203, %205 : vector<8x128xf32>
    %c3_87 = arith.constant 3 : index
    %c0_88 = arith.constant 0 : index
    %c128_89 = arith.constant 128 : index
    %207 = vector.load %arg15[%c3_87, %c0_88, %c128_89] : memref<8x8x256xf32, #tpu.memory_space<vmem>>, vector<1x8x128xf32>
    %208 = vector.shape_cast %207 : vector<1x8x128xf32> to vector<8x128xf32>
    %c0_90 = arith.constant 0 : index
    %c0_91 = arith.constant 0 : index
    %209 = vector.load %arg4[%c0_90, %c0_91] : memref<32x128xf32, #tpu.memory_space<vmem>>, vector<32x128xf32>
    %cst_92 = arith.constant dense<0.000000e+00> : vector<8x128xf32>
    %210 = tpu.matmul %195, %209, %cst_92 {dimension_numbers = #tpu.dot_dimension_numbers<[1], [0], [0], [1], [0, 0, 1, 1], [], []>} : vector<8x32xf32>, vector<32x128xf32>, vector<8x128xf32> -> vector<8x128xf32>
    %211 = arith.addf %208, %210 : vector<8x128xf32>
    %212 = vector.extract_strided_slice %206 {offsets = [0, 0], sizes = [8, 96], strides = [1, 1]} : vector<8x128xf32> to vector<8x96xf32>
    %213 = arith.negf %212 : vector<8x96xf32>
    %214 = math.exp %213 : vector<8x96xf32>
    %cst_93 = arith.constant 1.000000e+00 : f32
    %215 = vector.broadcast %cst_93 : f32 to vector<8x96xf32>
    %216 = arith.addf %215, %214 : vector<8x96xf32>
    %217 = arith.divf %215, %216 : vector<8x96xf32>
    %218 = vector.extract_strided_slice %206 {offsets = [0, 96], sizes = [8, 32], strides = [1, 1]} : vector<8x128xf32> to vector<8x32xf32>
    %219 = math.tanh %218 : vector<8x32xf32>
    %220 = vector.extract_strided_slice %217 {offsets = [0, 32], sizes = [8, 32], strides = [1, 1]} : vector<8x96xf32> to vector<8x32xf32>
    %221 = arith.mulf %220, %176 : vector<8x32xf32>
    %222 = vector.extract_strided_slice %217 {offsets = [0, 0], sizes = [8, 32], strides = [1, 1]} : vector<8x96xf32> to vector<8x32xf32>
    %223 = arith.mulf %222, %219 : vector<8x32xf32>
    %224 = arith.addf %221, %223 : vector<8x32xf32>
    %225 = vector.extract_strided_slice %217 {offsets = [0, 64], sizes = [8, 32], strides = [1, 1]} : vector<8x96xf32> to vector<8x32xf32>
    %226 = math.tanh %224 : vector<8x32xf32>
    %227 = arith.mulf %225, %226 : vector<8x32xf32>
    %228 = vector.extract_strided_slice %211 {offsets = [0, 0], sizes = [8, 96], strides = [1, 1]} : vector<8x128xf32> to vector<8x96xf32>
    %229 = arith.negf %228 : vector<8x96xf32>
    %230 = math.exp %229 : vector<8x96xf32>
    %cst_94 = arith.constant 1.000000e+00 : f32
    %231 = vector.broadcast %cst_94 : f32 to vector<8x96xf32>
    %232 = arith.addf %231, %230 : vector<8x96xf32>
    %233 = arith.divf %231, %232 : vector<8x96xf32>
    %234 = vector.extract_strided_slice %211 {offsets = [0, 96], sizes = [8, 32], strides = [1, 1]} : vector<8x128xf32> to vector<8x32xf32>
    %235 = math.tanh %234 : vector<8x32xf32>
    %236 = vector.extract_strided_slice %233 {offsets = [0, 32], sizes = [8, 32], strides = [1, 1]} : vector<8x96xf32> to vector<8x32xf32>
    %237 = arith.mulf %236, %192 : vector<8x32xf32>
    %238 = vector.extract_strided_slice %233 {offsets = [0, 0], sizes = [8, 32], strides = [1, 1]} : vector<8x96xf32> to vector<8x32xf32>
    %239 = arith.mulf %238, %235 : vector<8x32xf32>
    %240 = arith.addf %237, %239 : vector<8x32xf32>
    %241 = vector.extract_strided_slice %233 {offsets = [0, 64], sizes = [8, 32], strides = [1, 1]} : vector<8x96xf32> to vector<8x32xf32>
    %242 = math.tanh %240 : vector<8x32xf32>
    %243 = arith.mulf %241, %242 : vector<8x32xf32>
    %c4_95 = arith.constant 4 : index
    %c0_96 = arith.constant 0 : index
    %c0_97 = arith.constant 0 : index
    %244 = vector.load %arg16[%c4_95, %c0_96, %c0_97] : memref<8x8x64xf32, #tpu.memory_space<vmem>>, vector<1x8x32xf32>
    %245 = vector.shape_cast %244 : vector<1x8x32xf32> to vector<8x32xf32>
    %246 = vector.shape_cast %227 : vector<8x32xf32> to vector<1x8x32xf32>
    tpu.vector_store %arg16[%c4_95, %c0_96, %c0_97], %246 {strides = array<i32>} : memref<8x8x64xf32, #tpu.memory_space<vmem>>, vector<1x8x32xf32>,
    %c3_98 = arith.constant 3 : index
    %c0_99 = arith.constant 0 : index
    %c32_100 = arith.constant 32 : index
    %247 = vector.load %arg16[%c3_98, %c0_99, %c32_100] : memref<8x8x64xf32, #tpu.memory_space<vmem>>, vector<1x8x32xf32>
    %248 = vector.shape_cast %247 : vector<1x8x32xf32> to vector<8x32xf32>
    %249 = vector.shape_cast %243 : vector<8x32xf32> to vector<1x8x32xf32>
    tpu.vector_store %arg16[%c3_98, %c0_99, %c32_100], %249 {strides = array<i32>} : memref<8x8x64xf32, #tpu.memory_space<vmem>>, vector<1x8x32xf32>,
    %c5_101 = arith.constant 5 : index
    %c0_102 = arith.constant 0 : index
    %c0_103 = arith.constant 0 : index
    %250 = vector.load %arg15[%c5_101, %c0_102, %c0_103] : memref<8x8x256xf32, #tpu.memory_space<vmem>>, vector<1x8x128xf32>
    %251 = vector.shape_cast %250 : vector<1x8x128xf32> to vector<8x128xf32>
    %c0_104 = arith.constant 0 : index
    %c0_105 = arith.constant 0 : index
    %252 = vector.load %arg3[%c0_104, %c0_105] : memref<32x128xf32, #tpu.memory_space<vmem>>, vector<32x128xf32>
    %cst_106 = arith.constant dense<0.000000e+00> : vector<8x128xf32>
    %253 = tpu.matmul %227, %252, %cst_106 {dimension_numbers = #tpu.dot_dimension_numbers<[1], [0], [0], [1], [0, 0, 1, 1], [], []>} : vector<8x32xf32>, vector<32x128xf32>, vector<8x128xf32> -> vector<8x128xf32>
    %254 = arith.addf %251, %253 : vector<8x128xf32>
    %c2_107 = arith.constant 2 : index
    %c0_108 = arith.constant 0 : index
    %c128_109 = arith.constant 128 : index
    %255 = vector.load %arg15[%c2_107, %c0_108, %c128_109] : memref<8x8x256xf32, #tpu.memory_space<vmem>>, vector<1x8x128xf32>
    %256 = vector.shape_cast %255 : vector<1x8x128xf32> to vector<8x128xf32>
    %c0_110 = arith.constant 0 : index
    %c0_111 = arith.constant 0 : index
    %257 = vector.load %arg4[%c0_110, %c0_111] : memref<32x128xf32, #tpu.memory_space<vmem>>, vector<32x128xf32>
    %cst_112 = arith.constant dense<0.000000e+00> : vector<8x128xf32>
    %258 = tpu.matmul %243, %257, %cst_112 {dimension_numbers = #tpu.dot_dimension_numbers<[1], [0], [0], [1], [0, 0, 1, 1], [], []>} : vector<8x32xf32>, vector<32x128xf32>, vector<8x128xf32> -> vector<8x128xf32>
    %259 = arith.addf %256, %258 : vector<8x128xf32>
    %260 = vector.extract_strided_slice %254 {offsets = [0, 0], sizes = [8, 96], strides = [1, 1]} : vector<8x128xf32> to vector<8x96xf32>
    %261 = arith.negf %260 : vector<8x96xf32>
    %262 = math.exp %261 : vector<8x96xf32>
    %cst_113 = arith.constant 1.000000e+00 : f32
    %263 = vector.broadcast %cst_113 : f32 to vector<8x96xf32>
    %264 = arith.addf %263, %262 : vector<8x96xf32>
    %265 = arith.divf %263, %264 : vector<8x96xf32>
    %266 = vector.extract_strided_slice %254 {offsets = [0, 96], sizes = [8, 32], strides = [1, 1]} : vector<8x128xf32> to vector<8x32xf32>
    %267 = math.tanh %266 : vector<8x32xf32>
    %268 = vector.extract_strided_slice %265 {offsets = [0, 32], sizes = [8, 32], strides = [1, 1]} : vector<8x96xf32> to vector<8x32xf32>
    %269 = arith.mulf %268, %224 : vector<8x32xf32>
    %270 = vector.extract_strided_slice %265 {offsets = [0, 0], sizes = [8, 32], strides = [1, 1]} : vector<8x96xf32> to vector<8x32xf32>
    %271 = arith.mulf %270, %267 : vector<8x32xf32>
    %272 = arith.addf %269, %271 : vector<8x32xf32>
    %273 = vector.extract_strided_slice %265 {offsets = [0, 64], sizes = [8, 32], strides = [1, 1]} : vector<8x96xf32> to vector<8x32xf32>
    %274 = math.tanh %272 : vector<8x32xf32>
    %275 = arith.mulf %273, %274 : vector<8x32xf32>
    %276 = vector.extract_strided_slice %259 {offsets = [0, 0], sizes = [8, 96], strides = [1, 1]} : vector<8x128xf32> to vector<8x96xf32>
    %277 = arith.negf %276 : vector<8x96xf32>
    %278 = math.exp %277 : vector<8x96xf32>
    %cst_114 = arith.constant 1.000000e+00 : f32
    %279 = vector.broadcast %cst_114 : f32 to vector<8x96xf32>
    %280 = arith.addf %279, %278 : vector<8x96xf32>
    %281 = arith.divf %279, %280 : vector<8x96xf32>
    %282 = vector.extract_strided_slice %259 {offsets = [0, 96], sizes = [8, 32], strides = [1, 1]} : vector<8x128xf32> to vector<8x32xf32>
    %283 = math.tanh %282 : vector<8x32xf32>
    %284 = vector.extract_strided_slice %281 {offsets = [0, 32], sizes = [8, 32], strides = [1, 1]} : vector<8x96xf32> to vector<8x32xf32>
    %285 = arith.mulf %284, %240 : vector<8x32xf32>
    %286 = vector.extract_strided_slice %281 {offsets = [0, 0], sizes = [8, 32], strides = [1, 1]} : vector<8x96xf32> to vector<8x32xf32>
    %287 = arith.mulf %286, %283 : vector<8x32xf32>
    %288 = arith.addf %285, %287 : vector<8x32xf32>
    %289 = vector.extract_strided_slice %281 {offsets = [0, 64], sizes = [8, 32], strides = [1, 1]} : vector<8x96xf32> to vector<8x32xf32>
    %290 = math.tanh %288 : vector<8x32xf32>
    %291 = arith.mulf %289, %290 : vector<8x32xf32>
    %c5_115 = arith.constant 5 : index
    %c0_116 = arith.constant 0 : index
    %c0_117 = arith.constant 0 : index
    %292 = vector.load %arg16[%c5_115, %c0_116, %c0_117] : memref<8x8x64xf32, #tpu.memory_space<vmem>>, vector<1x8x32xf32>
    %293 = vector.shape_cast %292 : vector<1x8x32xf32> to vector<8x32xf32>
    %294 = vector.shape_cast %275 : vector<8x32xf32> to vector<1x8x32xf32>
    tpu.vector_store %arg16[%c5_115, %c0_116, %c0_117], %294 {strides = array<i32>} : memref<8x8x64xf32, #tpu.memory_space<vmem>>, vector<1x8x32xf32>,
    %c2_118 = arith.constant 2 : index
    %c0_119 = arith.constant 0 : index
    %c32_120 = arith.constant 32 : index
    %295 = vector.load %arg16[%c2_118, %c0_119, %c32_120] : memref<8x8x64xf32, #tpu.memory_space<vmem>>, vector<1x8x32xf32>
    %296 = vector.shape_cast %295 : vector<1x8x32xf32> to vector<8x32xf32>
    %297 = vector.shape_cast %291 : vector<8x32xf32> to vector<1x8x32xf32>
    tpu.vector_store %arg16[%c2_118, %c0_119, %c32_120], %297 {strides = array<i32>} : memref<8x8x64xf32, #tpu.memory_space<vmem>>, vector<1x8x32xf32>,
    %c6_121 = arith.constant 6 : index
    %c0_122 = arith.constant 0 : index
    %c0_123 = arith.constant 0 : index
    %298 = vector.load %arg15[%c6_121, %c0_122, %c0_123] : memref<8x8x256xf32, #tpu.memory_space<vmem>>, vector<1x8x128xf32>
    %299 = vector.shape_cast %298 : vector<1x8x128xf32> to vector<8x128xf32>
    %c0_124 = arith.constant 0 : index
    %c0_125 = arith.constant 0 : index
    %300 = vector.load %arg3[%c0_124, %c0_125] : memref<32x128xf32, #tpu.memory_space<vmem>>, vector<32x128xf32>
    %cst_126 = arith.constant dense<0.000000e+00> : vector<8x128xf32>
    %301 = tpu.matmul %275, %300, %cst_126 {dimension_numbers = #tpu.dot_dimension_numbers<[1], [0], [0], [1], [0, 0, 1, 1], [], []>} : vector<8x32xf32>, vector<32x128xf32>, vector<8x128xf32> -> vector<8x128xf32>
    %302 = arith.addf %299, %301 : vector<8x128xf32>
    %c1_127 = arith.constant 1 : index
    %c0_128 = arith.constant 0 : index
    %c128_129 = arith.constant 128 : index
    %303 = vector.load %arg15[%c1_127, %c0_128, %c128_129] : memref<8x8x256xf32, #tpu.memory_space<vmem>>, vector<1x8x128xf32>
    %304 = vector.shape_cast %303 : vector<1x8x128xf32> to vector<8x128xf32>
    %c0_130 = arith.constant 0 : index
    %c0_131 = arith.constant 0 : index
    %305 = vector.load %arg4[%c0_130, %c0_131] : memref<32x128xf32, #tpu.memory_space<vmem>>, vector<32x128xf32>
    %cst_132 = arith.constant dense<0.000000e+00> : vector<8x128xf32>
    %306 = tpu.matmul %291, %305, %cst_132 {dimension_numbers = #tpu.dot_dimension_numbers<[1], [0], [0], [1], [0, 0, 1, 1], [], []>} : vector<8x32xf32>, vector<32x128xf32>, vector<8x128xf32> -> vector<8x128xf32>
    %307 = arith.addf %304, %306 : vector<8x128xf32>
    %308 = vector.extract_strided_slice %302 {offsets = [0, 0], sizes = [8, 96], strides = [1, 1]} : vector<8x128xf32> to vector<8x96xf32>
    %309 = arith.negf %308 : vector<8x96xf32>
    %310 = math.exp %309 : vector<8x96xf32>
    %cst_133 = arith.constant 1.000000e+00 : f32
    %311 = vector.broadcast %cst_133 : f32 to vector<8x96xf32>
    %312 = arith.addf %311, %310 : vector<8x96xf32>
    %313 = arith.divf %311, %312 : vector<8x96xf32>
    %314 = vector.extract_strided_slice %302 {offsets = [0, 96], sizes = [8, 32], strides = [1, 1]} : vector<8x128xf32> to vector<8x32xf32>
    %315 = math.tanh %314 : vector<8x32xf32>
    %316 = vector.extract_strided_slice %313 {offsets = [0, 32], sizes = [8, 32], strides = [1, 1]} : vector<8x96xf32> to vector<8x32xf32>
    %317 = arith.mulf %316, %272 : vector<8x32xf32>
    %318 = vector.extract_strided_slice %313 {offsets = [0, 0], sizes = [8, 32], strides = [1, 1]} : vector<8x96xf32> to vector<8x32xf32>
    %319 = arith.mulf %318, %315 : vector<8x32xf32>
    %320 = arith.addf %317, %319 : vector<8x32xf32>
    %321 = vector.extract_strided_slice %313 {offsets = [0, 64], sizes = [8, 32], strides = [1, 1]} : vector<8x96xf32> to vector<8x32xf32>
    %322 = math.tanh %320 : vector<8x32xf32>
    %323 = arith.mulf %321, %322 : vector<8x32xf32>
    %324 = vector.extract_strided_slice %307 {offsets = [0, 0], sizes = [8, 96], strides = [1, 1]} : vector<8x128xf32> to vector<8x96xf32>
    %325 = arith.negf %324 : vector<8x96xf32>
    %326 = math.exp %325 : vector<8x96xf32>
    %cst_134 = arith.constant 1.000000e+00 : f32
    %327 = vector.broadcast %cst_134 : f32 to vector<8x96xf32>
    %328 = arith.addf %327, %326 : vector<8x96xf32>
    %329 = arith.divf %327, %328 : vector<8x96xf32>
    %330 = vector.extract_strided_slice %307 {offsets = [0, 96], sizes = [8, 32], strides = [1, 1]} : vector<8x128xf32> to vector<8x32xf32>
    %331 = math.tanh %330 : vector<8x32xf32>
    %332 = vector.extract_strided_slice %329 {offsets = [0, 32], sizes = [8, 32], strides = [1, 1]} : vector<8x96xf32> to vector<8x32xf32>
    %333 = arith.mulf %332, %288 : vector<8x32xf32>
    %334 = vector.extract_strided_slice %329 {offsets = [0, 0], sizes = [8, 32], strides = [1, 1]} : vector<8x96xf32> to vector<8x32xf32>
    %335 = arith.mulf %334, %331 : vector<8x32xf32>
    %336 = arith.addf %333, %335 : vector<8x32xf32>
    %337 = vector.extract_strided_slice %329 {offsets = [0, 64], sizes = [8, 32], strides = [1, 1]} : vector<8x96xf32> to vector<8x32xf32>
    %338 = math.tanh %336 : vector<8x32xf32>
    %339 = arith.mulf %337, %338 : vector<8x32xf32>
    %c6_135 = arith.constant 6 : index
    %c0_136 = arith.constant 0 : index
    %c0_137 = arith.constant 0 : index
    %340 = vector.load %arg16[%c6_135, %c0_136, %c0_137] : memref<8x8x64xf32, #tpu.memory_space<vmem>>, vector<1x8x32xf32>
    %341 = vector.shape_cast %340 : vector<1x8x32xf32> to vector<8x32xf32>
    %342 = vector.shape_cast %323 : vector<8x32xf32> to vector<1x8x32xf32>
    tpu.vector_store %arg16[%c6_135, %c0_136, %c0_137], %342 {strides = array<i32>} : memref<8x8x64xf32, #tpu.memory_space<vmem>>, vector<1x8x32xf32>,
    %c1_138 = arith.constant 1 : index
    %c0_139 = arith.constant 0 : index
    %c32_140 = arith.constant 32 : index
    %343 = vector.load %arg16[%c1_138, %c0_139, %c32_140] : memref<8x8x64xf32, #tpu.memory_space<vmem>>, vector<1x8x32xf32>
    %344 = vector.shape_cast %343 : vector<1x8x32xf32> to vector<8x32xf32>
    %345 = vector.shape_cast %339 : vector<8x32xf32> to vector<1x8x32xf32>
    tpu.vector_store %arg16[%c1_138, %c0_139, %c32_140], %345 {strides = array<i32>} : memref<8x8x64xf32, #tpu.memory_space<vmem>>, vector<1x8x32xf32>,
    %c7_141 = arith.constant 7 : index
    %c0_142 = arith.constant 0 : index
    %c0_143 = arith.constant 0 : index
    %346 = vector.load %arg15[%c7_141, %c0_142, %c0_143] : memref<8x8x256xf32, #tpu.memory_space<vmem>>, vector<1x8x128xf32>
    %347 = vector.shape_cast %346 : vector<1x8x128xf32> to vector<8x128xf32>
    %c0_144 = arith.constant 0 : index
    %c0_145 = arith.constant 0 : index
    %348 = vector.load %arg3[%c0_144, %c0_145] : memref<32x128xf32, #tpu.memory_space<vmem>>, vector<32x128xf32>
    %cst_146 = arith.constant dense<0.000000e+00> : vector<8x128xf32>
    %349 = tpu.matmul %323, %348, %cst_146 {dimension_numbers = #tpu.dot_dimension_numbers<[1], [0], [0], [1], [0, 0, 1, 1], [], []>} : vector<8x32xf32>, vector<32x128xf32>, vector<8x128xf32> -> vector<8x128xf32>
    %350 = arith.addf %347, %349 : vector<8x128xf32>
    %c0_147 = arith.constant 0 : index
    %c0_148 = arith.constant 0 : index
    %c128_149 = arith.constant 128 : index
    %351 = vector.load %arg15[%c0_147, %c0_148, %c128_149] : memref<8x8x256xf32, #tpu.memory_space<vmem>>, vector<1x8x128xf32>
    %352 = vector.shape_cast %351 : vector<1x8x128xf32> to vector<8x128xf32>
    %c0_150 = arith.constant 0 : index
    %c0_151 = arith.constant 0 : index
    %353 = vector.load %arg4[%c0_150, %c0_151] : memref<32x128xf32, #tpu.memory_space<vmem>>, vector<32x128xf32>
    %cst_152 = arith.constant dense<0.000000e+00> : vector<8x128xf32>
    %354 = tpu.matmul %339, %353, %cst_152 {dimension_numbers = #tpu.dot_dimension_numbers<[1], [0], [0], [1], [0, 0, 1, 1], [], []>} : vector<8x32xf32>, vector<32x128xf32>, vector<8x128xf32> -> vector<8x128xf32>
    %355 = arith.addf %352, %354 : vector<8x128xf32>
    %356 = vector.extract_strided_slice %350 {offsets = [0, 0], sizes = [8, 96], strides = [1, 1]} : vector<8x128xf32> to vector<8x96xf32>
    %357 = arith.negf %356 : vector<8x96xf32>
    %358 = math.exp %357 : vector<8x96xf32>
    %cst_153 = arith.constant 1.000000e+00 : f32
    %359 = vector.broadcast %cst_153 : f32 to vector<8x96xf32>
    %360 = arith.addf %359, %358 : vector<8x96xf32>
    %361 = arith.divf %359, %360 : vector<8x96xf32>
    %362 = vector.extract_strided_slice %350 {offsets = [0, 96], sizes = [8, 32], strides = [1, 1]} : vector<8x128xf32> to vector<8x32xf32>
    %363 = math.tanh %362 : vector<8x32xf32>
    %364 = vector.extract_strided_slice %361 {offsets = [0, 32], sizes = [8, 32], strides = [1, 1]} : vector<8x96xf32> to vector<8x32xf32>
    %365 = arith.mulf %364, %320 : vector<8x32xf32>
    %366 = vector.extract_strided_slice %361 {offsets = [0, 0], sizes = [8, 32], strides = [1, 1]} : vector<8x96xf32> to vector<8x32xf32>
    %367 = arith.mulf %366, %363 : vector<8x32xf32>
    %368 = arith.addf %365, %367 : vector<8x32xf32>
    %369 = vector.extract_strided_slice %361 {offsets = [0, 64], sizes = [8, 32], strides = [1, 1]} : vector<8x96xf32> to vector<8x32xf32>
    %370 = math.tanh %368 : vector<8x32xf32>
    %371 = arith.mulf %369, %370 : vector<8x32xf32>
    %372 = vector.extract_strided_slice %355 {offsets = [0, 0], sizes = [8, 96], strides = [1, 1]} : vector<8x128xf32> to vector<8x96xf32>
    %373 = arith.negf %372 : vector<8x96xf32>
    %374 = math.exp %373 : vector<8x96xf32>
    %cst_154 = arith.constant 1.000000e+00 : f32
    %375 = vector.broadcast %cst_154 : f32 to vector<8x96xf32>
    %376 = arith.addf %375, %374 : vector<8x96xf32>
    %377 = arith.divf %375, %376 : vector<8x96xf32>
    %378 = vector.extract_strided_slice %355 {offsets = [0, 96], sizes = [8, 32], strides = [1, 1]} : vector<8x128xf32> to vector<8x32xf32>
    %379 = math.tanh %378 : vector<8x32xf32>
    %380 = vector.extract_strided_slice %377 {offsets = [0, 32], sizes = [8, 32], strides = [1, 1]} : vector<8x96xf32> to vector<8x32xf32>
    %381 = arith.mulf %380, %336 : vector<8x32xf32>
    %382 = vector.extract_strided_slice %377 {offsets = [0, 0], sizes = [8, 32], strides = [1, 1]} : vector<8x96xf32> to vector<8x32xf32>
    %383 = arith.mulf %382, %379 : vector<8x32xf32>
    %384 = arith.addf %381, %383 : vector<8x32xf32>
    %385 = vector.extract_strided_slice %377 {offsets = [0, 64], sizes = [8, 32], strides = [1, 1]} : vector<8x96xf32> to vector<8x32xf32>
    %386 = math.tanh %384 : vector<8x32xf32>
    %387 = arith.mulf %385, %386 : vector<8x32xf32>
    %c7_155 = arith.constant 7 : index
    %c0_156 = arith.constant 0 : index
    %c0_157 = arith.constant 0 : index
    %388 = vector.load %arg16[%c7_155, %c0_156, %c0_157] : memref<8x8x64xf32, #tpu.memory_space<vmem>>, vector<1x8x32xf32>
    %389 = vector.shape_cast %388 : vector<1x8x32xf32> to vector<8x32xf32>
    %390 = vector.shape_cast %371 : vector<8x32xf32> to vector<1x8x32xf32>
    tpu.vector_store %arg16[%c7_155, %c0_156, %c0_157], %390 {strides = array<i32>} : memref<8x8x64xf32, #tpu.memory_space<vmem>>, vector<1x8x32xf32>,
    %c0_158 = arith.constant 0 : index
    %c0_159 = arith.constant 0 : index
    %c32_160 = arith.constant 32 : index
    %391 = vector.load %arg16[%c0_158, %c0_159, %c32_160] : memref<8x8x64xf32, #tpu.memory_space<vmem>>, vector<1x8x32xf32>
    %392 = vector.shape_cast %391 : vector<1x8x32xf32> to vector<8x32xf32>
    %393 = vector.shape_cast %387 : vector<8x32xf32> to vector<1x8x32xf32>
    tpu.vector_store %arg16[%c0_158, %c0_159, %c32_160], %393 {strides = array<i32>} : memref<8x8x64xf32, #tpu.memory_space<vmem>>, vector<1x8x32xf32>,
    %c0_161 = arith.constant 0 : index
    %c0_162 = arith.constant 0 : index
    %c0_163 = arith.constant 0 : index
    %394 = vector.load %arg16[%c0_161, %c0_162, %c0_163] : memref<8x8x64xf32, #tpu.memory_space<vmem>>, vector<8x8x64xf32>
    %395 = vector.shape_cast %394 : vector<8x8x64xf32> to vector<64x64xf32>
    %c0_164 = arith.constant 0 : index
    %c0_165 = arith.constant 0 : index
    %396 = vector.load %arg5[%c0_164, %c0_165] : memref<64x256xf32, #tpu.memory_space<vmem>>, vector<64x256xf32>
    %cst_166 = arith.constant dense<0.000000e+00> : vector<64x256xf32>
    %397 = tpu.matmul %395, %396, %cst_166 {dimension_numbers = #tpu.dot_dimension_numbers<[1], [0], [0], [1], [0, 0, 1, 1], [], []>} : vector<64x64xf32>, vector<64x256xf32>, vector<64x256xf32> -> vector<64x256xf32>
    %c0_167 = arith.constant 0 : index
    %c0_168 = arith.constant 0 : index
    %398 = vector.load %arg6[%c0_167, %c0_168] : memref<1x256xf32, #tpu.memory_space<vmem>>, vector<1x256xf32>
    %399 = vector.broadcast %398 : vector<1x256xf32> to vector<64x256xf32>
    %400 = arith.addf %397, %399 : vector<64x256xf32>
    %401 = vector.shape_cast %400 : vector<64x256xf32> to vector<8x8x256xf32>
    %c0_169 = arith.constant 0 : index
    %c0_170 = arith.constant 0 : index
    %c0_171 = arith.constant 0 : index
    %402 = vector.load %arg15[%c0_169, %c0_170, %c0_171] : memref<8x8x256xf32, #tpu.memory_space<vmem>>, vector<8x8x256xf32>
    tpu.vector_store %arg15[%c0_169, %c0_170, %c0_171], %401 {strides = array<i32>} : memref<8x8x256xf32, #tpu.memory_space<vmem>>, vector<8x8x256xf32>,
    %cst_172 = arith.constant 0.000000e+00 : f32
    %403 = vector.broadcast %cst_172 : f32 to vector<8x32xf32>
    %c0_173 = arith.constant 0 : index
    %c0_174 = arith.constant 0 : index
    %c0_175 = arith.constant 0 : index
    %404 = vector.load %arg15[%c0_173, %c0_174, %c0_175] : memref<8x8x256xf32, #tpu.memory_space<vmem>>, vector<1x8x128xf32>
    %405 = vector.shape_cast %404 : vector<1x8x128xf32> to vector<8x128xf32>
    %c0_176 = arith.constant 0 : index
    %c0_177 = arith.constant 0 : index
    %406 = vector.load %arg7[%c0_176, %c0_177] : memref<32x128xf32, #tpu.memory_space<vmem>>, vector<32x128xf32>
    %cst_178 = arith.constant dense<0.000000e+00> : vector<8x128xf32>
    %407 = tpu.matmul %403, %406, %cst_178 {dimension_numbers = #tpu.dot_dimension_numbers<[1], [0], [0], [1], [0, 0, 1, 1], [], []>} : vector<8x32xf32>, vector<32x128xf32>, vector<8x128xf32> -> vector<8x128xf32>
    %408 = arith.addf %405, %407 : vector<8x128xf32>
    %c7_179 = arith.constant 7 : index
    %c0_180 = arith.constant 0 : index
    %c128_181 = arith.constant 128 : index
    %409 = vector.load %arg15[%c7_179, %c0_180, %c128_181] : memref<8x8x256xf32, #tpu.memory_space<vmem>>, vector<1x8x128xf32>
    %410 = vector.shape_cast %409 : vector<1x8x128xf32> to vector<8x128xf32>
    %c0_182 = arith.constant 0 : index
    %c0_183 = arith.constant 0 : index
    %411 = vector.load %arg8[%c0_182, %c0_183] : memref<32x128xf32, #tpu.memory_space<vmem>>, vector<32x128xf32>
    %cst_184 = arith.constant dense<0.000000e+00> : vector<8x128xf32>
    %412 = tpu.matmul %403, %411, %cst_184 {dimension_numbers = #tpu.dot_dimension_numbers<[1], [0], [0], [1], [0, 0, 1, 1], [], []>} : vector<8x32xf32>, vector<32x128xf32>, vector<8x128xf32> -> vector<8x128xf32>
    %413 = arith.addf %410, %412 : vector<8x128xf32>
    %414 = vector.extract_strided_slice %408 {offsets = [0, 0], sizes = [8, 96], strides = [1, 1]} : vector<8x128xf32> to vector<8x96xf32>
    %415 = arith.negf %414 : vector<8x96xf32>
    %416 = math.exp %415 : vector<8x96xf32>
    %cst_185 = arith.constant 1.000000e+00 : f32
    %417 = vector.broadcast %cst_185 : f32 to vector<8x96xf32>
    %418 = arith.addf %417, %416 : vector<8x96xf32>
    %419 = arith.divf %417, %418 : vector<8x96xf32>
    %420 = vector.extract_strided_slice %408 {offsets = [0, 96], sizes = [8, 32], strides = [1, 1]} : vector<8x128xf32> to vector<8x32xf32>
    %421 = math.tanh %420 : vector<8x32xf32>
    %422 = vector.extract_strided_slice %419 {offsets = [0, 32], sizes = [8, 32], strides = [1, 1]} : vector<8x96xf32> to vector<8x32xf32>
    %423 = arith.mulf %422, %403 : vector<8x32xf32>
    %424 = vector.extract_strided_slice %419 {offsets = [0, 0], sizes = [8, 32], strides = [1, 1]} : vector<8x96xf32> to vector<8x32xf32>
    %425 = arith.mulf %424, %421 : vector<8x32xf32>
    %426 = arith.addf %423, %425 : vector<8x32xf32>
    %427 = vector.extract_strided_slice %419 {offsets = [0, 64], sizes = [8, 32], strides = [1, 1]} : vector<8x96xf32> to vector<8x32xf32>
    %428 = math.tanh %426 : vector<8x32xf32>
    %429 = arith.mulf %427, %428 : vector<8x32xf32>
    %430 = vector.extract_strided_slice %413 {offsets = [0, 0], sizes = [8, 96], strides = [1, 1]} : vector<8x128xf32> to vector<8x96xf32>
    %431 = arith.negf %430 : vector<8x96xf32>
    %432 = math.exp %431 : vector<8x96xf32>
    %cst_186 = arith.constant 1.000000e+00 : f32
    %433 = vector.broadcast %cst_186 : f32 to vector<8x96xf32>
    %434 = arith.addf %433, %432 : vector<8x96xf32>
    %435 = arith.divf %433, %434 : vector<8x96xf32>
    %436 = vector.extract_strided_slice %413 {offsets = [0, 96], sizes = [8, 32], strides = [1, 1]} : vector<8x128xf32> to vector<8x32xf32>
    %437 = math.tanh %436 : vector<8x32xf32>
    %438 = vector.extract_strided_slice %435 {offsets = [0, 32], sizes = [8, 32], strides = [1, 1]} : vector<8x96xf32> to vector<8x32xf32>
    %439 = arith.mulf %438, %403 : vector<8x32xf32>
    %440 = vector.extract_strided_slice %435 {offsets = [0, 0], sizes = [8, 32], strides = [1, 1]} : vector<8x96xf32> to vector<8x32xf32>
    %441 = arith.mulf %440, %437 : vector<8x32xf32>
    %442 = arith.addf %439, %441 : vector<8x32xf32>
    %443 = vector.extract_strided_slice %435 {offsets = [0, 64], sizes = [8, 32], strides = [1, 1]} : vector<8x96xf32> to vector<8x32xf32>
    %444 = math.tanh %442 : vector<8x32xf32>
    %445 = arith.mulf %443, %444 : vector<8x32xf32>
    %c0_187 = arith.constant 0 : index
    %c0_188 = arith.constant 0 : index
    %c0_189 = arith.constant 0 : index
    %446 = vector.load %arg17[%c0_187, %c0_188, %c0_189] : memref<8x8x64xf32, #tpu.memory_space<vmem>>, vector<1x8x32xf32>
    %447 = vector.shape_cast %446 : vector<1x8x32xf32> to vector<8x32xf32>
    %448 = vector.shape_cast %429 : vector<8x32xf32> to vector<1x8x32xf32>
    tpu.vector_store %arg17[%c0_187, %c0_188, %c0_189], %448 {strides = array<i32>} : memref<8x8x64xf32, #tpu.memory_space<vmem>>, vector<1x8x32xf32>,
    %c7_190 = arith.constant 7 : index
    %c0_191 = arith.constant 0 : index
    %c32_192 = arith.constant 32 : index
    %449 = vector.load %arg17[%c7_190, %c0_191, %c32_192] : memref<8x8x64xf32, #tpu.memory_space<vmem>>, vector<1x8x32xf32>
    %450 = vector.shape_cast %449 : vector<1x8x32xf32> to vector<8x32xf32>
    %451 = vector.shape_cast %445 : vector<8x32xf32> to vector<1x8x32xf32>
    tpu.vector_store %arg17[%c7_190, %c0_191, %c32_192], %451 {strides = array<i32>} : memref<8x8x64xf32, #tpu.memory_space<vmem>>, vector<1x8x32xf32>,
    %c1_193 = arith.constant 1 : index
    %c0_194 = arith.constant 0 : index
    %c0_195 = arith.constant 0 : index
    %452 = vector.load %arg15[%c1_193, %c0_194, %c0_195] : memref<8x8x256xf32, #tpu.memory_space<vmem>>, vector<1x8x128xf32>
    %453 = vector.shape_cast %452 : vector<1x8x128xf32> to vector<8x128xf32>
    %c0_196 = arith.constant 0 : index
    %c0_197 = arith.constant 0 : index
    %454 = vector.load %arg7[%c0_196, %c0_197] : memref<32x128xf32, #tpu.memory_space<vmem>>, vector<32x128xf32>
    %cst_198 = arith.constant dense<0.000000e+00> : vector<8x128xf32>
    %455 = tpu.matmul %429, %454, %cst_198 {dimension_numbers = #tpu.dot_dimension_numbers<[1], [0], [0], [1], [0, 0, 1, 1], [], []>} : vector<8x32xf32>, vector<32x128xf32>, vector<8x128xf32> -> vector<8x128xf32>
    %456 = arith.addf %453, %455 : vector<8x128xf32>
    %c6_199 = arith.constant 6 : index
    %c0_200 = arith.constant 0 : index
    %c128_201 = arith.constant 128 : index
    %457 = vector.load %arg15[%c6_199, %c0_200, %c128_201] : memref<8x8x256xf32, #tpu.memory_space<vmem>>, vector<1x8x128xf32>
    %458 = vector.shape_cast %457 : vector<1x8x128xf32> to vector<8x128xf32>
    %c0_202 = arith.constant 0 : index
    %c0_203 = arith.constant 0 : index
    %459 = vector.load %arg8[%c0_202, %c0_203] : memref<32x128xf32, #tpu.memory_space<vmem>>, vector<32x128xf32>
    %cst_204 = arith.constant dense<0.000000e+00> : vector<8x128xf32>
    %460 = tpu.matmul %445, %459, %cst_204 {dimension_numbers = #tpu.dot_dimension_numbers<[1], [0], [0], [1], [0, 0, 1, 1], [], []>} : vector<8x32xf32>, vector<32x128xf32>, vector<8x128xf32> -> vector<8x128xf32>
    %461 = arith.addf %458, %460 : vector<8x128xf32>
    %462 = vector.extract_strided_slice %456 {offsets = [0, 0], sizes = [8, 96], strides = [1, 1]} : vector<8x128xf32> to vector<8x96xf32>
    %463 = arith.negf %462 : vector<8x96xf32>
    %464 = math.exp %463 : vector<8x96xf32>
    %cst_205 = arith.constant 1.000000e+00 : f32
    %465 = vector.broadcast %cst_205 : f32 to vector<8x96xf32>
    %466 = arith.addf %465, %464 : vector<8x96xf32>
    %467 = arith.divf %465, %466 : vector<8x96xf32>
    %468 = vector.extract_strided_slice %456 {offsets = [0, 96], sizes = [8, 32], strides = [1, 1]} : vector<8x128xf32> to vector<8x32xf32>
    %469 = math.tanh %468 : vector<8x32xf32>
    %470 = vector.extract_strided_slice %467 {offsets = [0, 32], sizes = [8, 32], strides = [1, 1]} : vector<8x96xf32> to vector<8x32xf32>
    %471 = arith.mulf %470, %426 : vector<8x32xf32>
    %472 = vector.extract_strided_slice %467 {offsets = [0, 0], sizes = [8, 32], strides = [1, 1]} : vector<8x96xf32> to vector<8x32xf32>
    %473 = arith.mulf %472, %469 : vector<8x32xf32>
    %474 = arith.addf %471, %473 : vector<8x32xf32>
    %475 = vector.extract_strided_slice %467 {offsets = [0, 64], sizes = [8, 32], strides = [1, 1]} : vector<8x96xf32> to vector<8x32xf32>
    %476 = math.tanh %474 : vector<8x32xf32>
    %477 = arith.mulf %475, %476 : vector<8x32xf32>
    %478 = vector.extract_strided_slice %461 {offsets = [0, 0], sizes = [8, 96], strides = [1, 1]} : vector<8x128xf32> to vector<8x96xf32>
    %479 = arith.negf %478 : vector<8x96xf32>
    %480 = math.exp %479 : vector<8x96xf32>
    %cst_206 = arith.constant 1.000000e+00 : f32
    %481 = vector.broadcast %cst_206 : f32 to vector<8x96xf32>
    %482 = arith.addf %481, %480 : vector<8x96xf32>
    %483 = arith.divf %481, %482 : vector<8x96xf32>
    %484 = vector.extract_strided_slice %461 {offsets = [0, 96], sizes = [8, 32], strides = [1, 1]} : vector<8x128xf32> to vector<8x32xf32>
    %485 = math.tanh %484 : vector<8x32xf32>
    %486 = vector.extract_strided_slice %483 {offsets = [0, 32], sizes = [8, 32], strides = [1, 1]} : vector<8x96xf32> to vector<8x32xf32>
    %487 = arith.mulf %486, %442 : vector<8x32xf32>
    %488 = vector.extract_strided_slice %483 {offsets = [0, 0], sizes = [8, 32], strides = [1, 1]} : vector<8x96xf32> to vector<8x32xf32>
    %489 = arith.mulf %488, %485 : vector<8x32xf32>
    %490 = arith.addf %487, %489 : vector<8x32xf32>
    %491 = vector.extract_strided_slice %483 {offsets = [0, 64], sizes = [8, 32], strides = [1, 1]} : vector<8x96xf32> to vector<8x32xf32>
    %492 = math.tanh %490 : vector<8x32xf32>
    %493 = arith.mulf %491, %492 : vector<8x32xf32>
    %c1_207 = arith.constant 1 : index
    %c0_208 = arith.constant 0 : index
    %c0_209 = arith.constant 0 : index
    %494 = vector.load %arg17[%c1_207, %c0_208, %c0_209] : memref<8x8x64xf32, #tpu.memory_space<vmem>>, vector<1x8x32xf32>
    %495 = vector.shape_cast %494 : vector<1x8x32xf32> to vector<8x32xf32>
    %496 = vector.shape_cast %477 : vector<8x32xf32> to vector<1x8x32xf32>
    tpu.vector_store %arg17[%c1_207, %c0_208, %c0_209], %496 {strides = array<i32>} : memref<8x8x64xf32, #tpu.memory_space<vmem>>, vector<1x8x32xf32>,
    %c6_210 = arith.constant 6 : index
    %c0_211 = arith.constant 0 : index
    %c32_212 = arith.constant 32 : index
    %497 = vector.load %arg17[%c6_210, %c0_211, %c32_212] : memref<8x8x64xf32, #tpu.memory_space<vmem>>, vector<1x8x32xf32>
    %498 = vector.shape_cast %497 : vector<1x8x32xf32> to vector<8x32xf32>
    %499 = vector.shape_cast %493 : vector<8x32xf32> to vector<1x8x32xf32>
    tpu.vector_store %arg17[%c6_210, %c0_211, %c32_212], %499 {strides = array<i32>} : memref<8x8x64xf32, #tpu.memory_space<vmem>>, vector<1x8x32xf32>,
    %c2_213 = arith.constant 2 : index
    %c0_214 = arith.constant 0 : index
    %c0_215 = arith.constant 0 : index
    %500 = vector.load %arg15[%c2_213, %c0_214, %c0_215] : memref<8x8x256xf32, #tpu.memory_space<vmem>>, vector<1x8x128xf32>
    %501 = vector.shape_cast %500 : vector<1x8x128xf32> to vector<8x128xf32>
    %c0_216 = arith.constant 0 : index
    %c0_217 = arith.constant 0 : index
    %502 = vector.load %arg7[%c0_216, %c0_217] : memref<32x128xf32, #tpu.memory_space<vmem>>, vector<32x128xf32>
    %cst_218 = arith.constant dense<0.000000e+00> : vector<8x128xf32>
    %503 = tpu.matmul %477, %502, %cst_218 {dimension_numbers = #tpu.dot_dimension_numbers<[1], [0], [0], [1], [0, 0, 1, 1], [], []>} : vector<8x32xf32>, vector<32x128xf32>, vector<8x128xf32> -> vector<8x128xf32>
    %504 = arith.addf %501, %503 : vector<8x128xf32>
    %c5_219 = arith.constant 5 : index
    %c0_220 = arith.constant 0 : index
    %c128_221 = arith.constant 128 : index
    %505 = vector.load %arg15[%c5_219, %c0_220, %c128_221] : memref<8x8x256xf32, #tpu.memory_space<vmem>>, vector<1x8x128xf32>
    %506 = vector.shape_cast %505 : vector<1x8x128xf32> to vector<8x128xf32>
    %c0_222 = arith.constant 0 : index
    %c0_223 = arith.constant 0 : index
    %507 = vector.load %arg8[%c0_222, %c0_223] : memref<32x128xf32, #tpu.memory_space<vmem>>, vector<32x128xf32>
    %cst_224 = arith.constant dense<0.000000e+00> : vector<8x128xf32>
    %508 = tpu.matmul %493, %507, %cst_224 {dimension_numbers = #tpu.dot_dimension_numbers<[1], [0], [0], [1], [0, 0, 1, 1], [], []>} : vector<8x32xf32>, vector<32x128xf32>, vector<8x128xf32> -> vector<8x128xf32>
    %509 = arith.addf %506, %508 : vector<8x128xf32>
    %510 = vector.extract_strided_slice %504 {offsets = [0, 0], sizes = [8, 96], strides = [1, 1]} : vector<8x128xf32> to vector<8x96xf32>
    %511 = arith.negf %510 : vector<8x96xf32>
    %512 = math.exp %511 : vector<8x96xf32>
    %cst_225 = arith.constant 1.000000e+00 : f32
    %513 = vector.broadcast %cst_225 : f32 to vector<8x96xf32>
    %514 = arith.addf %513, %512 : vector<8x96xf32>
    %515 = arith.divf %513, %514 : vector<8x96xf32>
    %516 = vector.extract_strided_slice %504 {offsets = [0, 96], sizes = [8, 32], strides = [1, 1]} : vector<8x128xf32> to vector<8x32xf32>
    %517 = math.tanh %516 : vector<8x32xf32>
    %518 = vector.extract_strided_slice %515 {offsets = [0, 32], sizes = [8, 32], strides = [1, 1]} : vector<8x96xf32> to vector<8x32xf32>
    %519 = arith.mulf %518, %474 : vector<8x32xf32>
    %520 = vector.extract_strided_slice %515 {offsets = [0, 0], sizes = [8, 32], strides = [1, 1]} : vector<8x96xf32> to vector<8x32xf32>
    %521 = arith.mulf %520, %517 : vector<8x32xf32>
    %522 = arith.addf %519, %521 : vector<8x32xf32>
    %523 = vector.extract_strided_slice %515 {offsets = [0, 64], sizes = [8, 32], strides = [1, 1]} : vector<8x96xf32> to vector<8x32xf32>
    %524 = math.tanh %522 : vector<8x32xf32>
    %525 = arith.mulf %523, %524 : vector<8x32xf32>
    %526 = vector.extract_strided_slice %509 {offsets = [0, 0], sizes = [8, 96], strides = [1, 1]} : vector<8x128xf32> to vector<8x96xf32>
    %527 = arith.negf %526 : vector<8x96xf32>
    %528 = math.exp %527 : vector<8x96xf32>
    %cst_226 = arith.constant 1.000000e+00 : f32
    %529 = vector.broadcast %cst_226 : f32 to vector<8x96xf32>
    %530 = arith.addf %529, %528 : vector<8x96xf32>
    %531 = arith.divf %529, %530 : vector<8x96xf32>
    %532 = vector.extract_strided_slice %509 {offsets = [0, 96], sizes = [8, 32], strides = [1, 1]} : vector<8x128xf32> to vector<8x32xf32>
    %533 = math.tanh %532 : vector<8x32xf32>
    %534 = vector.extract_strided_slice %531 {offsets = [0, 32], sizes = [8, 32], strides = [1, 1]} : vector<8x96xf32> to vector<8x32xf32>
    %535 = arith.mulf %534, %490 : vector<8x32xf32>
    %536 = vector.extract_strided_slice %531 {offsets = [0, 0], sizes = [8, 32], strides = [1, 1]} : vector<8x96xf32> to vector<8x32xf32>
    %537 = arith.mulf %536, %533 : vector<8x32xf32>
    %538 = arith.addf %535, %537 : vector<8x32xf32>
    %539 = vector.extract_strided_slice %531 {offsets = [0, 64], sizes = [8, 32], strides = [1, 1]} : vector<8x96xf32> to vector<8x32xf32>
    %540 = math.tanh %538 : vector<8x32xf32>
    %541 = arith.mulf %539, %540 : vector<8x32xf32>
    %c2_227 = arith.constant 2 : index
    %c0_228 = arith.constant 0 : index
    %c0_229 = arith.constant 0 : index
    %542 = vector.load %arg17[%c2_227, %c0_228, %c0_229] : memref<8x8x64xf32, #tpu.memory_space<vmem>>, vector<1x8x32xf32>
    %543 = vector.shape_cast %542 : vector<1x8x32xf32> to vector<8x32xf32>
    %544 = vector.shape_cast %525 : vector<8x32xf32> to vector<1x8x32xf32>
    tpu.vector_store %arg17[%c2_227, %c0_228, %c0_229], %544 {strides = array<i32>} : memref<8x8x64xf32, #tpu.memory_space<vmem>>, vector<1x8x32xf32>,
    %c5_230 = arith.constant 5 : index
    %c0_231 = arith.constant 0 : index
    %c32_232 = arith.constant 32 : index
    %545 = vector.load %arg17[%c5_230, %c0_231, %c32_232] : memref<8x8x64xf32, #tpu.memory_space<vmem>>, vector<1x8x32xf32>
    %546 = vector.shape_cast %545 : vector<1x8x32xf32> to vector<8x32xf32>
    %547 = vector.shape_cast %541 : vector<8x32xf32> to vector<1x8x32xf32>
    tpu.vector_store %arg17[%c5_230, %c0_231, %c32_232], %547 {strides = array<i32>} : memref<8x8x64xf32, #tpu.memory_space<vmem>>, vector<1x8x32xf32>,
    %c3_233 = arith.constant 3 : index
    %c0_234 = arith.constant 0 : index
    %c0_235 = arith.constant 0 : index
    %548 = vector.load %arg15[%c3_233, %c0_234, %c0_235] : memref<8x8x256xf32, #tpu.memory_space<vmem>>, vector<1x8x128xf32>
    %549 = vector.shape_cast %548 : vector<1x8x128xf32> to vector<8x128xf32>
    %c0_236 = arith.constant 0 : index
    %c0_237 = arith.constant 0 : index
    %550 = vector.load %arg7[%c0_236, %c0_237] : memref<32x128xf32, #tpu.memory_space<vmem>>, vector<32x128xf32>
    %cst_238 = arith.constant dense<0.000000e+00> : vector<8x128xf32>
    %551 = tpu.matmul %525, %550, %cst_238 {dimension_numbers = #tpu.dot_dimension_numbers<[1], [0], [0], [1], [0, 0, 1, 1], [], []>} : vector<8x32xf32>, vector<32x128xf32>, vector<8x128xf32> -> vector<8x128xf32>
    %552 = arith.addf %549, %551 : vector<8x128xf32>
    %c4_239 = arith.constant 4 : index
    %c0_240 = arith.constant 0 : index
    %c128_241 = arith.constant 128 : index
    %553 = vector.load %arg15[%c4_239, %c0_240, %c128_241] : memref<8x8x256xf32, #tpu.memory_space<vmem>>, vector<1x8x128xf32>
    %554 = vector.shape_cast %553 : vector<1x8x128xf32> to vector<8x128xf32>
    %c0_242 = arith.constant 0 : index
    %c0_243 = arith.constant 0 : index
    %555 = vector.load %arg8[%c0_242, %c0_243] : memref<32x128xf32, #tpu.memory_space<vmem>>, vector<32x128xf32>
    %cst_244 = arith.constant dense<0.000000e+00> : vector<8x128xf32>
    %556 = tpu.matmul %541, %555, %cst_244 {dimension_numbers = #tpu.dot_dimension_numbers<[1], [0], [0], [1], [0, 0, 1, 1], [], []>} : vector<8x32xf32>, vector<32x128xf32>, vector<8x128xf32> -> vector<8x128xf32>
    %557 = arith.addf %554, %556 : vector<8x128xf32>
    %558 = vector.extract_strided_slice %552 {offsets = [0, 0], sizes = [8, 96], strides = [1, 1]} : vector<8x128xf32> to vector<8x96xf32>
    %559 = arith.negf %558 : vector<8x96xf32>
    %560 = math.exp %559 : vector<8x96xf32>
    %cst_245 = arith.constant 1.000000e+00 : f32
    %561 = vector.broadcast %cst_245 : f32 to vector<8x96xf32>
    %562 = arith.addf %561, %560 : vector<8x96xf32>
    %563 = arith.divf %561, %562 : vector<8x96xf32>
    %564 = vector.extract_strided_slice %552 {offsets = [0, 96], sizes = [8, 32], strides = [1, 1]} : vector<8x128xf32> to vector<8x32xf32>
    %565 = math.tanh %564 : vector<8x32xf32>
    %566 = vector.extract_strided_slice %563 {offsets = [0, 32], sizes = [8, 32], strides = [1, 1]} : vector<8x96xf32> to vector<8x32xf32>
    %567 = arith.mulf %566, %522 : vector<8x32xf32>
    %568 = vector.extract_strided_slice %563 {offsets = [0, 0], sizes = [8, 32], strides = [1, 1]} : vector<8x96xf32> to vector<8x32xf32>
    %569 = arith.mulf %568, %565 : vector<8x32xf32>
    %570 = arith.addf %567, %569 : vector<8x32xf32>
    %571 = vector.extract_strided_slice %563 {offsets = [0, 64], sizes = [8, 32], strides = [1, 1]} : vector<8x96xf32> to vector<8x32xf32>
    %572 = math.tanh %570 : vector<8x32xf32>
    %573 = arith.mulf %571, %572 : vector<8x32xf32>
    %574 = vector.extract_strided_slice %557 {offsets = [0, 0], sizes = [8, 96], strides = [1, 1]} : vector<8x128xf32> to vector<8x96xf32>
    %575 = arith.negf %574 : vector<8x96xf32>
    %576 = math.exp %575 : vector<8x96xf32>
    %cst_246 = arith.constant 1.000000e+00 : f32
    %577 = vector.broadcast %cst_246 : f32 to vector<8x96xf32>
    %578 = arith.addf %577, %576 : vector<8x96xf32>
    %579 = arith.divf %577, %578 : vector<8x96xf32>
    %580 = vector.extract_strided_slice %557 {offsets = [0, 96], sizes = [8, 32], strides = [1, 1]} : vector<8x128xf32> to vector<8x32xf32>
    %581 = math.tanh %580 : vector<8x32xf32>
    %582 = vector.extract_strided_slice %579 {offsets = [0, 32], sizes = [8, 32], strides = [1, 1]} : vector<8x96xf32> to vector<8x32xf32>
    %583 = arith.mulf %582, %538 : vector<8x32xf32>
    %584 = vector.extract_strided_slice %579 {offsets = [0, 0], sizes = [8, 32], strides = [1, 1]} : vector<8x96xf32> to vector<8x32xf32>
    %585 = arith.mulf %584, %581 : vector<8x32xf32>
    %586 = arith.addf %583, %585 : vector<8x32xf32>
    %587 = vector.extract_strided_slice %579 {offsets = [0, 64], sizes = [8, 32], strides = [1, 1]} : vector<8x96xf32> to vector<8x32xf32>
    %588 = math.tanh %586 : vector<8x32xf32>
    %589 = arith.mulf %587, %588 : vector<8x32xf32>
    %c3_247 = arith.constant 3 : index
    %c0_248 = arith.constant 0 : index
    %c0_249 = arith.constant 0 : index
    %590 = vector.load %arg17[%c3_247, %c0_248, %c0_249] : memref<8x8x64xf32, #tpu.memory_space<vmem>>, vector<1x8x32xf32>
    %591 = vector.shape_cast %590 : vector<1x8x32xf32> to vector<8x32xf32>
    %592 = vector.shape_cast %573 : vector<8x32xf32> to vector<1x8x32xf32>
    tpu.vector_store %arg17[%c3_247, %c0_248, %c0_249], %592 {strides = array<i32>} : memref<8x8x64xf32, #tpu.memory_space<vmem>>, vector<1x8x32xf32>,
    %c4_250 = arith.constant 4 : index
    %c0_251 = arith.constant 0 : index
    %c32_252 = arith.constant 32 : index
    %593 = vector.load %arg17[%c4_250, %c0_251, %c32_252] : memref<8x8x64xf32, #tpu.memory_space<vmem>>, vector<1x8x32xf32>
    %594 = vector.shape_cast %593 : vector<1x8x32xf32> to vector<8x32xf32>
    %595 = vector.shape_cast %589 : vector<8x32xf32> to vector<1x8x32xf32>
    tpu.vector_store %arg17[%c4_250, %c0_251, %c32_252], %595 {strides = array<i32>} : memref<8x8x64xf32, #tpu.memory_space<vmem>>, vector<1x8x32xf32>,
    %c4_253 = arith.constant 4 : index
    %c0_254 = arith.constant 0 : index
    %c0_255 = arith.constant 0 : index
    %596 = vector.load %arg15[%c4_253, %c0_254, %c0_255] : memref<8x8x256xf32, #tpu.memory_space<vmem>>, vector<1x8x128xf32>
    %597 = vector.shape_cast %596 : vector<1x8x128xf32> to vector<8x128xf32>
    %c0_256 = arith.constant 0 : index
    %c0_257 = arith.constant 0 : index
    %598 = vector.load %arg7[%c0_256, %c0_257] : memref<32x128xf32, #tpu.memory_space<vmem>>, vector<32x128xf32>
    %cst_258 = arith.constant dense<0.000000e+00> : vector<8x128xf32>
    %599 = tpu.matmul %573, %598, %cst_258 {dimension_numbers = #tpu.dot_dimension_numbers<[1], [0], [0], [1], [0, 0, 1, 1], [], []>} : vector<8x32xf32>, vector<32x128xf32>, vector<8x128xf32> -> vector<8x128xf32>
    %600 = arith.addf %597, %599 : vector<8x128xf32>
    %c3_259 = arith.constant 3 : index
    %c0_260 = arith.constant 0 : index
    %c128_261 = arith.constant 128 : index
    %601 = vector.load %arg15[%c3_259, %c0_260, %c128_261] : memref<8x8x256xf32, #tpu.memory_space<vmem>>, vector<1x8x128xf32>
    %602 = vector.shape_cast %601 : vector<1x8x128xf32> to vector<8x128xf32>
    %c0_262 = arith.constant 0 : index
    %c0_263 = arith.constant 0 : index
    %603 = vector.load %arg8[%c0_262, %c0_263] : memref<32x128xf32, #tpu.memory_space<vmem>>, vector<32x128xf32>
    %cst_264 = arith.constant dense<0.000000e+00> : vector<8x128xf32>
    %604 = tpu.matmul %589, %603, %cst_264 {dimension_numbers = #tpu.dot_dimension_numbers<[1], [0], [0], [1], [0, 0, 1, 1], [], []>} : vector<8x32xf32>, vector<32x128xf32>, vector<8x128xf32> -> vector<8x128xf32>
    %605 = arith.addf %602, %604 : vector<8x128xf32>
    %606 = vector.extract_strided_slice %600 {offsets = [0, 0], sizes = [8, 96], strides = [1, 1]} : vector<8x128xf32> to vector<8x96xf32>
    %607 = arith.negf %606 : vector<8x96xf32>
    %608 = math.exp %607 : vector<8x96xf32>
    %cst_265 = arith.constant 1.000000e+00 : f32
    %609 = vector.broadcast %cst_265 : f32 to vector<8x96xf32>
    %610 = arith.addf %609, %608 : vector<8x96xf32>
    %611 = arith.divf %609, %610 : vector<8x96xf32>
    %612 = vector.extract_strided_slice %600 {offsets = [0, 96], sizes = [8, 32], strides = [1, 1]} : vector<8x128xf32> to vector<8x32xf32>
    %613 = math.tanh %612 : vector<8x32xf32>
    %614 = vector.extract_strided_slice %611 {offsets = [0, 32], sizes = [8, 32], strides = [1, 1]} : vector<8x96xf32> to vector<8x32xf32>
    %615 = arith.mulf %614, %570 : vector<8x32xf32>
    %616 = vector.extract_strided_slice %611 {offsets = [0, 0], sizes = [8, 32], strides = [1, 1]} : vector<8x96xf32> to vector<8x32xf32>
    %617 = arith.mulf %616, %613 : vector<8x32xf32>
    %618 = arith.addf %615, %617 : vector<8x32xf32>
    %619 = vector.extract_strided_slice %611 {offsets = [0, 64], sizes = [8, 32], strides = [1, 1]} : vector<8x96xf32> to vector<8x32xf32>
    %620 = math.tanh %618 : vector<8x32xf32>
    %621 = arith.mulf %619, %620 : vector<8x32xf32>
    %622 = vector.extract_strided_slice %605 {offsets = [0, 0], sizes = [8, 96], strides = [1, 1]} : vector<8x128xf32> to vector<8x96xf32>
    %623 = arith.negf %622 : vector<8x96xf32>
    %624 = math.exp %623 : vector<8x96xf32>
    %cst_266 = arith.constant 1.000000e+00 : f32
    %625 = vector.broadcast %cst_266 : f32 to vector<8x96xf32>
    %626 = arith.addf %625, %624 : vector<8x96xf32>
    %627 = arith.divf %625, %626 : vector<8x96xf32>
    %628 = vector.extract_strided_slice %605 {offsets = [0, 96], sizes = [8, 32], strides = [1, 1]} : vector<8x128xf32> to vector<8x32xf32>
    %629 = math.tanh %628 : vector<8x32xf32>
    %630 = vector.extract_strided_slice %627 {offsets = [0, 32], sizes = [8, 32], strides = [1, 1]} : vector<8x96xf32> to vector<8x32xf32>
    %631 = arith.mulf %630, %586 : vector<8x32xf32>
    %632 = vector.extract_strided_slice %627 {offsets = [0, 0], sizes = [8, 32], strides = [1, 1]} : vector<8x96xf32> to vector<8x32xf32>
    %633 = arith.mulf %632, %629 : vector<8x32xf32>
    %634 = arith.addf %631, %633 : vector<8x32xf32>
    %635 = vector.extract_strided_slice %627 {offsets = [0, 64], sizes = [8, 32], strides = [1, 1]} : vector<8x96xf32> to vector<8x32xf32>
    %636 = math.tanh %634 : vector<8x32xf32>
    %637 = arith.mulf %635, %636 : vector<8x32xf32>
    %c4_267 = arith.constant 4 : index
    %c0_268 = arith.constant 0 : index
    %c0_269 = arith.constant 0 : index
    %638 = vector.load %arg17[%c4_267, %c0_268, %c0_269] : memref<8x8x64xf32, #tpu.memory_space<vmem>>, vector<1x8x32xf32>
    %639 = vector.shape_cast %638 : vector<1x8x32xf32> to vector<8x32xf32>
    %640 = vector.shape_cast %621 : vector<8x32xf32> to vector<1x8x32xf32>
    tpu.vector_store %arg17[%c4_267, %c0_268, %c0_269], %640 {strides = array<i32>} : memref<8x8x64xf32, #tpu.memory_space<vmem>>, vector<1x8x32xf32>,
    %c3_270 = arith.constant 3 : index
    %c0_271 = arith.constant 0 : index
    %c32_272 = arith.constant 32 : index
    %641 = vector.load %arg17[%c3_270, %c0_271, %c32_272] : memref<8x8x64xf32, #tpu.memory_space<vmem>>, vector<1x8x32xf32>
    %642 = vector.shape_cast %641 : vector<1x8x32xf32> to vector<8x32xf32>
    %643 = vector.shape_cast %637 : vector<8x32xf32> to vector<1x8x32xf32>
    tpu.vector_store %arg17[%c3_270, %c0_271, %c32_272], %643 {strides = array<i32>} : memref<8x8x64xf32, #tpu.memory_space<vmem>>, vector<1x8x32xf32>,
    %c5_273 = arith.constant 5 : index
    %c0_274 = arith.constant 0 : index
    %c0_275 = arith.constant 0 : index
    %644 = vector.load %arg15[%c5_273, %c0_274, %c0_275] : memref<8x8x256xf32, #tpu.memory_space<vmem>>, vector<1x8x128xf32>
    %645 = vector.shape_cast %644 : vector<1x8x128xf32> to vector<8x128xf32>
    %c0_276 = arith.constant 0 : index
    %c0_277 = arith.constant 0 : index
    %646 = vector.load %arg7[%c0_276, %c0_277] : memref<32x128xf32, #tpu.memory_space<vmem>>, vector<32x128xf32>
    %cst_278 = arith.constant dense<0.000000e+00> : vector<8x128xf32>
    %647 = tpu.matmul %621, %646, %cst_278 {dimension_numbers = #tpu.dot_dimension_numbers<[1], [0], [0], [1], [0, 0, 1, 1], [], []>} : vector<8x32xf32>, vector<32x128xf32>, vector<8x128xf32> -> vector<8x128xf32>
    %648 = arith.addf %645, %647 : vector<8x128xf32>
    %c2_279 = arith.constant 2 : index
    %c0_280 = arith.constant 0 : index
    %c128_281 = arith.constant 128 : index
    %649 = vector.load %arg15[%c2_279, %c0_280, %c128_281] : memref<8x8x256xf32, #tpu.memory_space<vmem>>, vector<1x8x128xf32>
    %650 = vector.shape_cast %649 : vector<1x8x128xf32> to vector<8x128xf32>
    %c0_282 = arith.constant 0 : index
    %c0_283 = arith.constant 0 : index
    %651 = vector.load %arg8[%c0_282, %c0_283] : memref<32x128xf32, #tpu.memory_space<vmem>>, vector<32x128xf32>
    %cst_284 = arith.constant dense<0.000000e+00> : vector<8x128xf32>
    %652 = tpu.matmul %637, %651, %cst_284 {dimension_numbers = #tpu.dot_dimension_numbers<[1], [0], [0], [1], [0, 0, 1, 1], [], []>} : vector<8x32xf32>, vector<32x128xf32>, vector<8x128xf32> -> vector<8x128xf32>
    %653 = arith.addf %650, %652 : vector<8x128xf32>
    %654 = vector.extract_strided_slice %648 {offsets = [0, 0], sizes = [8, 96], strides = [1, 1]} : vector<8x128xf32> to vector<8x96xf32>
    %655 = arith.negf %654 : vector<8x96xf32>
    %656 = math.exp %655 : vector<8x96xf32>
    %cst_285 = arith.constant 1.000000e+00 : f32
    %657 = vector.broadcast %cst_285 : f32 to vector<8x96xf32>
    %658 = arith.addf %657, %656 : vector<8x96xf32>
    %659 = arith.divf %657, %658 : vector<8x96xf32>
    %660 = vector.extract_strided_slice %648 {offsets = [0, 96], sizes = [8, 32], strides = [1, 1]} : vector<8x128xf32> to vector<8x32xf32>
    %661 = math.tanh %660 : vector<8x32xf32>
    %662 = vector.extract_strided_slice %659 {offsets = [0, 32], sizes = [8, 32], strides = [1, 1]} : vector<8x96xf32> to vector<8x32xf32>
    %663 = arith.mulf %662, %618 : vector<8x32xf32>
    %664 = vector.extract_strided_slice %659 {offsets = [0, 0], sizes = [8, 32], strides = [1, 1]} : vector<8x96xf32> to vector<8x32xf32>
    %665 = arith.mulf %664, %661 : vector<8x32xf32>
    %666 = arith.addf %663, %665 : vector<8x32xf32>
    %667 = vector.extract_strided_slice %659 {offsets = [0, 64], sizes = [8, 32], strides = [1, 1]} : vector<8x96xf32> to vector<8x32xf32>
    %668 = math.tanh %666 : vector<8x32xf32>
    %669 = arith.mulf %667, %668 : vector<8x32xf32>
    %670 = vector.extract_strided_slice %653 {offsets = [0, 0], sizes = [8, 96], strides = [1, 1]} : vector<8x128xf32> to vector<8x96xf32>
    %671 = arith.negf %670 : vector<8x96xf32>
    %672 = math.exp %671 : vector<8x96xf32>
    %cst_286 = arith.constant 1.000000e+00 : f32
    %673 = vector.broadcast %cst_286 : f32 to vector<8x96xf32>
    %674 = arith.addf %673, %672 : vector<8x96xf32>
    %675 = arith.divf %673, %674 : vector<8x96xf32>
    %676 = vector.extract_strided_slice %653 {offsets = [0, 96], sizes = [8, 32], strides = [1, 1]} : vector<8x128xf32> to vector<8x32xf32>
    %677 = math.tanh %676 : vector<8x32xf32>
    %678 = vector.extract_strided_slice %675 {offsets = [0, 32], sizes = [8, 32], strides = [1, 1]} : vector<8x96xf32> to vector<8x32xf32>
    %679 = arith.mulf %678, %634 : vector<8x32xf32>
    %680 = vector.extract_strided_slice %675 {offsets = [0, 0], sizes = [8, 32], strides = [1, 1]} : vector<8x96xf32> to vector<8x32xf32>
    %681 = arith.mulf %680, %677 : vector<8x32xf32>
    %682 = arith.addf %679, %681 : vector<8x32xf32>
    %683 = vector.extract_strided_slice %675 {offsets = [0, 64], sizes = [8, 32], strides = [1, 1]} : vector<8x96xf32> to vector<8x32xf32>
    %684 = math.tanh %682 : vector<8x32xf32>
    %685 = arith.mulf %683, %684 : vector<8x32xf32>
    %c5_287 = arith.constant 5 : index
    %c0_288 = arith.constant 0 : index
    %c0_289 = arith.constant 0 : index
    %686 = vector.load %arg17[%c5_287, %c0_288, %c0_289] : memref<8x8x64xf32, #tpu.memory_space<vmem>>, vector<1x8x32xf32>
    %687 = vector.shape_cast %686 : vector<1x8x32xf32> to vector<8x32xf32>
    %688 = vector.shape_cast %669 : vector<8x32xf32> to vector<1x8x32xf32>
    tpu.vector_store %arg17[%c5_287, %c0_288, %c0_289], %688 {strides = array<i32>} : memref<8x8x64xf32, #tpu.memory_space<vmem>>, vector<1x8x32xf32>,
    %c2_290 = arith.constant 2 : index
    %c0_291 = arith.constant 0 : index
    %c32_292 = arith.constant 32 : index
    %689 = vector.load %arg17[%c2_290, %c0_291, %c32_292] : memref<8x8x64xf32, #tpu.memory_space<vmem>>, vector<1x8x32xf32>
    %690 = vector.shape_cast %689 : vector<1x8x32xf32> to vector<8x32xf32>
    %691 = vector.shape_cast %685 : vector<8x32xf32> to vector<1x8x32xf32>
    tpu.vector_store %arg17[%c2_290, %c0_291, %c32_292], %691 {strides = array<i32>} : memref<8x8x64xf32, #tpu.memory_space<vmem>>, vector<1x8x32xf32>,
    %c6_293 = arith.constant 6 : index
    %c0_294 = arith.constant 0 : index
    %c0_295 = arith.constant 0 : index
    %692 = vector.load %arg15[%c6_293, %c0_294, %c0_295] : memref<8x8x256xf32, #tpu.memory_space<vmem>>, vector<1x8x128xf32>
    %693 = vector.shape_cast %692 : vector<1x8x128xf32> to vector<8x128xf32>
    %c0_296 = arith.constant 0 : index
    %c0_297 = arith.constant 0 : index
    %694 = vector.load %arg7[%c0_296, %c0_297] : memref<32x128xf32, #tpu.memory_space<vmem>>, vector<32x128xf32>
    %cst_298 = arith.constant dense<0.000000e+00> : vector<8x128xf32>
    %695 = tpu.matmul %669, %694, %cst_298 {dimension_numbers = #tpu.dot_dimension_numbers<[1], [0], [0], [1], [0, 0, 1, 1], [], []>} : vector<8x32xf32>, vector<32x128xf32>, vector<8x128xf32> -> vector<8x128xf32>
    %696 = arith.addf %693, %695 : vector<8x128xf32>
    %c1_299 = arith.constant 1 : index
    %c0_300 = arith.constant 0 : index
    %c128_301 = arith.constant 128 : index
    %697 = vector.load %arg15[%c1_299, %c0_300, %c128_301] : memref<8x8x256xf32, #tpu.memory_space<vmem>>, vector<1x8x128xf32>
    %698 = vector.shape_cast %697 : vector<1x8x128xf32> to vector<8x128xf32>
    %c0_302 = arith.constant 0 : index
    %c0_303 = arith.constant 0 : index
    %699 = vector.load %arg8[%c0_302, %c0_303] : memref<32x128xf32, #tpu.memory_space<vmem>>, vector<32x128xf32>
    %cst_304 = arith.constant dense<0.000000e+00> : vector<8x128xf32>
    %700 = tpu.matmul %685, %699, %cst_304 {dimension_numbers = #tpu.dot_dimension_numbers<[1], [0], [0], [1], [0, 0, 1, 1], [], []>} : vector<8x32xf32>, vector<32x128xf32>, vector<8x128xf32> -> vector<8x128xf32>
    %701 = arith.addf %698, %700 : vector<8x128xf32>
    %702 = vector.extract_strided_slice %696 {offsets = [0, 0], sizes = [8, 96], strides = [1, 1]} : vector<8x128xf32> to vector<8x96xf32>
    %703 = arith.negf %702 : vector<8x96xf32>
    %704 = math.exp %703 : vector<8x96xf32>
    %cst_305 = arith.constant 1.000000e+00 : f32
    %705 = vector.broadcast %cst_305 : f32 to vector<8x96xf32>
    %706 = arith.addf %705, %704 : vector<8x96xf32>
    %707 = arith.divf %705, %706 : vector<8x96xf32>
    %708 = vector.extract_strided_slice %696 {offsets = [0, 96], sizes = [8, 32], strides = [1, 1]} : vector<8x128xf32> to vector<8x32xf32>
    %709 = math.tanh %708 : vector<8x32xf32>
    %710 = vector.extract_strided_slice %707 {offsets = [0, 32], sizes = [8, 32], strides = [1, 1]} : vector<8x96xf32> to vector<8x32xf32>
    %711 = arith.mulf %710, %666 : vector<8x32xf32>
    %712 = vector.extract_strided_slice %707 {offsets = [0, 0], sizes = [8, 32], strides = [1, 1]} : vector<8x96xf32> to vector<8x32xf32>
    %713 = arith.mulf %712, %709 : vector<8x32xf32>
    %714 = arith.addf %711, %713 : vector<8x32xf32>
    %715 = vector.extract_strided_slice %707 {offsets = [0, 64], sizes = [8, 32], strides = [1, 1]} : vector<8x96xf32> to vector<8x32xf32>
    %716 = math.tanh %714 : vector<8x32xf32>
    %717 = arith.mulf %715, %716 : vector<8x32xf32>
    %718 = vector.extract_strided_slice %701 {offsets = [0, 0], sizes = [8, 96], strides = [1, 1]} : vector<8x128xf32> to vector<8x96xf32>
    %719 = arith.negf %718 : vector<8x96xf32>
    %720 = math.exp %719 : vector<8x96xf32>
    %cst_306 = arith.constant 1.000000e+00 : f32
    %721 = vector.broadcast %cst_306 : f32 to vector<8x96xf32>
    %722 = arith.addf %721, %720 : vector<8x96xf32>
    %723 = arith.divf %721, %722 : vector<8x96xf32>
    %724 = vector.extract_strided_slice %701 {offsets = [0, 96], sizes = [8, 32], strides = [1, 1]} : vector<8x128xf32> to vector<8x32xf32>
    %725 = math.tanh %724 : vector<8x32xf32>
    %726 = vector.extract_strided_slice %723 {offsets = [0, 32], sizes = [8, 32], strides = [1, 1]} : vector<8x96xf32> to vector<8x32xf32>
    %727 = arith.mulf %726, %682 : vector<8x32xf32>
    %728 = vector.extract_strided_slice %723 {offsets = [0, 0], sizes = [8, 32], strides = [1, 1]} : vector<8x96xf32> to vector<8x32xf32>
    %729 = arith.mulf %728, %725 : vector<8x32xf32>
    %730 = arith.addf %727, %729 : vector<8x32xf32>
    %731 = vector.extract_strided_slice %723 {offsets = [0, 64], sizes = [8, 32], strides = [1, 1]} : vector<8x96xf32> to vector<8x32xf32>
    %732 = math.tanh %730 : vector<8x32xf32>
    %733 = arith.mulf %731, %732 : vector<8x32xf32>
    %c6_307 = arith.constant 6 : index
    %c0_308 = arith.constant 0 : index
    %c0_309 = arith.constant 0 : index
    %734 = vector.load %arg17[%c6_307, %c0_308, %c0_309] : memref<8x8x64xf32, #tpu.memory_space<vmem>>, vector<1x8x32xf32>
    %735 = vector.shape_cast %734 : vector<1x8x32xf32> to vector<8x32xf32>
    %736 = vector.shape_cast %717 : vector<8x32xf32> to vector<1x8x32xf32>
    tpu.vector_store %arg17[%c6_307, %c0_308, %c0_309], %736 {strides = array<i32>} : memref<8x8x64xf32, #tpu.memory_space<vmem>>, vector<1x8x32xf32>,
    %c1_310 = arith.constant 1 : index
    %c0_311 = arith.constant 0 : index
    %c32_312 = arith.constant 32 : index
    %737 = vector.load %arg17[%c1_310, %c0_311, %c32_312] : memref<8x8x64xf32, #tpu.memory_space<vmem>>, vector<1x8x32xf32>
    %738 = vector.shape_cast %737 : vector<1x8x32xf32> to vector<8x32xf32>
    %739 = vector.shape_cast %733 : vector<8x32xf32> to vector<1x8x32xf32>
    tpu.vector_store %arg17[%c1_310, %c0_311, %c32_312], %739 {strides = array<i32>} : memref<8x8x64xf32, #tpu.memory_space<vmem>>, vector<1x8x32xf32>,
    %c7_313 = arith.constant 7 : index
    %c0_314 = arith.constant 0 : index
    %c0_315 = arith.constant 0 : index
    %740 = vector.load %arg15[%c7_313, %c0_314, %c0_315] : memref<8x8x256xf32, #tpu.memory_space<vmem>>, vector<1x8x128xf32>
    %741 = vector.shape_cast %740 : vector<1x8x128xf32> to vector<8x128xf32>
    %c0_316 = arith.constant 0 : index
    %c0_317 = arith.constant 0 : index
    %742 = vector.load %arg7[%c0_316, %c0_317] : memref<32x128xf32, #tpu.memory_space<vmem>>, vector<32x128xf32>
    %cst_318 = arith.constant dense<0.000000e+00> : vector<8x128xf32>
    %743 = tpu.matmul %717, %742, %cst_318 {dimension_numbers = #tpu.dot_dimension_numbers<[1], [0], [0], [1], [0, 0, 1, 1], [], []>} : vector<8x32xf32>, vector<32x128xf32>, vector<8x128xf32> -> vector<8x128xf32>
    %744 = arith.addf %741, %743 : vector<8x128xf32>
    %c0_319 = arith.constant 0 : index
    %c0_320 = arith.constant 0 : index
    %c128_321 = arith.constant 128 : index
    %745 = vector.load %arg15[%c0_319, %c0_320, %c128_321] : memref<8x8x256xf32, #tpu.memory_space<vmem>>, vector<1x8x128xf32>
    %746 = vector.shape_cast %745 : vector<1x8x128xf32> to vector<8x128xf32>
    %c0_322 = arith.constant 0 : index
    %c0_323 = arith.constant 0 : index
    %747 = vector.load %arg8[%c0_322, %c0_323] : memref<32x128xf32, #tpu.memory_space<vmem>>, vector<32x128xf32>
    %cst_324 = arith.constant dense<0.000000e+00> : vector<8x128xf32>
    %748 = tpu.matmul %733, %747, %cst_324 {dimension_numbers = #tpu.dot_dimension_numbers<[1], [0], [0], [1], [0, 0, 1, 1], [], []>} : vector<8x32xf32>, vector<32x128xf32>, vector<8x128xf32> -> vector<8x128xf32>
    %749 = arith.addf %746, %748 : vector<8x128xf32>
    %750 = vector.extract_strided_slice %744 {offsets = [0, 0], sizes = [8, 96], strides = [1, 1]} : vector<8x128xf32> to vector<8x96xf32>
    %751 = arith.negf %750 : vector<8x96xf32>
    %752 = math.exp %751 : vector<8x96xf32>
    %cst_325 = arith.constant 1.000000e+00 : f32
    %753 = vector.broadcast %cst_325 : f32 to vector<8x96xf32>
    %754 = arith.addf %753, %752 : vector<8x96xf32>
    %755 = arith.divf %753, %754 : vector<8x96xf32>
    %756 = vector.extract_strided_slice %744 {offsets = [0, 96], sizes = [8, 32], strides = [1, 1]} : vector<8x128xf32> to vector<8x32xf32>
    %757 = math.tanh %756 : vector<8x32xf32>
    %758 = vector.extract_strided_slice %755 {offsets = [0, 32], sizes = [8, 32], strides = [1, 1]} : vector<8x96xf32> to vector<8x32xf32>
    %759 = arith.mulf %758, %714 : vector<8x32xf32>
    %760 = vector.extract_strided_slice %755 {offsets = [0, 0], sizes = [8, 32], strides = [1, 1]} : vector<8x96xf32> to vector<8x32xf32>
    %761 = arith.mulf %760, %757 : vector<8x32xf32>
    %762 = arith.addf %759, %761 : vector<8x32xf32>
    %763 = vector.extract_strided_slice %755 {offsets = [0, 64], sizes = [8, 32], strides = [1, 1]} : vector<8x96xf32> to vector<8x32xf32>
    %764 = math.tanh %762 : vector<8x32xf32>
    %765 = arith.mulf %763, %764 : vector<8x32xf32>
    %766 = vector.extract_strided_slice %749 {offsets = [0, 0], sizes = [8, 96], strides = [1, 1]} : vector<8x128xf32> to vector<8x96xf32>
    %767 = arith.negf %766 : vector<8x96xf32>
    %768 = math.exp %767 : vector<8x96xf32>
    %cst_326 = arith.constant 1.000000e+00 : f32
    %769 = vector.broadcast %cst_326 : f32 to vector<8x96xf32>
    %770 = arith.addf %769, %768 : vector<8x96xf32>
    %771 = arith.divf %769, %770 : vector<8x96xf32>
    %772 = vector.extract_strided_slice %749 {offsets = [0, 96], sizes = [8, 32], strides = [1, 1]} : vector<8x128xf32> to vector<8x32xf32>
    %773 = math.tanh %772 : vector<8x32xf32>
    %774 = vector.extract_strided_slice %771 {offsets = [0, 32], sizes = [8, 32], strides = [1, 1]} : vector<8x96xf32> to vector<8x32xf32>
    %775 = arith.mulf %774, %730 : vector<8x32xf32>
    %776 = vector.extract_strided_slice %771 {offsets = [0, 0], sizes = [8, 32], strides = [1, 1]} : vector<8x96xf32> to vector<8x32xf32>
    %777 = arith.mulf %776, %773 : vector<8x32xf32>
    %778 = arith.addf %775, %777 : vector<8x32xf32>
    %779 = vector.extract_strided_slice %771 {offsets = [0, 64], sizes = [8, 32], strides = [1, 1]} : vector<8x96xf32> to vector<8x32xf32>
    %780 = math.tanh %778 : vector<8x32xf32>
    %781 = arith.mulf %779, %780 : vector<8x32xf32>
    %c7_327 = arith.constant 7 : index
    %c0_328 = arith.constant 0 : index
    %c0_329 = arith.constant 0 : index
    %782 = vector.load %arg17[%c7_327, %c0_328, %c0_329] : memref<8x8x64xf32, #tpu.memory_space<vmem>>, vector<1x8x32xf32>
    %783 = vector.shape_cast %782 : vector<1x8x32xf32> to vector<8x32xf32>
    %784 = vector.shape_cast %765 : vector<8x32xf32> to vector<1x8x32xf32>
    tpu.vector_store %arg17[%c7_327, %c0_328, %c0_329], %784 {strides = array<i32>} : memref<8x8x64xf32, #tpu.memory_space<vmem>>, vector<1x8x32xf32>,
    %c0_330 = arith.constant 0 : index
    %c0_331 = arith.constant 0 : index
    %c32_332 = arith.constant 32 : index
    %785 = vector.load %arg17[%c0_330, %c0_331, %c32_332] : memref<8x8x64xf32, #tpu.memory_space<vmem>>, vector<1x8x32xf32>
    %786 = vector.shape_cast %785 : vector<1x8x32xf32> to vector<8x32xf32>
    %787 = vector.shape_cast %781 : vector<8x32xf32> to vector<1x8x32xf32>
    tpu.vector_store %arg17[%c0_330, %c0_331, %c32_332], %787 {strides = array<i32>} : memref<8x8x64xf32, #tpu.memory_space<vmem>>, vector<1x8x32xf32>,
    %c0_333 = arith.constant 0 : index
    %c0_334 = arith.constant 0 : index
    %c0_335 = arith.constant 0 : index
    %788 = vector.load %arg17[%c0_333, %c0_334, %c0_335] : memref<8x8x64xf32, #tpu.memory_space<vmem>>, vector<8x8x64xf32>
    %789 = vector.shape_cast %788 : vector<8x8x64xf32> to vector<64x64xf32>
    %c0_336 = arith.constant 0 : index
    %c0_337 = arith.constant 0 : index
    %790 = vector.load %arg9[%c0_336, %c0_337] : memref<64x32xf32, #tpu.memory_space<vmem>>, vector<64x32xf32>
    %cst_338 = arith.constant dense<0.000000e+00> : vector<64x32xf32>
    %791 = tpu.matmul %789, %790, %cst_338 {dimension_numbers = #tpu.dot_dimension_numbers<[1], [0], [0], [1], [0, 0, 1, 1], [], []>} : vector<64x64xf32>, vector<64x32xf32>, vector<64x32xf32> -> vector<64x32xf32>
    %c0_339 = arith.constant 0 : index
    %c0_340 = arith.constant 0 : index
    %792 = vector.load %arg10[%c0_339, %c0_340] : memref<32x32xf32, #tpu.memory_space<vmem>>, vector<32x32xf32>
    %cst_341 = arith.constant dense<0.000000e+00> : vector<64x32xf32>
    %793 = tpu.matmul %1, %792, %cst_341 {dimension_numbers = #tpu.dot_dimension_numbers<[1], [0], [0], [1], [0, 0, 1, 1], [], []>} : vector<64x32xf32>, vector<32x32xf32>, vector<64x32xf32> -> vector<64x32xf32>
    %794 = arith.addf %791, %793 : vector<64x32xf32>
    %c0_342 = arith.constant 0 : index
    %c0_343 = arith.constant 0 : index
    %795 = vector.load %arg11[%c0_342, %c0_343] : memref<1x32xf32, #tpu.memory_space<vmem>>, vector<1x32xf32>
    %796 = vector.broadcast %795 : vector<1x32xf32> to vector<64x32xf32>
    %797 = arith.addf %794, %796 : vector<64x32xf32>
    %cst_344 = arith.constant 0.000000e+00 : f32
    %798 = vector.broadcast %cst_344 : f32 to vector<64x32xf32>
    %799 = arith.maximumf %797, %798 : vector<64x32xf32>
    %800 = vector.shape_cast %799 : vector<64x32xf32> to vector<8x8x32xf32>
    %cst_345 = arith.constant dense<0xFF800000> : vector<8x32xf32>
    %801 = vector.multi_reduction <maximumf>, %800, %cst_345 [0] : vector<8x8x32xf32> to vector<8x32xf32>
    %c0_346 = arith.constant 0 : index
    %c0_347 = arith.constant 0 : index
    %802 = vector.load %arg12[%c0_346, %c0_347] : memref<32x2xf32, #tpu.memory_space<vmem>>, vector<32x2xf32>
    %cst_348 = arith.constant dense<0.000000e+00> : vector<8x2xf32>
    %803 = tpu.matmul %801, %802, %cst_348 {dimension_numbers = #tpu.dot_dimension_numbers<[1], [0], [0], [1], [0, 0, 1, 1], [], []>} : vector<8x32xf32>, vector<32x2xf32>, vector<8x2xf32> -> vector<8x2xf32>
    %c0_349 = arith.constant 0 : index
    %c0_350 = arith.constant 0 : index
    %804 = vector.load %arg13[%c0_349, %c0_350] : memref<1x2xf32, #tpu.memory_space<vmem>>, vector<1x2xf32>
    %805 = vector.broadcast %804 : vector<1x2xf32> to vector<8x2xf32>
    %806 = arith.addf %803, %805 : vector<8x2xf32>
    %807 = arith.negf %806 : vector<8x2xf32>
    %808 = math.exp %807 : vector<8x2xf32>
    %cst_351 = arith.constant 1.000000e+00 : f32
    %809 = vector.broadcast %cst_351 : f32 to vector<8x2xf32>
    %810 = arith.addf %809, %808 : vector<8x2xf32>
    %811 = arith.divf %809, %810 : vector<8x2xf32>
    %c0_352 = arith.constant 0 : index
    %c0_353 = arith.constant 0 : index
    %812 = vector.load %arg14[%c0_352, %c0_353] : memref<8x2xf32, #tpu.memory_space<vmem>>, vector<8x2xf32>
    tpu.vector_store %arg14[%c0_352, %c0_353], %811 {strides = array<i32>} : memref<8x2xf32, #tpu.memory_space<vmem>>, vector<8x2xf32>,
    return
  }
}

</mosaic_0001>

<llo_original>
// kernel: rcnn_forward.1
$region0: #{rcnn_forward.1}
  #allocation0 [shape = 'u32[]', space=smem, size = 0x4, offset = 0x4, fixed_abs, tag = 'smem constant byte address 0x4 - core index']
  #allocation1 [shape = 'u32[72,128]{1,0:T(1,128)}', space=vmem, size = 0x9000, scoped, tag = 'internal scratch']
  #allocation2 [shape = 'f32[8,8,256]{2,1,0:T(8,128)}', space=vmem, size = 0x10000, scoped, tag = 'scratch operand']
  #allocation3 [shape = 'f32[8,8,64]{2,1,0:T(8,128)}', space=vmem, size = 0x8000, scoped, tag = 'scratch operand']
  #allocation4 [shape = 'f32[8,8,64]{2,1,0:T(8,128)}', space=vmem, size = 0x8000, scoped, tag = 'scratch operand']
  %s0 = inlined_call_operand.vmem [shape: f32[8,8,32], index: 0, kind: input, shape index: {}]
  %s1 = inlined_call_operand.vmem [shape: f32[32,256], index: 1, kind: input, shape index: {}]
  %s2 = inlined_call_operand.vmem [shape: f32[1,256], index: 2, kind: input, shape index: {}]
  %s3 = inlined_call_operand.vmem [shape: f32[32,128], index: 3, kind: input, shape index: {}]
  %s4 = inlined_call_operand.vmem [shape: f32[32,128], index: 4, kind: input, shape index: {}]
  %s5 = inlined_call_operand.vmem [shape: f32[64,256], index: 5, kind: input, shape index: {}]
  %s6 = inlined_call_operand.vmem [shape: f32[1,256], index: 6, kind: input, shape index: {}]
  %s7 = inlined_call_operand.vmem [shape: f32[32,128], index: 7, kind: input, shape index: {}]
  %s8 = inlined_call_operand.vmem [shape: f32[32,128], index: 8, kind: input, shape index: {}]
  %s9 = inlined_call_operand.vmem [shape: f32[64,32], index: 9, kind: input, shape index: {}]
  %s10 = inlined_call_operand.vmem [shape: f32[32,32], index: 10, kind: input, shape index: {}]
  %s11 = inlined_call_operand.vmem [shape: f32[1,32], index: 11, kind: input, shape index: {}]
  %s12 = inlined_call_operand.vmem [shape: f32[32,2], index: 12, kind: input, shape index: {}]
  %s13 = inlined_call_operand.vmem [shape: f32[1,2], index: 13, kind: input, shape index: {}]
  %s14 = inlined_call_operand.vmem [shape: f32[8,2], index: 14, kind: output, shape index: {}]
  %s15 = sld [smem:[#allocation0]]
  $region66: #{rcnn_forward.1} parent=0
    _
  %s17 = ssub.s32 1, %s15
  %s18 = scalar_select 0, %s17, %s15
  // Predicated region
  $region2: #{rcnn_forward.1} parent=0 // pred_check
    _
  $region3: #{rcnn_forward.1} parent=0 // pred_check_branch
    %20 = sbr.rel (0) target = $region5
  $region4: #{rcnn_forward.1} parent=0 // pred_region
    _
  $region5: #{rcnn_forward.1} parent=0 // pred_fallthru
    _
  // Predicated region
  $region6: #{rcnn_forward.1} parent=0 // pred_check
    _
  $region7: #{rcnn_forward.1} parent=0 // pred_check_branch
    %22 = sbr.rel (0) target = $region9
  $region8: #{rcnn_forward.1} parent=0 // pred_region
    _
  $region9: #{rcnn_forward.1} parent=0 // pred_fallthru
    _
  // Predicated region
  $region10: #{rcnn_forward.1} parent=0 // pred_check
    _
  $region11: #{rcnn_forward.1} parent=0 // pred_check_branch
    %24 = sbr.rel (0) target = $region13
  $region12: #{rcnn_forward.1} parent=0 // pred_region
    _
  $region13: #{rcnn_forward.1} parent=0 // pred_fallthru
    _
  // Predicated region
  $region14: #{rcnn_forward.1} parent=0 // pred_check
    _
  $region15: #{rcnn_forward.1} parent=0 // pred_check_branch
    %26 = sbr.rel (0) target = $region17
  $region16: #{rcnn_forward.1} parent=0 // pred_region
    _
  $region17: #{rcnn_forward.1} parent=0 // pred_fallthru
    _
  // Predicated region
  $region18: #{rcnn_forward.1} parent=0 // pred_check
    _
  $region19: #{rcnn_forward.1} parent=0 // pred_check_branch
    %28 = sbr.rel (0) target = $region21
  $region20: #{rcnn_forward.1} parent=0 // pred_region
    _
  $region21: #{rcnn_forward.1} parent=0 // pred_fallthru
    _
  // Predicated region
  $region22: #{rcnn_forward.1} parent=0 // pred_check
    _
  $region23: #{rcnn_forward.1} parent=0 // pred_check_branch
    %30 = sbr.rel (0) target = $region25
  $region24: #{rcnn_forward.1} parent=0 // pred_region
    _
  $region25: #{rcnn_forward.1} parent=0 // pred_fallthru
    _
  // Predicated region
  $region26: #{rcnn_forward.1} parent=0 // pred_check
    _
  $region27: #{rcnn_forward.1} parent=0 // pred_check_branch
    %32 = sbr.rel (0) target = $region29
  $region28: #{rcnn_forward.1} parent=0 // pred_region
    _
  $region29: #{rcnn_forward.1} parent=0 // pred_fallthru
    _
  // Predicated region
  $region30: #{rcnn_forward.1} parent=0 // pred_check
    _
  $region31: #{rcnn_forward.1} parent=0 // pred_check_branch
    %34 = sbr.rel (0) target = $region33
  $region32: #{rcnn_forward.1} parent=0 // pred_region
    _
  $region33: #{rcnn_forward.1} parent=0 // pred_fallthru
    _
  // Predicated region
  $region34: #{rcnn_forward.1} parent=0 // pred_check
    _
  $region35: #{rcnn_forward.1} parent=0 // pred_check_branch
    %36 = sbr.rel (0) target = $region37
  $region36: #{rcnn_forward.1} parent=0 // pred_region
    _
  $region37: #{rcnn_forward.1} parent=0 // pred_fallthru
    _
  // Predicated region
  $region38: #{rcnn_forward.1} parent=0 // pred_check
    _
  $region39: #{rcnn_forward.1} parent=0 // pred_check_branch
    %38 = sbr.rel (0) target = $region41
  $region40: #{rcnn_forward.1} parent=0 // pred_region
    _
  $region41: #{rcnn_forward.1} parent=0 // pred_fallthru
    _
  // Predicated region
  $region42: #{rcnn_forward.1} parent=0 // pred_check
    _
  $region43: #{rcnn_forward.1} parent=0 // pred_check_branch
    %40 = sbr.rel (0) target = $region45
  $region44: #{rcnn_forward.1} parent=0 // pred_region
    _
  $region45: #{rcnn_forward.1} parent=0 // pred_fallthru
    _
  // Predicated region
  $region46: #{rcnn_forward.1} parent=0 // pred_check
    _
  $region47: #{rcnn_forward.1} parent=0 // pred_check_branch
    %42 = sbr.rel (0) target = $region49
  $region48: #{rcnn_forward.1} parent=0 // pred_region
    _
  $region49: #{rcnn_forward.1} parent=0 // pred_fallthru
    _
  // Predicated region
  $region50: #{rcnn_forward.1} parent=0 // pred_check
    _
  $region51: #{rcnn_forward.1} parent=0 // pred_check_branch
    %44 = sbr.rel (0) target = $region53
  $region52: #{rcnn_forward.1} parent=0 // pred_region
    _
  $region53: #{rcnn_forward.1} parent=0 // pred_fallthru
    _
  // Predicated region
  $region54: #{rcnn_forward.1} parent=0 // pred_check
    _
  $region55: #{rcnn_forward.1} parent=0 // pred_check_branch
    %46 = sbr.rel (0) target = $region57
  $region56: #{rcnn_forward.1} parent=0 // pred_region
    _
  $region57: #{rcnn_forward.1} parent=0 // pred_fallthru
    _
  %v47 = vld [vmem:[%s0] sm:$0xff]
  %v48 = vld [vmem:[%s0 + $0x8] sm:$0xff]
  %v49 = vld [vmem:[%s0 + $0x10] sm:$0xff]
  %v50 = vld [vmem:[%s0 + $0x18] sm:$0xff]
  %v51 = vld [vmem:[%s0 + $0x20] sm:$0xff]
  %v52 = vld [vmem:[%s0 + $0x28] sm:$0xff]
  %v53 = vld [vmem:[%s0 + $0x30] sm:$0xff]
  %v54 = vld [vmem:[%s0 + $0x38] sm:$0xff]
  %v55 = vld [vmem:[%s1] sm:$0xff]
  %v56 = vld [vmem:[%s1 + $0x8] sm:$0xff]
  %v57 = vld [vmem:[%s1 + $0x10] sm:$0xff]
  %v58 = vld [vmem:[%s1 + $0x18] sm:$0xff]
  %v59 = vld [vmem:[%s1 + $0x20] sm:$0xff]
  %v60 = vld [vmem:[%s1 + $0x28] sm:$0xff]
  %v61 = vld [vmem:[%s1 + $0x30] sm:$0xff]
  %v62 = vld [vmem:[%s1 + $0x38] sm:$0xff]
  %v63 = vld [vmem:[%s2] sm:$0x3]
  %v65 = vperm.slane %v63, 0
  %v66 = vperm.slane %v63, 1
  %vm69 = vcmask 261120
  %v71 = vsel %vm69, %v47, 0
  %v74 = vsel %vm69, %v48, 0
  %v77 = vsel %vm69, %v49, 0
  %v80 = vsel %vm69, %v50, 0
  %v83 = vsel %vm69, %v51, 0
  %v86 = vsel %vm69, %v52, 0
  %v89 = vsel %vm69, %v53, 0
  %v92 = vsel %vm69, %v54, 0
  %94 = vmatpush.msra.mxu0 0.0
  %95 = vmatpush.msra.mxu0 0.0
  %96 = vmatpush.msra.mxu0 0.0
  %97 = vmatpush.msra.mxu0 0.0
  %98 = vmatpush.msra.mxu0 0.0
  %99 = vmatpush.msra.mxu0 0.0
  %100 = vmatpush.msra.mxu0 0.0
  %101 = vmatpush.msra.mxu0 0.0
  %102 = vmatpush.msra.mxu0 0.0
  %103 = vmatpush.msra.mxu0 0.0
  %104 = vmatpush.msra.mxu0 0.0
  %105 = vmatpush.msra.mxu0 0.0
  %106 = vmatpush.msra.mxu0 %v61
  %107 = vmatpush.msra.mxu0 %v59
  %108 = vmatpush.msra.mxu0 %v57
  %109 = vmatpush.msra.mxu0 %v55
  %110 = vmatmul.f32.gmra.mxu0 %v71
  %v111 = vpop.f32.mrf.mxu0
  %v112 = vadd.f32 %v65, %v111
  %113 = vmatmul.f32.gmra.mxu0 %v74
  %v114 = vpop.f32.mrf.mxu0
  %v115 = vadd.f32 %v65, %v114
  %116 = vmatmul.f32.gmra.mxu0 %v77
  %v117 = vpop.f32.mrf.mxu0
  %v118 = vadd.f32 %v65, %v117
  %119 = vmatmul.f32.gmra.mxu0 %v80
  %v120 = vpop.f32.mrf.mxu0
  %v121 = vadd.f32 %v65, %v120
  %122 = vmatmul.f32.gmra.mxu0 %v83
  %v123 = vpop.f32.mrf.mxu0
  %v124 = vadd.f32 %v65, %v123
  %125 = vmatmul.f32.gmra.mxu0 %v86
  %v126 = vpop.f32.mrf.mxu0
  %v127 = vadd.f32 %v65, %v126
  %128 = vmatmul.f32.gmra.mxu0 %v89
  %v129 = vpop.f32.mrf.mxu0
  %v130 = vadd.f32 %v65, %v129
  %131 = vmatmul.f32.gmra.mxu0 %v92
  %v132 = vpop.f32.mrf.mxu0
  %v133 = vadd.f32 %v65, %v132
  %134 = vdwg.mxu0
  %135 = vmatpush.msra.mxu0 0.0
  %136 = vmatpush.msra.mxu0 0.0
  %137 = vmatpush.msra.mxu0 0.0
  %138 = vmatpush.msra.mxu0 0.0
  %139 = vmatpush.msra.mxu0 0.0
  %140 = vmatpush.msra.mxu0 0.0
  %141 = vmatpush.msra.mxu0 0.0
  %142 = vmatpush.msra.mxu0 0.0
  %143 = vmatpush.msra.mxu0 0.0
  %144 = vmatpush.msra.mxu0 0.0
  %145 = vmatpush.msra.mxu0 0.0
  %146 = vmatpush.msra.mxu0 0.0
  %147 = vmatpush.msra.mxu0 %v62
  %148 = vmatpush.msra.mxu0 %v60
  %149 = vmatpush.msra.mxu0 %v58
  %150 = vmatpush.msra.mxu0 %v56
  %151 = vmatmul.f32.gmra.mxu0 %v71
  %v152 = vpop.f32.mrf.mxu0
  %v153 = vadd.f32 %v66, %v152
  %154 = vmatmul.f32.gmra.mxu0 %v74
  %v155 = vpop.f32.mrf.mxu0
  %v156 = vadd.f32 %v66, %v155
  %157 = vmatmul.f32.gmra.mxu0 %v77
  %v158 = vpop.f32.mrf.mxu0
  %v159 = vadd.f32 %v66, %v158
  %160 = vmatmul.f32.gmra.mxu0 %v80
  %v161 = vpop.f32.mrf.mxu0
  %v162 = vadd.f32 %v66, %v161
  %163 = vmatmul.f32.gmra.mxu0 %v83
  %v164 = vpop.f32.mrf.mxu0
  %v165 = vadd.f32 %v66, %v164
  %166 = vmatmul.f32.gmra.mxu0 %v86
  %v167 = vpop.f32.mrf.mxu0
  %v168 = vadd.f32 %v66, %v167
  %169 = vmatmul.f32.gmra.mxu0 %v89
  %v170 = vpop.f32.mrf.mxu0
  %v171 = vadd.f32 %v66, %v170
  %172 = vmatmul.f32.gmra.mxu0 %v92
  %v173 = vpop.f32.mrf.mxu0
  %v174 = vadd.f32 %v66, %v173
  %175 = vdwg.mxu0
  %176 = vst [vmem:[#allocation2] sm:$0xff] %v112
  %177 = vst [vmem:[#allocation2 + $0x8] sm:$0xff] %v153
  %178 = vst [vmem:[#allocation2 + $0x10] sm:$0xff] %v115
  %179 = vst [vmem:[#allocation2 + $0x18] sm:$0xff] %v156
  %180 = vst [vmem:[#allocation2 + $0x20] sm:$0xff] %v118
  %181 = vst [vmem:[#allocation2 + $0x28] sm:$0xff] %v159
  %182 = vst [vmem:[#allocation2 + $0x30] sm:$0xff] %v121
  %183 = vst [vmem:[#allocation2 + $0x38] sm:$0xff] %v162
  %184 = vst [vmem:[#allocation2 + $0x40] sm:$0xff] %v124
  %185 = vst [vmem:[#allocation2 + $0x48] sm:$0xff] %v165
  %186 = vst [vmem:[#allocation2 + $0x50] sm:$0xff] %v127
  %187 = vst [vmem:[#allocation2 + $0x58] sm:$0xff] %v168
  %188 = vst [vmem:[#allocation2 + $0x60] sm:$0xff] %v130
  %189 = vst [vmem:[#allocation2 + $0x68] sm:$0xff] %v171
  %190 = vst [vmem:[#allocation2 + $0x70] sm:$0xff] %v133
  %191 = vst [vmem:[#allocation2 + $0x78] sm:$0xff] %v174
  %v192 = vld [vmem:[#allocation2] sm:$0xff]
  %v193 = vld [vmem:[%s3] sm:$0xff]
  %v194 = vld [vmem:[%s3 + $0x8] sm:$0xff]
  %v195 = vld [vmem:[%s3 + $0x10] sm:$0xff]
  %v196 = vld [vmem:[%s3 + $0x18] sm:$0xff]
  %v198 = vsel %vm69, 0.0, 0
  %200 = vmatpush.msra.mxu0 0.0
  %201 = vmatpush.msra.mxu0 0.0
  %202 = vmatpush.msra.mxu0 0.0
  %203 = vmatpush.msra.mxu0 0.0
  %204 = vmatpush.msra.mxu0 0.0
  %205 = vmatpush.msra.mxu0 0.0
  %206 = vmatpush.msra.mxu0 0.0
  %207 = vmatpush.msra.mxu0 0.0
  %208 = vmatpush.msra.mxu0 0.0
  %209 = vmatpush.msra.mxu0 0.0
  %210 = vmatpush.msra.mxu0 0.0
  %211 = vmatpush.msra.mxu0 0.0
  %212 = vmatpush.msra.mxu0 %v196
  %213 = vmatpush.msra.mxu0 %v195
  %214 = vmatpush.msra.mxu0 %v194
  %215 = vmatpush.msra.mxu0 %v193
  %216 = vmatmul.f32.gmra.mxu0 %v198
  %v217 = vpop.f32.mrf.mxu0
  %v218 = vadd.f32 0.0, %v217
  %219 = vdwg.mxu0
  %v220 = vadd.f32 %v192, %v218
  %s221 = scalar_lea.vmem [#allocation2], 112
  %v222 = vld [vmem:[%s221 + $0x8] sm:$0xff]
  %v223 = vld [vmem:[%s4] sm:$0xff]
  %v224 = vld [vmem:[%s4 + $0x8] sm:$0xff]
  %v225 = vld [vmem:[%s4 + $0x10] sm:$0xff]
  %v226 = vld [vmem:[%s4 + $0x18] sm:$0xff]
  %227 = vmatpush.msra.mxu0 0.0
  %228 = vmatpush.msra.mxu0 0.0
  %229 = vmatpush.msra.mxu0 0.0
  %230 = vmatpush.msra.mxu0 0.0
  %231 = vmatpush.msra.mxu0 0.0
  %232 = vmatpush.msra.mxu0 0.0
  %233 = vmatpush.msra.mxu0 0.0
  %234 = vmatpush.msra.mxu0 0.0
  %235 = vmatpush.msra.mxu0 0.0
  %236 = vmatpush.msra.mxu0 0.0
  %237 = vmatpush.msra.mxu0 0.0
  %238 = vmatpush.msra.mxu0 0.0
  %239 = vmatpush.msra.mxu0 %v226
  %240 = vmatpush.msra.mxu0 %v225
  %241 = vmatpush.msra.mxu0 %v224
  %242 = vmatpush.msra.mxu0 %v223
  %243 = vmatmul.f32.gmra.mxu0 %v198
  %v244 = vpop.f32.mrf.mxu0
  %v245 = vadd.f32 0.0, %v244
  %246 = vdwg.mxu0
  %v247 = vadd.f32 %v222, %v245
  %v248 = vxor.u32 %v220, 2147483648
  %v249 = vmul.f32 %v248, 1.442695
  %v250 = vpow.pop %v249
  %v251 = vadd.f32 %v250, 1.0
  %v252 = vrcp.pop %v251
  %v253 = vmul.f32 %v251, %v252
  %v254 = vsub.f32 1.0, %v253
  %v255 = vmul.f32 %v252, %v254
  %v256 = vadd.f32 %v252, %v255
  %vm257 = vweird.f32 %v251
  %vm258 = vweird.f32 %v252
  %vm259 = vmor %vm257, %vm258
  %v260 = vsel %vm259, %v252, %v256
  %v261 = vand.u32 2147483647, %v251
  %vm262 = vcmp.eq.f32.partialorder %v261, 8.507059e+37
  %v263 = vand.u32 %v251, 2147483648
  %v264 = vor.u32 1.1754944e-38, %v263
  %v265 = vsel %vm262, %v264, %v260
  %v266 = vmul.f32 1.0, %v265
  %v267 = vtanh.pop %v220
  %v268 = vmul.f32 %v266, 0.0
  %270 = vrot.lane.b32.xlu0 %v267, 32
  %v271 = vpop.permute.xlu0 %270
  %v273 = vmul.f32 %v266, %v271
  %275 = vrot.lane.b32.xlu0 %v273, 32
  %v276 = vpop.permute.xlu0 %275
  %v278 = vadd.f32 %v268, %v276
  %v279 = vtanh.pop %v278
  %281 = vrot.lane.b32.xlu0 %v279, 32
  %v282 = vpop.permute.xlu0 %281
  %v284 = vmul.f32 %v266, %v282
  %v285 = vxor.u32 %v247, 2147483648
  %v286 = vmul.f32 %v285, 1.442695
  %v287 = vpow.pop %v286
  %v288 = vadd.f32 %v287, 1.0
  %v289 = vrcp.pop %v288
  %v290 = vmul.f32 %v288, %v289
  %v291 = vsub.f32 1.0, %v290
  %v292 = vmul.f32 %v289, %v291
  %v293 = vadd.f32 %v289, %v292
  %vm294 = vweird.f32 %v288
  %vm295 = vweird.f32 %v289
  %vm296 = vmor %vm294, %vm295
  %v297 = vsel %vm296, %v289, %v293
  %v298 = vand.u32 2147483647, %v288
  %vm299 = vcmp.eq.f32.partialorder %v298, 8.507059e+37
  %v300 = vand.u32 %v288, 2147483648
  %v301 = vor.u32 1.1754944e-38, %v300
  %v302 = vsel %vm299, %v301, %v297
  %v303 = vmul.f32 1.0, %v302
  %v304 = vtanh.pop %v247
  %v305 = vmul.f32 %v303, 0.0
  %307 = vrot.lane.b32.xlu0 %v304, 32
  %v308 = vpop.permute.xlu0 %307
  %v310 = vmul.f32 %v303, %v308
  %312 = vrot.lane.b32.xlu0 %v310, 32
  %v313 = vpop.permute.xlu0 %312
  %v315 = vadd.f32 %v305, %v313
  %v316 = vtanh.pop %v315
  %318 = vrot.lane.b32.xlu0 %v316, 32
  %v319 = vpop.permute.xlu0 %318
  %v321 = vmul.f32 %v303, %v319
  %323 = vrot.lane.b32.xlu0 %v284, 64
  %v324 = vpop.permute.xlu0 %323
  %326 = vst.msk [vmem:[#allocation3] sm:$0xff] %vm69, %v324
  %328 = vrot.lane.b32.xlu0 %v321, 96
  %v329 = vpop.permute.xlu0 %328
  %s331 = scalar_lea.vmem [#allocation3], 56
  %vm332 = vcmask 523520
  %333 = vst.msk [vmem:[%s331] sm:$0xff] %vm332, %v329
  %s334 = scalar_lea.vmem [#allocation2], 16
  %v335 = vld [vmem:[%s334] sm:$0xff]
  %v336 = vld [vmem:[%s3] sm:$0xff]
  %v337 = vld [vmem:[%s3 + $0x8] sm:$0xff]
  %v338 = vld [vmem:[%s3 + $0x10] sm:$0xff]
  %v339 = vld [vmem:[%s3 + $0x18] sm:$0xff]
  %v340 = vsel %vm69, %v324, 0
  %342 = vmatpush.msra.mxu0 0.0
  %343 = vmatpush.msra.mxu0 0.0
  %344 = vmatpush.msra.mxu0 0.0
  %345 = vmatpush.msra.mxu0 0.0
  %346 = vmatpush.msra.mxu0 0.0
  %347 = vmatpush.msra.mxu0 0.0
  %348 = vmatpush.msra.mxu0 0.0
  %349 = vmatpush.msra.mxu0 0.0
  %350 = vmatpush.msra.mxu0 0.0
  %351 = vmatpush.msra.mxu0 0.0
  %352 = vmatpush.msra.mxu0 0.0
  %353 = vmatpush.msra.mxu0 0.0
  %354 = vmatpush.msra.mxu0 %v339
  %355 = vmatpush.msra.mxu0 %v338
  %356 = vmatpush.msra.mxu0 %v337
  %357 = vmatpush.msra.mxu0 %v336
  %358 = vmatmul.f32.gmra.mxu0 %v340
  %v359 = vpop.f32.mrf.mxu0
  %v360 = vadd.f32 0.0, %v359
  %361 = vdwg.mxu0
  %v362 = vadd.f32 %v335, %v360
  %s363 = scalar_lea.vmem [#allocation2], 96
  %v364 = vld [vmem:[%s363 + $0x8] sm:$0xff]
  %v365 = vld [vmem:[%s4] sm:$0xff]
  %v366 = vld [vmem:[%s4 + $0x8] sm:$0xff]
  %v367 = vld [vmem:[%s4 + $0x10] sm:$0xff]
  %v368 = vld [vmem:[%s4 + $0x18] sm:$0xff]
  %369 = vrot.lane.b32.xlu0 %v321, 64
  %v370 = vpop.permute.xlu0 %369
  %v371 = vsel %vm69, %v370, 0
  %373 = vmatpush.msra.mxu0 0.0
  %374 = vmatpush.msra.mxu0 0.0
  %375 = vmatpush.msra.mxu0 0.0
  %376 = vmatpush.msra.mxu0 0.0
  %377 = vmatpush.msra.mxu0 0.0
  %378 = vmatpush.msra.mxu0 0.0
  %379 = vmatpush.msra.mxu0 0.0
  %380 = vmatpush.msra.mxu0 0.0
  %381 = vmatpush.msra.mxu0 0.0
  %382 = vmatpush.msra.mxu0 0.0
  %383 = vmatpush.msra.mxu0 0.0
  %384 = vmatpush.msra.mxu0 0.0
  %385 = vmatpush.msra.mxu0 %v368
  %386 = vmatpush.msra.mxu0 %v367
  %387 = vmatpush.msra.mxu0 %v366
  %388 = vmatpush.msra.mxu0 %v365
  %389 = vmatmul.f32.gmra.mxu0 %v371
  %v390 = vpop.f32.mrf.mxu0
  %v391 = vadd.f32 0.0, %v390
  %392 = vdwg.mxu0
  %v393 = vadd.f32 %v364, %v391
  %v394 = vxor.u32 %v362, 2147483648
  %v395 = vmul.f32 %v394, 1.442695
  %v396 = vpow.pop %v395
  %v397 = vadd.f32 %v396, 1.0
  %v398 = vrcp.pop %v397
  %v399 = vmul.f32 %v397, %v398
  %v400 = vsub.f32 1.0, %v399
  %v401 = vmul.f32 %v398, %v400
  %v402 = vadd.f32 %v398, %v401
  %vm403 = vweird.f32 %v397
  %vm404 = vweird.f32 %v398
  %vm405 = vmor %vm403, %vm404
  %v406 = vsel %vm405, %v398, %v402
  %v407 = vand.u32 2147483647, %v397
  %vm408 = vcmp.eq.f32.partialorder %v407, 8.507059e+37
  %v409 = vand.u32 %v397, 2147483648
  %v410 = vor.u32 1.1754944e-38, %v409
  %v411 = vsel %vm408, %v410, %v406
  %v412 = vmul.f32 1.0, %v411
  %v413 = vtanh.pop %v362
  %v414 = vmul.f32 %v412, %v278
  %416 = vrot.lane.b32.xlu0 %v413, 32
  %v417 = vpop.permute.xlu0 %416
  %v419 = vmul.f32 %v412, %v417
  %421 = vrot.lane.b32.xlu0 %v419, 32
  %v422 = vpop.permute.xlu0 %421
  %v424 = vadd.f32 %v414, %v422
  %v425 = vtanh.pop %v424
  %427 = vrot.lane.b32.xlu0 %v425, 32
  %v428 = vpop.permute.xlu0 %427
  %v430 = vmul.f32 %v412, %v428
  %v431 = vxor.u32 %v393, 2147483648
  %v432 = vmul.f32 %v431, 1.442695
  %v433 = vpow.pop %v432
  %v434 = vadd.f32 %v433, 1.0
  %v435 = vrcp.pop %v434
  %v436 = vmul.f32 %v434, %v435
  %v437 = vsub.f32 1.0, %v436
  %v438 = vmul.f32 %v435, %v437
  %v439 = vadd.f32 %v435, %v438
  %vm440 = vweird.f32 %v434
  %vm441 = vweird.f32 %v435
  %vm442 = vmor %vm440, %vm441
  %v443 = vsel %vm442, %v435, %v439
  %v444 = vand.u32 2147483647, %v434
  %vm445 = vcmp.eq.f32.partialorder %v444, 8.507059e+37
  %v446 = vand.u32 %v434, 2147483648
  %v447 = vor.u32 1.1754944e-38, %v446
  %v448 = vsel %vm445, %v447, %v443
  %v449 = vmul.f32 1.0, %v448
  %v450 = vtanh.pop %v393
  %v451 = vmul.f32 %v449, %v315
  %453 = vrot.lane.b32.xlu0 %v450, 32
  %v454 = vpop.permute.xlu0 %453
  %v456 = vmul.f32 %v449, %v454
  %458 = vrot.lane.b32.xlu0 %v456, 32
  %v459 = vpop.permute.xlu0 %458
  %v461 = vadd.f32 %v451, %v459
  %v462 = vtanh.pop %v461
  %464 = vrot.lane.b32.xlu0 %v462, 32
  %v465 = vpop.permute.xlu0 %464
  %v467 = vmul.f32 %v449, %v465
  %469 = vrot.lane.b32.xlu0 %v430, 64
  %v470 = vpop.permute.xlu0 %469
  %s472 = scalar_lea.vmem [#allocation3], 8
  %473 = vst.msk [vmem:[%s472] sm:$0xff] %vm69, %v470
  %475 = vrot.lane.b32.xlu0 %v467, 96
  %v476 = vpop.permute.xlu0 %475
  %s478 = scalar_lea.vmem [#allocation3], 48
  %479 = vst.msk [vmem:[%s478] sm:$0xff] %vm332, %v476
  %s480 = scalar_lea.vmem [#allocation2], 32
  %v481 = vld [vmem:[%s480] sm:$0xff]
  %v482 = vld [vmem:[%s3] sm:$0xff]
  %v483 = vld [vmem:[%s3 + $0x8] sm:$0xff]
  %v484 = vld [vmem:[%s3 + $0x10] sm:$0xff]
  %v485 = vld [vmem:[%s3 + $0x18] sm:$0xff]
  %v486 = vsel %vm69, %v470, 0
  %488 = vmatpush.msra.mxu0 0.0
  %489 = vmatpush.msra.mxu0 0.0
  %490 = vmatpush.msra.mxu0 0.0
  %491 = vmatpush.msra.mxu0 0.0
  %492 = vmatpush.msra.mxu0 0.0
  %493 = vmatpush.msra.mxu0 0.0
  %494 = vmatpush.msra.mxu0 0.0
  %495 = vmatpush.msra.mxu0 0.0
  %496 = vmatpush.msra.mxu0 0.0
  %497 = vmatpush.msra.mxu0 0.0
  %498 = vmatpush.msra.mxu0 0.0
  %499 = vmatpush.msra.mxu0 0.0
  %500 = vmatpush.msra.mxu0 %v485
  %501 = vmatpush.msra.mxu0 %v484
  %502 = vmatpush.msra.mxu0 %v483
  %503 = vmatpush.msra.mxu0 %v482
  %504 = vmatmul.f32.gmra.mxu0 %v486
  %v505 = vpop.f32.mrf.mxu0
  %v506 = vadd.f32 0.0, %v505
  %507 = vdwg.mxu0
  %v508 = vadd.f32 %v481, %v506
  %s509 = scalar_lea.vmem [#allocation2], 80
  %v510 = vld [vmem:[%s509 + $0x8] sm:$0xff]
  %v511 = vld [vmem:[%s4] sm:$0xff]
  %v512 = vld [vmem:[%s4 + $0x8] sm:$0xff]
  %v513 = vld [vmem:[%s4 + $0x10] sm:$0xff]
  %v514 = vld [vmem:[%s4 + $0x18] sm:$0xff]
  %515 = vrot.lane.b32.xlu0 %v467, 64
  %v516 = vpop.permute.xlu0 %515
  %v517 = vsel %vm69, %v516, 0
  %519 = vmatpush.msra.mxu0 0.0
  %520 = vmatpush.msra.mxu0 0.0
  %521 = vmatpush.msra.mxu0 0.0
  %522 = vmatpush.msra.mxu0 0.0
  %523 = vmatpush.msra.mxu0 0.0
  %524 = vmatpush.msra.mxu0 0.0
  %525 = vmatpush.msra.mxu0 0.0
  %526 = vmatpush.msra.mxu0 0.0
  %527 = vmatpush.msra.mxu0 0.0
  %528 = vmatpush.msra.mxu0 0.0
  %529 = vmatpush.msra.mxu0 0.0
  %530 = vmatpush.msra.mxu0 0.0
  %531 = vmatpush.msra.mxu0 %v514
  %532 = vmatpush.msra.mxu0 %v513
  %533 = vmatpush.msra.mxu0 %v512
  %534 = vmatpush.msra.mxu0 %v511
  %535 = vmatmul.f32.gmra.mxu0 %v517
  %v536 = vpop.f32.mrf.mxu0
  %v537 = vadd.f32 0.0, %v536
  %538 = vdwg.mxu0
  %v539 = vadd.f32 %v510, %v537
  %v540 = vxor.u32 %v508, 2147483648
  %v541 = vmul.f32 %v540, 1.442695
  %v542 = vpow.pop %v541
  %v543 = vadd.f32 %v542, 1.0
  %v544 = vrcp.pop %v543
  %v545 = vmul.f32 %v543, %v544
  %v546 = vsub.f32 1.0, %v545
  %v547 = vmul.f32 %v544, %v546
  %v548 = vadd.f32 %v544, %v547
  %vm549 = vweird.f32 %v543
  %vm550 = vweird.f32 %v544
  %vm551 = vmor %vm549, %vm550
  %v552 = vsel %vm551, %v544, %v548
  %v553 = vand.u32 2147483647, %v543
  %vm554 = vcmp.eq.f32.partialorder %v553, 8.507059e+37
  %v555 = vand.u32 %v543, 2147483648
  %v556 = vor.u32 1.1754944e-38, %v555
  %v557 = vsel %vm554, %v556, %v552
  %v558 = vmul.f32 1.0, %v557
  %v559 = vtanh.pop %v508
  %v560 = vmul.f32 %v558, %v424
  %562 = vrot.lane.b32.xlu0 %v559, 32
  %v563 = vpop.permute.xlu0 %562
  %v565 = vmul.f32 %v558, %v563
  %567 = vrot.lane.b32.xlu0 %v565, 32
  %v568 = vpop.permute.xlu0 %567
  %v570 = vadd.f32 %v560, %v568
  %v571 = vtanh.pop %v570
  %573 = vrot.lane.b32.xlu0 %v571, 32
  %v574 = vpop.permute.xlu0 %573
  %v576 = vmul.f32 %v558, %v574
  %v577 = vxor.u32 %v539, 2147483648
  %v578 = vmul.f32 %v577, 1.442695
  %v579 = vpow.pop %v578
  %v580 = vadd.f32 %v579, 1.0
  %v581 = vrcp.pop %v580
  %v582 = vmul.f32 %v580, %v581
  %v583 = vsub.f32 1.0, %v582
  %v584 = vmul.f32 %v581, %v583
  %v585 = vadd.f32 %v581, %v584
  %vm586 = vweird.f32 %v580
  %vm587 = vweird.f32 %v581
  %vm588 = vmor %vm586, %vm587
  %v589 = vsel %vm588, %v581, %v585
  %v590 = vand.u32 2147483647, %v580
  %vm591 = vcmp.eq.f32.partialorder %v590, 8.507059e+37
  %v592 = vand.u32 %v580, 2147483648
  %v593 = vor.u32 1.1754944e-38, %v592
  %v594 = vsel %vm591, %v593, %v589
  %v595 = vmul.f32 1.0, %v594
  %v596 = vtanh.pop %v539
  %v597 = vmul.f32 %v595, %v461
  %599 = vrot.lane.b32.xlu0 %v596, 32
  %v600 = vpop.permute.xlu0 %599
  %v602 = vmul.f32 %v595, %v600
  %604 = vrot.lane.b32.xlu0 %v602, 32
  %v605 = vpop.permute.xlu0 %604
  %v607 = vadd.f32 %v597, %v605
  %v608 = vtanh.pop %v607
  %610 = vrot.lane.b32.xlu0 %v608, 32
  %v611 = vpop.permute.xlu0 %610
  %v613 = vmul.f32 %v595, %v611
  %615 = vrot.lane.b32.xlu0 %v576, 64
  %v616 = vpop.permute.xlu0 %615
  %s618 = scalar_lea.vmem [#allocation3], 16
  %619 = vst.msk [vmem:[%s618] sm:$0xff] %vm69, %v616
  %621 = vrot.lane.b32.xlu0 %v613, 96
  %v622 = vpop.permute.xlu0 %621
  %s624 = scalar_lea.vmem [#allocation3], 40
  %625 = vst.msk [vmem:[%s624] sm:$0xff] %vm332, %v622
  %s626 = scalar_lea.vmem [#allocation2], 48
  %v627 = vld [vmem:[%s626] sm:$0xff]
  %v628 = vld [vmem:[%s3] sm:$0xff]
  %v629 = vld [vmem:[%s3 + $0x8] sm:$0xff]
  %v630 = vld [vmem:[%s3 + $0x10] sm:$0xff]
  %v631 = vld [vmem:[%s3 + $0x18] sm:$0xff]
  %v632 = vsel %vm69, %v616, 0
  %634 = vmatpush.msra.mxu0 0.0
  %635 = vmatpush.msra.mxu0 0.0
  %636 = vmatpush.msra.mxu0 0.0
  %637 = vmatpush.msra.mxu0 0.0
  %638 = vmatpush.msra.mxu0 0.0
  %639 = vmatpush.msra.mxu0 0.0
  %640 = vmatpush.msra.mxu0 0.0
  %641 = vmatpush.msra.mxu0 0.0
  %642 = vmatpush.msra.mxu0 0.0
  %643 = vmatpush.msra.mxu0 0.0
  %644 = vmatpush.msra.mxu0 0.0
  %645 = vmatpush.msra.mxu0 0.0
  %646 = vmatpush.msra.mxu0 %v631
  %647 = vmatpush.msra.mxu0 %v630
  %648 = vmatpush.msra.mxu0 %v629
  %649 = vmatpush.msra.mxu0 %v628
  %650 = vmatmul.f32.gmra.mxu0 %v632
  %v651 = vpop.f32.mrf.mxu0
  %v652 = vadd.f32 0.0, %v651
  %653 = vdwg.mxu0
  %v654 = vadd.f32 %v627, %v652
  %s655 = scalar_lea.vmem [#allocation2], 64
  %v656 = vld [vmem:[%s655 + $0x8] sm:$0xff]
  %v657 = vld [vmem:[%s4] sm:$0xff]
  %v658 = vld [vmem:[%s4 + $0x8] sm:$0xff]
  %v659 = vld [vmem:[%s4 + $0x10] sm:$0xff]
  %v660 = vld [vmem:[%s4 + $0x18] sm:$0xff]
  %661 = vrot.lane.b32.xlu0 %v613, 64
  %v662 = vpop.permute.xlu0 %661
  %v663 = vsel %vm69, %v662, 0
  %665 = vmatpush.msra.mxu0 0.0
  %666 = vmatpush.msra.mxu0 0.0
  %667 = vmatpush.msra.mxu0 0.0
  %668 = vmatpush.msra.mxu0 0.0
  %669 = vmatpush.msra.mxu0 0.0
  %670 = vmatpush.msra.mxu0 0.0
  %671 = vmatpush.msra.mxu0 0.0
  %672 = vmatpush.msra.mxu0 0.0
  %673 = vmatpush.msra.mxu0 0.0
  %674 = vmatpush.msra.mxu0 0.0
  %675 = vmatpush.msra.mxu0 0.0
  %676 = vmatpush.msra.mxu0 0.0
  %677 = vmatpush.msra.mxu0 %v660
  %678 = vmatpush.msra.mxu0 %v659
  %679 = vmatpush.msra.mxu0 %v658
  %680 = vmatpush.msra.mxu0 %v657
  %681 = vmatmul.f32.gmra.mxu0 %v663
  %v682 = vpop.f32.mrf.mxu0
  %v683 = vadd.f32 0.0, %v682
  %684 = vdwg.mxu0
  %v685 = vadd.f32 %v656, %v683
  %v686 = vxor.u32 %v654, 2147483648
  %v687 = vmul.f32 %v686, 1.442695
  %v688 = vpow.pop %v687
  %v689 = vadd.f32 %v688, 1.0
  %v690 = vrcp.pop %v689
  %v691 = vmul.f32 %v689, %v690
  %v692 = vsub.f32 1.0, %v691
  %v693 = vmul.f32 %v690, %v692
  %v694 = vadd.f32 %v690, %v693
  %vm695 = vweird.f32 %v689
  %vm696 = vweird.f32 %v690
  %vm697 = vmor %vm695, %vm696
  %v698 = vsel %vm697, %v690, %v694
  %v699 = vand.u32 2147483647, %v689
  %vm700 = vcmp.eq.f32.partialorder %v699, 8.507059e+37
  %v701 = vand.u32 %v689, 2147483648
  %v702 = vor.u32 1.1754944e-38, %v701
  %v703 = vsel %vm700, %v702, %v698
  %v704 = vmul.f32 1.0, %v703
  %v705 = vtanh.pop %v654
  %v706 = vmul.f32 %v704, %v570
  %708 = vrot.lane.b32.xlu0 %v705, 32
  %v709 = vpop.permute.xlu0 %708
  %v711 = vmul.f32 %v704, %v709
  %713 = vrot.lane.b32.xlu0 %v711, 32
  %v714 = vpop.permute.xlu0 %713
  %v716 = vadd.f32 %v706, %v714
  %v717 = vtanh.pop %v716
  %719 = vrot.lane.b32.xlu0 %v717, 32
  %v720 = vpop.permute.xlu0 %719
  %v722 = vmul.f32 %v704, %v720
  %v723 = vxor.u32 %v685, 2147483648
  %v724 = vmul.f32 %v723, 1.442695
  %v725 = vpow.pop %v724
  %v726 = vadd.f32 %v725, 1.0
  %v727 = vrcp.pop %v726
  %v728 = vmul.f32 %v726, %v727
  %v729 = vsub.f32 1.0, %v728
  %v730 = vmul.f32 %v727, %v729
  %v731 = vadd.f32 %v727, %v730
  %vm732 = vweird.f32 %v726
  %vm733 = vweird.f32 %v727
  %vm734 = vmor %vm732, %vm733
  %v735 = vsel %vm734, %v727, %v731
  %v736 = vand.u32 2147483647, %v726
  %vm737 = vcmp.eq.f32.partialorder %v736, 8.507059e+37
  %v738 = vand.u32 %v726, 2147483648
  %v739 = vor.u32 1.1754944e-38, %v738
  %v740 = vsel %vm737, %v739, %v735
  %v741 = vmul.f32 1.0, %v740
  %v742 = vtanh.pop %v685
  %v743 = vmul.f32 %v741, %v607
  %745 = vrot.lane.b32.xlu0 %v742, 32
  %v746 = vpop.permute.xlu0 %745
  %v748 = vmul.f32 %v741, %v746
  %750 = vrot.lane.b32.xlu0 %v748, 32
  %v751 = vpop.permute.xlu0 %750
  %v753 = vadd.f32 %v743, %v751
  %v754 = vtanh.pop %v753
  %756 = vrot.lane.b32.xlu0 %v754, 32
  %v757 = vpop.permute.xlu0 %756
  %v759 = vmul.f32 %v741, %v757
  %761 = vrot.lane.b32.xlu0 %v722, 64
  %v762 = vpop.permute.xlu0 %761
  %s764 = scalar_lea.vmem [#allocation3], 24
  %765 = vst.msk [vmem:[%s764] sm:$0xff] %vm69, %v762
  %767 = vrot.lane.b32.xlu0 %v759, 96
  %v768 = vpop.permute.xlu0 %767
  %s770 = scalar_lea.vmem [#allocation3], 32
  %771 = vst.msk [vmem:[%s770] sm:$0xff] %vm332, %v768
  %v772 = vld [vmem:[%s655] sm:$0xff]
  %v773 = vld [vmem:[%s3] sm:$0xff]
  %v774 = vld [vmem:[%s3 + $0x8] sm:$0xff]
  %v775 = vld [vmem:[%s3 + $0x10] sm:$0xff]
  %v776 = vld [vmem:[%s3 + $0x18] sm:$0xff]
  %v777 = vsel %vm69, %v762, 0
  %779 = vmatpush.msra.mxu0 0.0
  %780 = vmatpush.msra.mxu0 0.0
  %781 = vmatpush.msra.mxu0 0.0
  %782 = vmatpush.msra.mxu0 0.0
  %783 = vmatpush.msra.mxu0 0.0
  %784 = vmatpush.msra.mxu0 0.0
  %785 = vmatpush.msra.mxu0 0.0
  %786 = vmatpush.msra.mxu0 0.0
  %787 = vmatpush.msra.mxu0 0.0
  %788 = vmatpush.msra.mxu0 0.0
  %789 = vmatpush.msra.mxu0 0.0
  %790 = vmatpush.msra.mxu0 0.0
  %791 = vmatpush.msra.mxu0 %v776
  %792 = vmatpush.msra.mxu0 %v775
  %793 = vmatpush.msra.mxu0 %v774
  %794 = vmatpush.msra.mxu0 %v773
  %795 = vmatmul.f32.gmra.mxu0 %v777
  %v796 = vpop.f32.mrf.mxu0
  %v797 = vadd.f32 0.0, %v796
  %798 = vdwg.mxu0
  %v799 = vadd.f32 %v772, %v797
  %v800 = vld [vmem:[%s626 + $0x8] sm:$0xff]
  %v801 = vld [vmem:[%s4] sm:$0xff]
  %v802 = vld [vmem:[%s4 + $0x8] sm:$0xff]
  %v803 = vld [vmem:[%s4 + $0x10] sm:$0xff]
  %v804 = vld [vmem:[%s4 + $0x18] sm:$0xff]
  %805 = vrot.lane.b32.xlu0 %v759, 64
  %v806 = vpop.permute.xlu0 %805
  %v807 = vsel %vm69, %v806, 0
  %809 = vmatpush.msra.mxu0 0.0
  %810 = vmatpush.msra.mxu0 0.0
  %811 = vmatpush.msra.mxu0 0.0
  %812 = vmatpush.msra.mxu0 0.0
  %813 = vmatpush.msra.mxu0 0.0
  %814 = vmatpush.msra.mxu0 0.0
  %815 = vmatpush.msra.mxu0 0.0
  %816 = vmatpush.msra.mxu0 0.0
  %817 = vmatpush.msra.mxu0 0.0
  %818 = vmatpush.msra.mxu0 0.0
  %819 = vmatpush.msra.mxu0 0.0
  %820 = vmatpush.msra.mxu0 0.0
  %821 = vmatpush.msra.mxu0 %v804
  %822 = vmatpush.msra.mxu0 %v803
  %823 = vmatpush.msra.mxu0 %v802
  %824 = vmatpush.msra.mxu0 %v801
  %825 = vmatmul.f32.gmra.mxu0 %v807
  %v826 = vpop.f32.mrf.mxu0
  %v827 = vadd.f32 0.0, %v826
  %828 = vdwg.mxu0
  %v829 = vadd.f32 %v800, %v827
  %v830 = vxor.u32 %v799, 2147483648
  %v831 = vmul.f32 %v830, 1.442695
  %v832 = vpow.pop %v831
  %v833 = vadd.f32 %v832, 1.0
  %v834 = vrcp.pop %v833
  %v835 = vmul.f32 %v833, %v834
  %v836 = vsub.f32 1.0, %v835
  %v837 = vmul.f32 %v834, %v836
  %v838 = vadd.f32 %v834, %v837
  %vm839 = vweird.f32 %v833
  %vm840 = vweird.f32 %v834
  %vm841 = vmor %vm839, %vm840
  %v842 = vsel %vm841, %v834, %v838
  %v843 = vand.u32 2147483647, %v833
  %vm844 = vcmp.eq.f32.partialorder %v843, 8.507059e+37
  %v845 = vand.u32 %v833, 2147483648
  %v846 = vor.u32 1.1754944e-38, %v845
  %v847 = vsel %vm844, %v846, %v842
  %v848 = vmul.f32 1.0, %v847
  %v849 = vtanh.pop %v799
  %v850 = vmul.f32 %v848, %v716
  %852 = vrot.lane.b32.xlu0 %v849, 32
  %v853 = vpop.permute.xlu0 %852
  %v855 = vmul.f32 %v848, %v853
  %857 = vrot.lane.b32.xlu0 %v855, 32
  %v858 = vpop.permute.xlu0 %857
  %v860 = vadd.f32 %v850, %v858
  %v861 = vtanh.pop %v860
  %863 = vrot.lane.b32.xlu0 %v861, 32
  %v864 = vpop.permute.xlu0 %863
  %v866 = vmul.f32 %v848, %v864
  %v867 = vxor.u32 %v829, 2147483648
  %v868 = vmul.f32 %v867, 1.442695
  %v869 = vpow.pop %v868
  %v870 = vadd.f32 %v869, 1.0
  %v871 = vrcp.pop %v870
  %v872 = vmul.f32 %v870, %v871
  %v873 = vsub.f32 1.0, %v872
  %v874 = vmul.f32 %v871, %v873
  %v875 = vadd.f32 %v871, %v874
  %vm876 = vweird.f32 %v870
  %vm877 = vweird.f32 %v871
  %vm878 = vmor %vm876, %vm877
  %v879 = vsel %vm878, %v871, %v875
  %v880 = vand.u32 2147483647, %v870
  %vm881 = vcmp.eq.f32.partialorder %v880, 8.507059e+37
  %v882 = vand.u32 %v870, 2147483648
  %v883 = vor.u32 1.1754944e-38, %v882
  %v884 = vsel %vm881, %v883, %v879
  %v885 = vmul.f32 1.0, %v884
  %v886 = vtanh.pop %v829
  %v887 = vmul.f32 %v885, %v753
  %889 = vrot.lane.b32.xlu0 %v886, 32
  %v890 = vpop.permute.xlu0 %889
  %v892 = vmul.f32 %v885, %v890
  %894 = vrot.lane.b32.xlu0 %v892, 32
  %v895 = vpop.permute.xlu0 %894
  %v897 = vadd.f32 %v887, %v895
  %v898 = vtanh.pop %v897
  %900 = vrot.lane.b32.xlu0 %v898, 32
  %v901 = vpop.permute.xlu0 %900
  %v903 = vmul.f32 %v885, %v901
  %905 = vrot.lane.b32.xlu0 %v866, 64
  %v906 = vpop.permute.xlu0 %905
  %908 = vst.msk [vmem:[%s770] sm:$0xff] %vm69, %v906
  %910 = vrot.lane.b32.xlu0 %v903, 96
  %v911 = vpop.permute.xlu0 %910
  %913 = vst.msk [vmem:[%s764] sm:$0xff] %vm332, %v911
  %v914 = vld [vmem:[%s509] sm:$0xff]
  %v915 = vld [vmem:[%s3] sm:$0xff]
  %v916 = vld [vmem:[%s3 + $0x8] sm:$0xff]
  %v917 = vld [vmem:[%s3 + $0x10] sm:$0xff]
  %v918 = vld [vmem:[%s3 + $0x18] sm:$0xff]
  %v919 = vsel %vm69, %v906, 0
  %921 = vmatpush.msra.mxu0 0.0
  %922 = vmatpush.msra.mxu0 0.0
  %923 = vmatpush.msra.mxu0 0.0
  %924 = vmatpush.msra.mxu0 0.0
  %925 = vmatpush.msra.mxu0 0.0
  %926 = vmatpush.msra.mxu0 0.0
  %927 = vmatpush.msra.mxu0 0.0
  %928 = vmatpush.msra.mxu0 0.0
  %929 = vmatpush.msra.mxu0 0.0
  %930 = vmatpush.msra.mxu0 0.0
  %931 = vmatpush.msra.mxu0 0.0
  %932 = vmatpush.msra.mxu0 0.0
  %933 = vmatpush.msra.mxu0 %v918
  %934 = vmatpush.msra.mxu0 %v917
  %935 = vmatpush.msra.mxu0 %v916
  %936 = vmatpush.msra.mxu0 %v915
  %937 = vmatmul.f32.gmra.mxu0 %v919
  %v938 = vpop.f32.mrf.mxu0
  %v939 = vadd.f32 0.0, %v938
  %940 = vdwg.mxu0
  %v941 = vadd.f32 %v914, %v939
  %v942 = vld [vmem:[%s480 + $0x8] sm:$0xff]
  %v943 = vld [vmem:[%s4] sm:$0xff]
  %v944 = vld [vmem:[%s4 + $0x8] sm:$0xff]
  %v945 = vld [vmem:[%s4 + $0x10] sm:$0xff]
  %v946 = vld [vmem:[%s4 + $0x18] sm:$0xff]
  %947 = vrot.lane.b32.xlu0 %v903, 64
  %v948 = vpop.permute.xlu0 %947
  %v949 = vsel %vm69, %v948, 0
  %951 = vmatpush.msra.mxu0 0.0
  %952 = vmatpush.msra.mxu0 0.0
  %953 = vmatpush.msra.mxu0 0.0
  %954 = vmatpush.msra.mxu0 0.0
  %955 = vmatpush.msra.mxu0 0.0
  %956 = vmatpush.msra.mxu0 0.0
  %957 = vmatpush.msra.mxu0 0.0
  %958 = vmatpush.msra.mxu0 0.0
  %959 = vmatpush.msra.mxu0 0.0
  %960 = vmatpush.msra.mxu0 0.0
  %961 = vmatpush.msra.mxu0 0.0
  %962 = vmatpush.msra.mxu0 0.0
  %963 = vmatpush.msra.mxu0 %v946
  %964 = vmatpush.msra.mxu0 %v945
  %965 = vmatpush.msra.mxu0 %v944
  %966 = vmatpush.msra.mxu0 %v943
  %967 = vmatmul.f32.gmra.mxu0 %v949
  %v968 = vpop.f32.mrf.mxu0
  %v969 = vadd.f32 0.0, %v968
  %970 = vdwg.mxu0
  %v971 = vadd.f32 %v942, %v969
  %v972 = vxor.u32 %v941, 2147483648
  %v973 = vmul.f32 %v972, 1.442695
  %v974 = vpow.pop %v973
  %v975 = vadd.f32 %v974, 1.0
  %v976 = vrcp.pop %v975
  %v977 = vmul.f32 %v975, %v976
  %v978 = vsub.f32 1.0, %v977
  %v979 = vmul.f32 %v976, %v978
  %v980 = vadd.f32 %v976, %v979
  %vm981 = vweird.f32 %v975
  %vm982 = vweird.f32 %v976
  %vm983 = vmor %vm981, %vm982
  %v984 = vsel %vm983, %v976, %v980
  %v985 = vand.u32 2147483647, %v975
  %vm986 = vcmp.eq.f32.partialorder %v985, 8.507059e+37
  %v987 = vand.u32 %v975, 2147483648
  %v988 = vor.u32 1.1754944e-38, %v987
  %v989 = vsel %vm986, %v988, %v984
  %v990 = vmul.f32 1.0, %v989
  %v991 = vtanh.pop %v941
  %v992 = vmul.f32 %v990, %v860
  %994 = vrot.lane.b32.xlu0 %v991, 32
  %v995 = vpop.permute.xlu0 %994
  %v997 = vmul.f32 %v990, %v995
  %999 = vrot.lane.b32.xlu0 %v997, 32
  %v1000 = vpop.permute.xlu0 %999
  %v1002 = vadd.f32 %v992, %v1000
  %v1003 = vtanh.pop %v1002
  %1005 = vrot.lane.b32.xlu0 %v1003, 32
  %v1006 = vpop.permute.xlu0 %1005
  %v1008 = vmul.f32 %v990, %v1006
  %v1009 = vxor.u32 %v971, 2147483648
  %v1010 = vmul.f32 %v1009, 1.442695
  %v1011 = vpow.pop %v1010
  %v1012 = vadd.f32 %v1011, 1.0
  %v1013 = vrcp.pop %v1012
  %v1014 = vmul.f32 %v1012, %v1013
  %v1015 = vsub.f32 1.0, %v1014
  %v1016 = vmul.f32 %v1013, %v1015
  %v1017 = vadd.f32 %v1013, %v1016
  %vm1018 = vweird.f32 %v1012
  %vm1019 = vweird.f32 %v1013
  %vm1020 = vmor %vm1018, %vm1019
  %v1021 = vsel %vm1020, %v1013, %v1017
  %v1022 = vand.u32 2147483647, %v1012
  %vm1023 = vcmp.eq.f32.partialorder %v1022, 8.507059e+37
  %v1024 = vand.u32 %v1012, 2147483648
  %v1025 = vor.u32 1.1754944e-38, %v1024
  %v1026 = vsel %vm1023, %v1025, %v1021
  %v1027 = vmul.f32 1.0, %v1026
  %v1028 = vtanh.pop %v971
  %v1029 = vmul.f32 %v1027, %v897
  %1031 = vrot.lane.b32.xlu0 %v1028, 32
  %v1032 = vpop.permute.xlu0 %1031
  %v1034 = vmul.f32 %v1027, %v1032
  %1036 = vrot.lane.b32.xlu0 %v1034, 32
  %v1037 = vpop.permute.xlu0 %1036
  %v1039 = vadd.f32 %v1029, %v1037
  %v1040 = vtanh.pop %v1039
  %1042 = vrot.lane.b32.xlu0 %v1040, 32
  %v1043 = vpop.permute.xlu0 %1042
  %v1045 = vmul.f32 %v1027, %v1043
  %1047 = vrot.lane.b32.xlu0 %v1008, 64
  %v1048 = vpop.permute.xlu0 %1047
  %1050 = vst.msk [vmem:[%s624] sm:$0xff] %vm69, %v1048
  %1052 = vrot.lane.b32.xlu0 %v1045, 96
  %v1053 = vpop.permute.xlu0 %1052
  %1055 = vst.msk [vmem:[%s618] sm:$0xff] %vm332, %v1053
  %v1056 = vld [vmem:[%s363] sm:$0xff]
  %v1057 = vld [vmem:[%s3] sm:$0xff]
  %v1058 = vld [vmem:[%s3 + $0x8] sm:$0xff]
  %v1059 = vld [vmem:[%s3 + $0x10] sm:$0xff]
  %v1060 = vld [vmem:[%s3 + $0x18] sm:$0xff]
  %v1061 = vsel %vm69, %v1048, 0
  %1063 = vmatpush.msra.mxu0 0.0
  %1064 = vmatpush.msra.mxu0 0.0
  %1065 = vmatpush.msra.mxu0 0.0
  %1066 = vmatpush.msra.mxu0 0.0
  %1067 = vmatpush.msra.mxu0 0.0
  %1068 = vmatpush.msra.mxu0 0.0
  %1069 = vmatpush.msra.mxu0 0.0
  %1070 = vmatpush.msra.mxu0 0.0
  %1071 = vmatpush.msra.mxu0 0.0
  %1072 = vmatpush.msra.mxu0 0.0
  %1073 = vmatpush.msra.mxu0 0.0
  %1074 = vmatpush.msra.mxu0 0.0
  %1075 = vmatpush.msra.mxu0 %v1060
  %1076 = vmatpush.msra.mxu0 %v1059
  %1077 = vmatpush.msra.mxu0 %v1058
  %1078 = vmatpush.msra.mxu0 %v1057
  %1079 = vmatmul.f32.gmra.mxu0 %v1061
  %v1080 = vpop.f32.mrf.mxu0
  %v1081 = vadd.f32 0.0, %v1080
  %1082 = vdwg.mxu0
  %v1083 = vadd.f32 %v1056, %v1081
  %v1084 = vld [vmem:[%s334 + $0x8] sm:$0xff]
  %v1085 = vld [vmem:[%s4] sm:$0xff]
  %v1086 = vld [vmem:[%s4 + $0x8] sm:$0xff]
  %v1087 = vld [vmem:[%s4 + $0x10] sm:$0xff]
  %v1088 = vld [vmem:[%s4 + $0x18] sm:$0xff]
  %1089 = vrot.lane.b32.xlu0 %v1045, 64
  %v1090 = vpop.permute.xlu0 %1089
  %v1091 = vsel %vm69, %v1090, 0
  %1093 = vmatpush.msra.mxu0 0.0
  %1094 = vmatpush.msra.mxu0 0.0
  %1095 = vmatpush.msra.mxu0 0.0
  %1096 = vmatpush.msra.mxu0 0.0
  %1097 = vmatpush.msra.mxu0 0.0
  %1098 = vmatpush.msra.mxu0 0.0
  %1099 = vmatpush.msra.mxu0 0.0
  %1100 = vmatpush.msra.mxu0 0.0
  %1101 = vmatpush.msra.mxu0 0.0
  %1102 = vmatpush.msra.mxu0 0.0
  %1103 = vmatpush.msra.mxu0 0.0
  %1104 = vmatpush.msra.mxu0 0.0
  %1105 = vmatpush.msra.mxu0 %v1088
  %1106 = vmatpush.msra.mxu0 %v1087
  %1107 = vmatpush.msra.mxu0 %v1086
  %1108 = vmatpush.msra.mxu0 %v1085
  %1109 = vmatmul.f32.gmra.mxu0 %v1091
  %v1110 = vpop.f32.mrf.mxu0
  %v1111 = vadd.f32 0.0, %v1110
  %1112 = vdwg.mxu0
  %v1113 = vadd.f32 %v1084, %v1111
  %v1114 = vxor.u32 %v1083, 2147483648
  %v1115 = vmul.f32 %v1114, 1.442695
  %v1116 = vpow.pop %v1115
  %v1117 = vadd.f32 %v1116, 1.0
  %v1118 = vrcp.pop %v1117
  %v1119 = vmul.f32 %v1117, %v1118
  %v1120 = vsub.f32 1.0, %v1119
  %v1121 = vmul.f32 %v1118, %v1120
  %v1122 = vadd.f32 %v1118, %v1121
  %vm1123 = vweird.f32 %v1117
  %vm1124 = vweird.f32 %v1118
  %vm1125 = vmor %vm1123, %vm1124
  %v1126 = vsel %vm1125, %v1118, %v1122
  %v1127 = vand.u32 2147483647, %v1117
  %vm1128 = vcmp.eq.f32.partialorder %v1127, 8.507059e+37
  %v1129 = vand.u32 %v1117, 2147483648
  %v1130 = vor.u32 1.1754944e-38, %v1129
  %v1131 = vsel %vm1128, %v1130, %v1126
  %v1132 = vmul.f32 1.0, %v1131
  %v1133 = vtanh.pop %v1083
  %v1134 = vmul.f32 %v1132, %v1002
  %1136 = vrot.lane.b32.xlu0 %v1133, 32
  %v1137 = vpop.permute.xlu0 %1136
  %v1139 = vmul.f32 %v1132, %v1137
  %1141 = vrot.lane.b32.xlu0 %v1139, 32
  %v1142 = vpop.permute.xlu0 %1141
  %v1144 = vadd.f32 %v1134, %v1142
  %v1145 = vtanh.pop %v1144
  %1147 = vrot.lane.b32.xlu0 %v1145, 32
  %v1148 = vpop.permute.xlu0 %1147
  %v1150 = vmul.f32 %v1132, %v1148
  %v1151 = vxor.u32 %v1113, 2147483648
  %v1152 = vmul.f32 %v1151, 1.442695
  %v1153 = vpow.pop %v1152
  %v1154 = vadd.f32 %v1153, 1.0
  %v1155 = vrcp.pop %v1154
  %v1156 = vmul.f32 %v1154, %v1155
  %v1157 = vsub.f32 1.0, %v1156
  %v1158 = vmul.f32 %v1155, %v1157
  %v1159 = vadd.f32 %v1155, %v1158
  %vm1160 = vweird.f32 %v1154
  %vm1161 = vweird.f32 %v1155
  %vm1162 = vmor %vm1160, %vm1161
  %v1163 = vsel %vm1162, %v1155, %v1159
  %v1164 = vand.u32 2147483647, %v1154
  %vm1165 = vcmp.eq.f32.partialorder %v1164, 8.507059e+37
  %v1166 = vand.u32 %v1154, 2147483648
  %v1167 = vor.u32 1.1754944e-38, %v1166
  %v1168 = vsel %vm1165, %v1167, %v1163
  %v1169 = vmul.f32 1.0, %v1168
  %v1170 = vtanh.pop %v1113
  %v1171 = vmul.f32 %v1169, %v1039
  %1173 = vrot.lane.b32.xlu0 %v1170, 32
  %v1174 = vpop.permute.xlu0 %1173
  %v1176 = vmul.f32 %v1169, %v1174
  %1178 = vrot.lane.b32.xlu0 %v1176, 32
  %v1179 = vpop.permute.xlu0 %1178
  %v1181 = vadd.f32 %v1171, %v1179
  %v1182 = vtanh.pop %v1181
  %1184 = vrot.lane.b32.xlu0 %v1182, 32
  %v1185 = vpop.permute.xlu0 %1184
  %v1187 = vmul.f32 %v1169, %v1185
  %1189 = vrot.lane.b32.xlu0 %v1150, 64
  %v1190 = vpop.permute.xlu0 %1189
  %1192 = vst.msk [vmem:[%s478] sm:$0xff] %vm69, %v1190
  %1194 = vrot.lane.b32.xlu0 %v1187, 96
  %v1195 = vpop.permute.xlu0 %1194
  %1197 = vst.msk [vmem:[%s472] sm:$0xff] %vm332, %v1195
  %v1198 = vld [vmem:[%s221] sm:$0xff]
  %v1199 = vld [vmem:[%s3] sm:$0xff]
  %v1200 = vld [vmem:[%s3 + $0x8] sm:$0xff]
  %v1201 = vld [vmem:[%s3 + $0x10] sm:$0xff]
  %v1202 = vld [vmem:[%s3 + $0x18] sm:$0xff]
  %v1203 = vsel %vm69, %v1190, 0
  %1205 = vmatpush.msra.mxu0 0.0
  %1206 = vmatpush.msra.mxu0 0.0
  %1207 = vmatpush.msra.mxu0 0.0
  %1208 = vmatpush.msra.mxu0 0.0
  %1209 = vmatpush.msra.mxu0 0.0
  %1210 = vmatpush.msra.mxu0 0.0
  %1211 = vmatpush.msra.mxu0 0.0
  %1212 = vmatpush.msra.mxu0 0.0
  %1213 = vmatpush.msra.mxu0 0.0
  %1214 = vmatpush.msra.mxu0 0.0
  %1215 = vmatpush.msra.mxu0 0.0
  %1216 = vmatpush.msra.mxu0 0.0
  %1217 = vmatpush.msra.mxu0 %v1202
  %1218 = vmatpush.msra.mxu0 %v1201
  %1219 = vmatpush.msra.mxu0 %v1200
  %1220 = vmatpush.msra.mxu0 %v1199
  %1221 = vmatmul.f32.gmra.mxu0 %v1203
  %v1222 = vpop.f32.mrf.mxu0
  %v1223 = vadd.f32 0.0, %v1222
  %1224 = vdwg.mxu0
  %v1225 = vadd.f32 %v1198, %v1223
  %v1226 = vld [vmem:[#allocation2 + $0x8] sm:$0xff]
  %v1227 = vld [vmem:[%s4] sm:$0xff]
  %v1228 = vld [vmem:[%s4 + $0x8] sm:$0xff]
  %v1229 = vld [vmem:[%s4 + $0x10] sm:$0xff]
  %v1230 = vld [vmem:[%s4 + $0x18] sm:$0xff]
  %1231 = vrot.lane.b32.xlu0 %v1187, 64
  %v1232 = vpop.permute.xlu0 %1231
  %v1233 = vsel %vm69, %v1232, 0
  %1235 = vmatpush.msra.mxu0 0.0
  %1236 = vmatpush.msra.mxu0 0.0
  %1237 = vmatpush.msra.mxu0 0.0
  %1238 = vmatpush.msra.mxu0 0.0
  %1239 = vmatpush.msra.mxu0 0.0
  %1240 = vmatpush.msra.mxu0 0.0
  %1241 = vmatpush.msra.mxu0 0.0
  %1242 = vmatpush.msra.mxu0 0.0
  %1243 = vmatpush.msra.mxu0 0.0
  %1244 = vmatpush.msra.mxu0 0.0
  %1245 = vmatpush.msra.mxu0 0.0
  %1246 = vmatpush.msra.mxu0 0.0
  %1247 = vmatpush.msra.mxu0 %v1230
  %1248 = vmatpush.msra.mxu0 %v1229
  %1249 = vmatpush.msra.mxu0 %v1228
  %1250 = vmatpush.msra.mxu0 %v1227
  %1251 = vmatmul.f32.gmra.mxu0 %v1233
  %v1252 = vpop.f32.mrf.mxu0
  %v1253 = vadd.f32 0.0, %v1252
  %1254 = vdwg.mxu0
  %v1255 = vadd.f32 %v1226, %v1253
  %v1256 = vxor.u32 %v1225, 2147483648
  %v1257 = vmul.f32 %v1256, 1.442695
  %v1258 = vpow.pop %v1257
  %v1259 = vadd.f32 %v1258, 1.0
  %v1260 = vrcp.pop %v1259
  %v1261 = vmul.f32 %v1259, %v1260
  %v1262 = vsub.f32 1.0, %v1261
  %v1263 = vmul.f32 %v1260, %v1262
  %v1264 = vadd.f32 %v1260, %v1263
  %vm1265 = vweird.f32 %v1259
  %vm1266 = vweird.f32 %v1260
  %vm1267 = vmor %vm1265, %vm1266
  %v1268 = vsel %vm1267, %v1260, %v1264
  %v1269 = vand.u32 2147483647, %v1259
  %vm1270 = vcmp.eq.f32.partialorder %v1269, 8.507059e+37
  %v1271 = vand.u32 %v1259, 2147483648
  %v1272 = vor.u32 1.1754944e-38, %v1271
  %v1273 = vsel %vm1270, %v1272, %v1268
  %v1274 = vmul.f32 1.0, %v1273
  %v1275 = vtanh.pop %v1225
  %v1276 = vmul.f32 %v1274, %v1144
  %1278 = vrot.lane.b32.xlu0 %v1275, 32
  %v1279 = vpop.permute.xlu0 %1278
  %v1281 = vmul.f32 %v1274, %v1279
  %1283 = vrot.lane.b32.xlu0 %v1281, 32
  %v1284 = vpop.permute.xlu0 %1283
  %v1286 = vadd.f32 %v1276, %v1284
  %v1287 = vtanh.pop %v1286
  %1289 = vrot.lane.b32.xlu0 %v1287, 32
  %v1290 = vpop.permute.xlu0 %1289
  %v1292 = vmul.f32 %v1274, %v1290
  %v1293 = vxor.u32 %v1255, 2147483648
  %v1294 = vmul.f32 %v1293, 1.442695
  %v1295 = vpow.pop %v1294
  %v1296 = vadd.f32 %v1295, 1.0
  %v1297 = vrcp.pop %v1296
  %v1298 = vmul.f32 %v1296, %v1297
  %v1299 = vsub.f32 1.0, %v1298
  %v1300 = vmul.f32 %v1297, %v1299
  %v1301 = vadd.f32 %v1297, %v1300
  %vm1302 = vweird.f32 %v1296
  %vm1303 = vweird.f32 %v1297
  %vm1304 = vmor %vm1302, %vm1303
  %v1305 = vsel %vm1304, %v1297, %v1301
  %v1306 = vand.u32 2147483647, %v1296
  %vm1307 = vcmp.eq.f32.partialorder %v1306, 8.507059e+37
  %v1308 = vand.u32 %v1296, 2147483648
  %v1309 = vor.u32 1.1754944e-38, %v1308
  %v1310 = vsel %vm1307, %v1309, %v1305
  %v1311 = vmul.f32 1.0, %v1310
  %v1312 = vtanh.pop %v1255
  %v1313 = vmul.f32 %v1311, %v1181
  %1315 = vrot.lane.b32.xlu0 %v1312, 32
  %v1316 = vpop.permute.xlu0 %1315
  %v1318 = vmul.f32 %v1311, %v1316
  %1320 = vrot.lane.b32.xlu0 %v1318, 32
  %v1321 = vpop.permute.xlu0 %1320
  %v1323 = vadd.f32 %v1313, %v1321
  %v1324 = vtanh.pop %v1323
  %1326 = vrot.lane.b32.xlu0 %v1324, 32
  %v1327 = vpop.permute.xlu0 %1326
  %v1329 = vmul.f32 %v1311, %v1327
  %1331 = vrot.lane.b32.xlu0 %v1292, 64
  %v1332 = vpop.permute.xlu0 %1331
  %1334 = vst.msk [vmem:[%s331] sm:$0xff] %vm69, %v1332
  %1336 = vrot.lane.b32.xlu0 %v1329, 96
  %v1337 = vpop.permute.xlu0 %1336
  %1339 = vst.msk [vmem:[#allocation3] sm:$0xff] %vm332, %v1337
  %v1340 = vld [vmem:[#allocation3] sm:$0xff]
  %v1341 = vld [vmem:[#allocation3 + $0x8] sm:$0xff]
  %v1342 = vld [vmem:[#allocation3 + $0x10] sm:$0xff]
  %v1343 = vld [vmem:[#allocation3 + $0x18] sm:$0xff]
  %v1344 = vld [vmem:[#allocation3 + $0x20] sm:$0xff]
  %v1345 = vld [vmem:[#allocation3 + $0x28] sm:$0xff]
  %v1346 = vld [vmem:[#allocation3 + $0x30] sm:$0xff]
  %v1347 = vld [vmem:[#allocation3 + $0x38] sm:$0xff]
  %v1348 = vld [vmem:[%s5] sm:$0xff]
  %v1349 = vld [vmem:[%s5 + $0x8] sm:$0xff]
  %v1350 = vld [vmem:[%s5 + $0x10] sm:$0xff]
  %v1351 = vld [vmem:[%s5 + $0x18] sm:$0xff]
  %v1352 = vld [vmem:[%s5 + $0x20] sm:$0xff]
  %v1353 = vld [vmem:[%s5 + $0x28] sm:$0xff]
  %v1354 = vld [vmem:[%s5 + $0x30] sm:$0xff]
  %v1355 = vld [vmem:[%s5 + $0x38] sm:$0xff]
  %v1356 = vld [vmem:[%s5 + $0x40] sm:$0xff]
  %v1357 = vld [vmem:[%s5 + $0x48] sm:$0xff]
  %v1358 = vld [vmem:[%s5 + $0x50] sm:$0xff]
  %v1359 = vld [vmem:[%s5 + $0x58] sm:$0xff]
  %v1360 = vld [vmem:[%s5 + $0x60] sm:$0xff]
  %v1361 = vld [vmem:[%s5 + $0x68] sm:$0xff]
  %v1362 = vld [vmem:[%s5 + $0x70] sm:$0xff]
  %v1363 = vld [vmem:[%s5 + $0x78] sm:$0xff]
  %v1364 = vld [vmem:[%s6] sm:$0x3]
  %v1366 = vperm.slane %v1364, 0
  %v1367 = vperm.slane %v1364, 1
  %vm1370 = vcmask 523264
  %v1372 = vsel %vm1370, %v1340, 0
  %v1375 = vsel %vm1370, %v1341, 0
  %v1378 = vsel %vm1370, %v1342, 0
  %v1381 = vsel %vm1370, %v1343, 0
  %v1384 = vsel %vm1370, %v1344, 0
  %v1387 = vsel %vm1370, %v1345, 0
  %v1390 = vsel %vm1370, %v1346, 0
  %v1393 = vsel %vm1370, %v1347, 0
  %1395 = vmatpush.msra.mxu0 0.0
  %1396 = vmatpush.msra.mxu0 0.0
  %1397 = vmatpush.msra.mxu0 0.0
  %1398 = vmatpush.msra.mxu0 0.0
  %1399 = vmatpush.msra.mxu0 0.0
  %1400 = vmatpush.msra.mxu0 0.0
  %1401 = vmatpush.msra.mxu0 0.0
  %1402 = vmatpush.msra.mxu0 0.0
  %1403 = vmatpush.msra.mxu0 %v1362
  %1404 = vmatpush.msra.mxu0 %v1360
  %1405 = vmatpush.msra.mxu0 %v1358
  %1406 = vmatpush.msra.mxu0 %v1356
  %1407 = vmatpush.msra.mxu0 %v1354
  %1408 = vmatpush.msra.mxu0 %v1352
  %1409 = vmatpush.msra.mxu0 %v1350
  %1410 = vmatpush.msra.mxu0 %v1348
  %1411 = vmatmul.f32.gmra.mxu0 %v1372
  %v1412 = vpop.f32.mrf.mxu0
  %v1413 = vadd.f32 %v1366, %v1412
  %1414 = vmatmul.f32.gmra.mxu0 %v1375
  %v1415 = vpop.f32.mrf.mxu0
  %v1416 = vadd.f32 %v1366, %v1415
  %1417 = vmatmul.f32.gmra.mxu0 %v1378
  %v1418 = vpop.f32.mrf.mxu0
  %v1419 = vadd.f32 %v1366, %v1418
  %1420 = vmatmul.f32.gmra.mxu0 %v1381
  %v1421 = vpop.f32.mrf.mxu0
  %v1422 = vadd.f32 %v1366, %v1421
  %1423 = vmatmul.f32.gmra.mxu0 %v1384
  %v1424 = vpop.f32.mrf.mxu0
  %v1425 = vadd.f32 %v1366, %v1424
  %1426 = vmatmul.f32.gmra.mxu0 %v1387
  %v1427 = vpop.f32.mrf.mxu0
  %v1428 = vadd.f32 %v1366, %v1427
  %1429 = vmatmul.f32.gmra.mxu0 %v1390
  %v1430 = vpop.f32.mrf.mxu0
  %v1431 = vadd.f32 %v1366, %v1430
  %1432 = vmatmul.f32.gmra.mxu0 %v1393
  %v1433 = vpop.f32.mrf.mxu0
  %v1434 = vadd.f32 %v1366, %v1433
  %1435 = vdwg.mxu0
  %1436 = vmatpush.msra.mxu0 0.0
  %1437 = vmatpush.msra.mxu0 0.0
  %1438 = vmatpush.msra.mxu0 0.0
  %1439 = vmatpush.msra.mxu0 0.0
  %1440 = vmatpush.msra.mxu0 0.0
  %1441 = vmatpush.msra.mxu0 0.0
  %1442 = vmatpush.msra.mxu0 0.0
  %1443 = vmatpush.msra.mxu0 0.0
  %1444 = vmatpush.msra.mxu0 %v1363
  %1445 = vmatpush.msra.mxu0 %v1361
  %1446 = vmatpush.msra.mxu0 %v1359
  %1447 = vmatpush.msra.mxu0 %v1357
  %1448 = vmatpush.msra.mxu0 %v1355
  %1449 = vmatpush.msra.mxu0 %v1353
  %1450 = vmatpush.msra.mxu0 %v1351
  %1451 = vmatpush.msra.mxu0 %v1349
  %1452 = vmatmul.f32.gmra.mxu0 %v1372
  %v1453 = vpop.f32.mrf.mxu0
  %v1454 = vadd.f32 %v1367, %v1453
  %1455 = vmatmul.f32.gmra.mxu0 %v1375
  %v1456 = vpop.f32.mrf.mxu0
  %v1457 = vadd.f32 %v1367, %v1456
  %1458 = vmatmul.f32.gmra.mxu0 %v1378
  %v1459 = vpop.f32.mrf.mxu0
  %v1460 = vadd.f32 %v1367, %v1459
  %1461 = vmatmul.f32.gmra.mxu0 %v1381
  %v1462 = vpop.f32.mrf.mxu0
  %v1463 = vadd.f32 %v1367, %v1462
  %1464 = vmatmul.f32.gmra.mxu0 %v1384
  %v1465 = vpop.f32.mrf.mxu0
  %v1466 = vadd.f32 %v1367, %v1465
  %1467 = vmatmul.f32.gmra.mxu0 %v1387
  %v1468 = vpop.f32.mrf.mxu0
  %v1469 = vadd.f32 %v1367, %v1468
  %1470 = vmatmul.f32.gmra.mxu0 %v1390
  %v1471 = vpop.f32.mrf.mxu0
  %v1472 = vadd.f32 %v1367, %v1471
  %1473 = vmatmul.f32.gmra.mxu0 %v1393
  %v1474 = vpop.f32.mrf.mxu0
  %v1475 = vadd.f32 %v1367, %v1474
  %1476 = vdwg.mxu0
  %1477 = vst [vmem:[#allocation2] sm:$0xff] %v1413
  %1478 = vst [vmem:[#allocation2 + $0x8] sm:$0xff] %v1454
  %1479 = vst [vmem:[#allocation2 + $0x10] sm:$0xff] %v1416
  %1480 = vst [vmem:[#allocation2 + $0x18] sm:$0xff] %v1457
  %1481 = vst [vmem:[#allocation2 + $0x20] sm:$0xff] %v1419
  %1482 = vst [vmem:[#allocation2 + $0x28] sm:$0xff] %v1460
  %1483 = vst [vmem:[#allocation2 + $0x30] sm:$0xff] %v1422
  %1484 = vst [vmem:[#allocation2 + $0x38] sm:$0xff] %v1463
  %1485 = vst [vmem:[#allocation2 + $0x40] sm:$0xff] %v1425
  %1486 = vst [vmem:[#allocation2 + $0x48] sm:$0xff] %v1466
  %1487 = vst [vmem:[#allocation2 + $0x50] sm:$0xff] %v1428
  %1488 = vst [vmem:[#allocation2 + $0x58] sm:$0xff] %v1469
  %1489 = vst [vmem:[#allocation2 + $0x60] sm:$0xff] %v1431
  %1490 = vst [vmem:[#allocation2 + $0x68] sm:$0xff] %v1472
  %1491 = vst [vmem:[#allocation2 + $0x70] sm:$0xff] %v1434
  %1492 = vst [vmem:[#allocation2 + $0x78] sm:$0xff] %v1475
  %v1493 = vld [vmem:[#allocation2] sm:$0xff]
  %v1494 = vld [vmem:[%s7] sm:$0xff]
  %v1495 = vld [vmem:[%s7 + $0x8] sm:$0xff]
  %v1496 = vld [vmem:[%s7 + $0x10] sm:$0xff]
  %v1497 = vld [vmem:[%s7 + $0x18] sm:$0xff]
  %1498 = vmatpush.msra.mxu0 0.0
  %1499 = vmatpush.msra.mxu0 0.0
  %1500 = vmatpush.msra.mxu0 0.0
  %1501 = vmatpush.msra.mxu0 0.0
  %1502 = vmatpush.msra.mxu0 0.0
  %1503 = vmatpush.msra.mxu0 0.0
  %1504 = vmatpush.msra.mxu0 0.0
  %1505 = vmatpush.msra.mxu0 0.0
  %1506 = vmatpush.msra.mxu0 0.0
  %1507 = vmatpush.msra.mxu0 0.0
  %1508 = vmatpush.msra.mxu0 0.0
  %1509 = vmatpush.msra.mxu0 0.0
  %1510 = vmatpush.msra.mxu0 %v1497
  %1511 = vmatpush.msra.mxu0 %v1496
  %1512 = vmatpush.msra.mxu0 %v1495
  %1513 = vmatpush.msra.mxu0 %v1494
  %1514 = vmatmul.f32.gmra.mxu0 %v198
  %v1515 = vpop.f32.mrf.mxu0
  %v1516 = vadd.f32 0.0, %v1515
  %1517 = vdwg.mxu0
  %v1518 = vadd.f32 %v1493, %v1516
  %v1519 = vld [vmem:[%s221 + $0x8] sm:$0xff]
  %v1520 = vld [vmem:[%s8] sm:$0xff]
  %v1521 = vld [vmem:[%s8 + $0x8] sm:$0xff]
  %v1522 = vld [vmem:[%s8 + $0x10] sm:$0xff]
  %v1523 = vld [vmem:[%s8 + $0x18] sm:$0xff]
  %1524 = vmatpush.msra.mxu0 0.0
  %1525 = vmatpush.msra.mxu0 0.0
  %1526 = vmatpush.msra.mxu0 0.0
  %1527 = vmatpush.msra.mxu0 0.0
  %1528 = vmatpush.msra.mxu0 0.0
  %1529 = vmatpush.msra.mxu0 0.0
  %1530 = vmatpush.msra.mxu0 0.0
  %1531 = vmatpush.msra.mxu0 0.0
  %1532 = vmatpush.msra.mxu0 0.0
  %1533 = vmatpush.msra.mxu0 0.0
  %1534 = vmatpush.msra.mxu0 0.0
  %1535 = vmatpush.msra.mxu0 0.0
  %1536 = vmatpush.msra.mxu0 %v1523
  %1537 = vmatpush.msra.mxu0 %v1522
  %1538 = vmatpush.msra.mxu0 %v1521
  %1539 = vmatpush.msra.mxu0 %v1520
  %1540 = vmatmul.f32.gmra.mxu0 %v198
  %v1541 = vpop.f32.mrf.mxu0
  %v1542 = vadd.f32 0.0, %v1541
  %1543 = vdwg.mxu0
  %v1544 = vadd.f32 %v1519, %v1542
  %v1545 = vxor.u32 %v1518, 2147483648
  %v1546 = vmul.f32 %v1545, 1.442695
  %v1547 = vpow.pop %v1546
  %v1548 = vadd.f32 %v1547, 1.0
  %v1549 = vrcp.pop %v1548
  %v1550 = vmul.f32 %v1548, %v1549
  %v1551 = vsub.f32 1.0, %v1550
  %v1552 = vmul.f32 %v1549, %v1551
  %v1553 = vadd.f32 %v1549, %v1552
  %vm1554 = vweird.f32 %v1548
  %vm1555 = vweird.f32 %v1549
  %vm1556 = vmor %vm1554, %vm1555
  %v1557 = vsel %vm1556, %v1549, %v1553
  %v1558 = vand.u32 2147483647, %v1548
  %vm1559 = vcmp.eq.f32.partialorder %v1558, 8.507059e+37
  %v1560 = vand.u32 %v1548, 2147483648
  %v1561 = vor.u32 1.1754944e-38, %v1560
  %v1562 = vsel %vm1559, %v1561, %v1557
  %v1563 = vmul.f32 1.0, %v1562
  %v1564 = vtanh.pop %v1518
  %v1565 = vmul.f32 %v1563, 0.0
  %1567 = vrot.lane.b32.xlu0 %v1564, 32
  %v1568 = vpop.permute.xlu0 %1567
  %v1570 = vmul.f32 %v1563, %v1568
  %1572 = vrot.lane.b32.xlu0 %v1570, 32
  %v1573 = vpop.permute.xlu0 %1572
  %v1575 = vadd.f32 %v1565, %v1573
  %v1576 = vtanh.pop %v1575
  %1578 = vrot.lane.b32.xlu0 %v1576, 32
  %v1579 = vpop.permute.xlu0 %1578
  %v1581 = vmul.f32 %v1563, %v1579
  %v1582 = vxor.u32 %v1544, 2147483648
  %v1583 = vmul.f32 %v1582, 1.442695
  %v1584 = vpow.pop %v1583
  %v1585 = vadd.f32 %v1584, 1.0
  %v1586 = vrcp.pop %v1585
  %v1587 = vmul.f32 %v1585, %v1586
  %v1588 = vsub.f32 1.0, %v1587
  %v1589 = vmul.f32 %v1586, %v1588
  %v1590 = vadd.f32 %v1586, %v1589
  %vm1591 = vweird.f32 %v1585
  %vm1592 = vweird.f32 %v1586
  %vm1593 = vmor %vm1591, %vm1592
  %v1594 = vsel %vm1593, %v1586, %v1590
  %v1595 = vand.u32 2147483647, %v1585
  %vm1596 = vcmp.eq.f32.partialorder %v1595, 8.507059e+37
  %v1597 = vand.u32 %v1585, 2147483648
  %v1598 = vor.u32 1.1754944e-38, %v1597
  %v1599 = vsel %vm1596, %v1598, %v1594
  %v1600 = vmul.f32 1.0, %v1599
  %v1601 = vtanh.pop %v1544
  %v1602 = vmul.f32 %v1600, 0.0
  %1604 = vrot.lane.b32.xlu0 %v1601, 32
  %v1605 = vpop.permute.xlu0 %1604
  %v1607 = vmul.f32 %v1600, %v1605
  %1609 = vrot.lane.b32.xlu0 %v1607, 32
  %v1610 = vpop.permute.xlu0 %1609
  %v1612 = vadd.f32 %v1602, %v1610
  %v1613 = vtanh.pop %v1612
  %1615 = vrot.lane.b32.xlu0 %v1613, 32
  %v1616 = vpop.permute.xlu0 %1615
  %v1618 = vmul.f32 %v1600, %v1616
  %1620 = vrot.lane.b32.xlu0 %v1581, 64
  %v1621 = vpop.permute.xlu0 %1620
  %1623 = vst.msk [vmem:[#allocation4] sm:$0xff] %vm69, %v1621
  %1625 = vrot.lane.b32.xlu0 %v1618, 96
  %v1626 = vpop.permute.xlu0 %1625
  %s1628 = scalar_lea.vmem [#allocation4], 56
  %1629 = vst.msk [vmem:[%s1628] sm:$0xff] %vm332, %v1626
  %v1630 = vld [vmem:[%s334] sm:$0xff]
  %v1631 = vld [vmem:[%s7] sm:$0xff]
  %v1632 = vld [vmem:[%s7 + $0x8] sm:$0xff]
  %v1633 = vld [vmem:[%s7 + $0x10] sm:$0xff]
  %v1634 = vld [vmem:[%s7 + $0x18] sm:$0xff]
  %v1635 = vsel %vm69, %v1621, 0
  %1637 = vmatpush.msra.mxu0 0.0
  %1638 = vmatpush.msra.mxu0 0.0
  %1639 = vmatpush.msra.mxu0 0.0
  %1640 = vmatpush.msra.mxu0 0.0
  %1641 = vmatpush.msra.mxu0 0.0
  %1642 = vmatpush.msra.mxu0 0.0
  %1643 = vmatpush.msra.mxu0 0.0
  %1644 = vmatpush.msra.mxu0 0.0
  %1645 = vmatpush.msra.mxu0 0.0
  %1646 = vmatpush.msra.mxu0 0.0
  %1647 = vmatpush.msra.mxu0 0.0
  %1648 = vmatpush.msra.mxu0 0.0
  %1649 = vmatpush.msra.mxu0 %v1634
  %1650 = vmatpush.msra.mxu0 %v1633
  %1651 = vmatpush.msra.mxu0 %v1632
  %1652 = vmatpush.msra.mxu0 %v1631
  %1653 = vmatmul.f32.gmra.mxu0 %v1635
  %v1654 = vpop.f32.mrf.mxu0
  %v1655 = vadd.f32 0.0, %v1654
  %1656 = vdwg.mxu0
  %v1657 = vadd.f32 %v1630, %v1655
  %v1658 = vld [vmem:[%s363 + $0x8] sm:$0xff]
  %v1659 = vld [vmem:[%s8] sm:$0xff]
  %v1660 = vld [vmem:[%s8 + $0x8] sm:$0xff]
  %v1661 = vld [vmem:[%s8 + $0x10] sm:$0xff]
  %v1662 = vld [vmem:[%s8 + $0x18] sm:$0xff]
  %1663 = vrot.lane.b32.xlu0 %v1618, 64
  %v1664 = vpop.permute.xlu0 %1663
  %v1665 = vsel %vm69, %v1664, 0
  %1667 = vmatpush.msra.mxu0 0.0
  %1668 = vmatpush.msra.mxu0 0.0
  %1669 = vmatpush.msra.mxu0 0.0
  %1670 = vmatpush.msra.mxu0 0.0
  %1671 = vmatpush.msra.mxu0 0.0
  %1672 = vmatpush.msra.mxu0 0.0
  %1673 = vmatpush.msra.mxu0 0.0
  %1674 = vmatpush.msra.mxu0 0.0
  %1675 = vmatpush.msra.mxu0 0.0
  %1676 = vmatpush.msra.mxu0 0.0
  %1677 = vmatpush.msra.mxu0 0.0
  %1678 = vmatpush.msra.mxu0 0.0
  %1679 = vmatpush.msra.mxu0 %v1662
  %1680 = vmatpush.msra.mxu0 %v1661
  %1681 = vmatpush.msra.mxu0 %v1660
  %1682 = vmatpush.msra.mxu0 %v1659
  %1683 = vmatmul.f32.gmra.mxu0 %v1665
  %v1684 = vpop.f32.mrf.mxu0
  %v1685 = vadd.f32 0.0, %v1684
  %1686 = vdwg.mxu0
  %v1687 = vadd.f32 %v1658, %v1685
  %v1688 = vxor.u32 %v1657, 2147483648
  %v1689 = vmul.f32 %v1688, 1.442695
  %v1690 = vpow.pop %v1689
  %v1691 = vadd.f32 %v1690, 1.0
  %v1692 = vrcp.pop %v1691
  %v1693 = vmul.f32 %v1691, %v1692
  %v1694 = vsub.f32 1.0, %v1693
  %v1695 = vmul.f32 %v1692, %v1694
  %v1696 = vadd.f32 %v1692, %v1695
  %vm1697 = vweird.f32 %v1691
  %vm1698 = vweird.f32 %v1692
  %vm1699 = vmor %vm1697, %vm1698
  %v1700 = vsel %vm1699, %v1692, %v1696
  %v1701 = vand.u32 2147483647, %v1691
  %vm1702 = vcmp.eq.f32.partialorder %v1701, 8.507059e+37
  %v1703 = vand.u32 %v1691, 2147483648
  %v1704 = vor.u32 1.1754944e-38, %v1703
  %v1705 = vsel %vm1702, %v1704, %v1700
  %v1706 = vmul.f32 1.0, %v1705
  %v1707 = vtanh.pop %v1657
  %v1708 = vmul.f32 %v1706, %v1575
  %1710 = vrot.lane.b32.xlu0 %v1707, 32
  %v1711 = vpop.permute.xlu0 %1710
  %v1713 = vmul.f32 %v1706, %v1711
  %1715 = vrot.lane.b32.xlu0 %v1713, 32
  %v1716 = vpop.permute.xlu0 %1715
  %v1718 = vadd.f32 %v1708, %v1716
  %v1719 = vtanh.pop %v1718
  %1721 = vrot.lane.b32.xlu0 %v1719, 32
  %v1722 = vpop.permute.xlu0 %1721
  %v1724 = vmul.f32 %v1706, %v1722
  %v1725 = vxor.u32 %v1687, 2147483648
  %v1726 = vmul.f32 %v1725, 1.442695
  %v1727 = vpow.pop %v1726
  %v1728 = vadd.f32 %v1727, 1.0
  %v1729 = vrcp.pop %v1728
  %v1730 = vmul.f32 %v1728, %v1729
  %v1731 = vsub.f32 1.0, %v1730
  %v1732 = vmul.f32 %v1729, %v1731
  %v1733 = vadd.f32 %v1729, %v1732
  %vm1734 = vweird.f32 %v1728
  %vm1735 = vweird.f32 %v1729
  %vm1736 = vmor %vm1734, %vm1735
  %v1737 = vsel %vm1736, %v1729, %v1733
  %v1738 = vand.u32 2147483647, %v1728
  %vm1739 = vcmp.eq.f32.partialorder %v1738, 8.507059e+37
  %v1740 = vand.u32 %v1728, 2147483648
  %v1741 = vor.u32 1.1754944e-38, %v1740
  %v1742 = vsel %vm1739, %v1741, %v1737
  %v1743 = vmul.f32 1.0, %v1742
  %v1744 = vtanh.pop %v1687
  %v1745 = vmul.f32 %v1743, %v1612
  %1747 = vrot.lane.b32.xlu0 %v1744, 32
  %v1748 = vpop.permute.xlu0 %1747
  %v1750 = vmul.f32 %v1743, %v1748
  %1752 = vrot.lane.b32.xlu0 %v1750, 32
  %v1753 = vpop.permute.xlu0 %1752
  %v1755 = vadd.f32 %v1745, %v1753
  %v1756 = vtanh.pop %v1755
  %1758 = vrot.lane.b32.xlu0 %v1756, 32
  %v1759 = vpop.permute.xlu0 %1758
  %v1761 = vmul.f32 %v1743, %v1759
  %1763 = vrot.lane.b32.xlu0 %v1724, 64
  %v1764 = vpop.permute.xlu0 %1763
  %s1766 = scalar_lea.vmem [#allocation4], 8
  %1767 = vst.msk [vmem:[%s1766] sm:$0xff] %vm69, %v1764
  %1769 = vrot.lane.b32.xlu0 %v1761, 96
  %v1770 = vpop.permute.xlu0 %1769
  %s1772 = scalar_lea.vmem [#allocation4], 48
  %1773 = vst.msk [vmem:[%s1772] sm:$0xff] %vm332, %v1770
  %v1774 = vld [vmem:[%s480] sm:$0xff]
  %v1775 = vld [vmem:[%s7] sm:$0xff]
  %v1776 = vld [vmem:[%s7 + $0x8] sm:$0xff]
  %v1777 = vld [vmem:[%s7 + $0x10] sm:$0xff]
  %v1778 = vld [vmem:[%s7 + $0x18] sm:$0xff]
  %v1779 = vsel %vm69, %v1764, 0
  %1781 = vmatpush.msra.mxu0 0.0
  %1782 = vmatpush.msra.mxu0 0.0
  %1783 = vmatpush.msra.mxu0 0.0
  %1784 = vmatpush.msra.mxu0 0.0
  %1785 = vmatpush.msra.mxu0 0.0
  %1786 = vmatpush.msra.mxu0 0.0
  %1787 = vmatpush.msra.mxu0 0.0
  %1788 = vmatpush.msra.mxu0 0.0
  %1789 = vmatpush.msra.mxu0 0.0
  %1790 = vmatpush.msra.mxu0 0.0
  %1791 = vmatpush.msra.mxu0 0.0
  %1792 = vmatpush.msra.mxu0 0.0
  %1793 = vmatpush.msra.mxu0 %v1778
  %1794 = vmatpush.msra.mxu0 %v1777
  %1795 = vmatpush.msra.mxu0 %v1776
  %1796 = vmatpush.msra.mxu0 %v1775
  %1797 = vmatmul.f32.gmra.mxu0 %v1779
  %v1798 = vpop.f32.mrf.mxu0
  %v1799 = vadd.f32 0.0, %v1798
  %1800 = vdwg.mxu0
  %v1801 = vadd.f32 %v1774, %v1799
  %v1802 = vld [vmem:[%s509 + $0x8] sm:$0xff]
  %v1803 = vld [vmem:[%s8] sm:$0xff]
  %v1804 = vld [vmem:[%s8 + $0x8] sm:$0xff]
  %v1805 = vld [vmem:[%s8 + $0x10] sm:$0xff]
  %v1806 = vld [vmem:[%s8 + $0x18] sm:$0xff]
  %1807 = vrot.lane.b32.xlu0 %v1761, 64
  %v1808 = vpop.permute.xlu0 %1807
  %v1809 = vsel %vm69, %v1808, 0
  %1811 = vmatpush.msra.mxu0 0.0
  %1812 = vmatpush.msra.mxu0 0.0
  %1813 = vmatpush.msra.mxu0 0.0
  %1814 = vmatpush.msra.mxu0 0.0
  %1815 = vmatpush.msra.mxu0 0.0
  %1816 = vmatpush.msra.mxu0 0.0
  %1817 = vmatpush.msra.mxu0 0.0
  %1818 = vmatpush.msra.mxu0 0.0
  %1819 = vmatpush.msra.mxu0 0.0
  %1820 = vmatpush.msra.mxu0 0.0
  %1821 = vmatpush.msra.mxu0 0.0
  %1822 = vmatpush.msra.mxu0 0.0
  %1823 = vmatpush.msra.mxu0 %v1806
  %1824 = vmatpush.msra.mxu0 %v1805
  %1825 = vmatpush.msra.mxu0 %v1804
  %1826 = vmatpush.msra.mxu0 %v1803
  %1827 = vmatmul.f32.gmra.mxu0 %v1809
  %v1828 = vpop.f32.mrf.mxu0
  %v1829 = vadd.f32 0.0, %v1828
  %1830 = vdwg.mxu0
  %v1831 = vadd.f32 %v1802, %v1829
  %v1832 = vxor.u32 %v1801, 2147483648
  %v1833 = vmul.f32 %v1832, 1.442695
  %v1834 = vpow.pop %v1833
  %v1835 = vadd.f32 %v1834, 1.0
  %v1836 = vrcp.pop %v1835
  %v1837 = vmul.f32 %v1835, %v1836
  %v1838 = vsub.f32 1.0, %v1837
  %v1839 = vmul.f32 %v1836, %v1838
  %v1840 = vadd.f32 %v1836, %v1839
  %vm1841 = vweird.f32 %v1835
  %vm1842 = vweird.f32 %v1836
  %vm1843 = vmor %vm1841, %vm1842
  %v1844 = vsel %vm1843, %v1836, %v1840
  %v1845 = vand.u32 2147483647, %v1835
  %vm1846 = vcmp.eq.f32.partialorder %v1845, 8.507059e+37
  %v1847 = vand.u32 %v1835, 2147483648
  %v1848 = vor.u32 1.1754944e-38, %v1847
  %v1849 = vsel %vm1846, %v1848, %v1844
  %v1850 = vmul.f32 1.0, %v1849
  %v1851 = vtanh.pop %v1801
  %v1852 = vmul.f32 %v1850, %v1718
  %1854 = vrot.lane.b32.xlu0 %v1851, 32
  %v1855 = vpop.permute.xlu0 %1854
  %v1857 = vmul.f32 %v1850, %v1855
  %1859 = vrot.lane.b32.xlu0 %v1857, 32
  %v1860 = vpop.permute.xlu0 %1859
  %v1862 = vadd.f32 %v1852, %v1860
  %v1863 = vtanh.pop %v1862
  %1865 = vrot.lane.b32.xlu0 %v1863, 32
  %v1866 = vpop.permute.xlu0 %1865
  %v1868 = vmul.f32 %v1850, %v1866
  %v1869 = vxor.u32 %v1831, 2147483648
  %v1870 = vmul.f32 %v1869, 1.442695
  %v1871 = vpow.pop %v1870
  %v1872 = vadd.f32 %v1871, 1.0
  %v1873 = vrcp.pop %v1872
  %v1874 = vmul.f32 %v1872, %v1873
  %v1875 = vsub.f32 1.0, %v1874
  %v1876 = vmul.f32 %v1873, %v1875
  %v1877 = vadd.f32 %v1873, %v1876
  %vm1878 = vweird.f32 %v1872
  %vm1879 = vweird.f32 %v1873
  %vm1880 = vmor %vm1878, %vm1879
  %v1881 = vsel %vm1880, %v1873, %v1877
  %v1882 = vand.u32 2147483647, %v1872
  %vm1883 = vcmp.eq.f32.partialorder %v1882, 8.507059e+37
  %v1884 = vand.u32 %v1872, 2147483648
  %v1885 = vor.u32 1.1754944e-38, %v1884
  %v1886 = vsel %vm1883, %v1885, %v1881
  %v1887 = vmul.f32 1.0, %v1886
  %v1888 = vtanh.pop %v1831
  %v1889 = vmul.f32 %v1887, %v1755
  %1891 = vrot.lane.b32.xlu0 %v1888, 32
  %v1892 = vpop.permute.xlu0 %1891
  %v1894 = vmul.f32 %v1887, %v1892
  %1896 = vrot.lane.b32.xlu0 %v1894, 32
  %v1897 = vpop.permute.xlu0 %1896
  %v1899 = vadd.f32 %v1889, %v1897
  %v1900 = vtanh.pop %v1899
  %1902 = vrot.lane.b32.xlu0 %v1900, 32
  %v1903 = vpop.permute.xlu0 %1902
  %v1905 = vmul.f32 %v1887, %v1903
  %1907 = vrot.lane.b32.xlu0 %v1868, 64
  %v1908 = vpop.permute.xlu0 %1907
  %s1910 = scalar_lea.vmem [#allocation4], 16
  %1911 = vst.msk [vmem:[%s1910] sm:$0xff] %vm69, %v1908
  %1913 = vrot.lane.b32.xlu0 %v1905, 96
  %v1914 = vpop.permute.xlu0 %1913
  %s1916 = scalar_lea.vmem [#allocation4], 40
  %1917 = vst.msk [vmem:[%s1916] sm:$0xff] %vm332, %v1914
  %v1918 = vld [vmem:[%s626] sm:$0xff]
  %v1919 = vld [vmem:[%s7] sm:$0xff]
  %v1920 = vld [vmem:[%s7 + $0x8] sm:$0xff]
  %v1921 = vld [vmem:[%s7 + $0x10] sm:$0xff]
  %v1922 = vld [vmem:[%s7 + $0x18] sm:$0xff]
  %v1923 = vsel %vm69, %v1908, 0
  %1925 = vmatpush.msra.mxu0 0.0
  %1926 = vmatpush.msra.mxu0 0.0
  %1927 = vmatpush.msra.mxu0 0.0
  %1928 = vmatpush.msra.mxu0 0.0
  %1929 = vmatpush.msra.mxu0 0.0
  %1930 = vmatpush.msra.mxu0 0.0
  %1931 = vmatpush.msra.mxu0 0.0
  %1932 = vmatpush.msra.mxu0 0.0
  %1933 = vmatpush.msra.mxu0 0.0
  %1934 = vmatpush.msra.mxu0 0.0
  %1935 = vmatpush.msra.mxu0 0.0
  %1936 = vmatpush.msra.mxu0 0.0
  %1937 = vmatpush.msra.mxu0 %v1922
  %1938 = vmatpush.msra.mxu0 %v1921
  %1939 = vmatpush.msra.mxu0 %v1920
  %1940 = vmatpush.msra.mxu0 %v1919
  %1941 = vmatmul.f32.gmra.mxu0 %v1923
  %v1942 = vpop.f32.mrf.mxu0
  %v1943 = vadd.f32 0.0, %v1942
  %1944 = vdwg.mxu0
  %v1945 = vadd.f32 %v1918, %v1943
  %v1946 = vld [vmem:[%s655 + $0x8] sm:$0xff]
  %v1947 = vld [vmem:[%s8] sm:$0xff]
  %v1948 = vld [vmem:[%s8 + $0x8] sm:$0xff]
  %v1949 = vld [vmem:[%s8 + $0x10] sm:$0xff]
  %v1950 = vld [vmem:[%s8 + $0x18] sm:$0xff]
  %1951 = vrot.lane.b32.xlu0 %v1905, 64
  %v1952 = vpop.permute.xlu0 %1951
  %v1953 = vsel %vm69, %v1952, 0
  %1955 = vmatpush.msra.mxu0 0.0
  %1956 = vmatpush.msra.mxu0 0.0
  %1957 = vmatpush.msra.mxu0 0.0
  %1958 = vmatpush.msra.mxu0 0.0
  %1959 = vmatpush.msra.mxu0 0.0
  %1960 = vmatpush.msra.mxu0 0.0
  %1961 = vmatpush.msra.mxu0 0.0
  %1962 = vmatpush.msra.mxu0 0.0
  %1963 = vmatpush.msra.mxu0 0.0
  %1964 = vmatpush.msra.mxu0 0.0
  %1965 = vmatpush.msra.mxu0 0.0
  %1966 = vmatpush.msra.mxu0 0.0
  %1967 = vmatpush.msra.mxu0 %v1950
  %1968 = vmatpush.msra.mxu0 %v1949
  %1969 = vmatpush.msra.mxu0 %v1948
  %1970 = vmatpush.msra.mxu0 %v1947
  %1971 = vmatmul.f32.gmra.mxu0 %v1953
  %v1972 = vpop.f32.mrf.mxu0
  %v1973 = vadd.f32 0.0, %v1972
  %1974 = vdwg.mxu0
  %v1975 = vadd.f32 %v1946, %v1973
  %v1976 = vxor.u32 %v1945, 2147483648
  %v1977 = vmul.f32 %v1976, 1.442695
  %v1978 = vpow.pop %v1977
  %v1979 = vadd.f32 %v1978, 1.0
  %v1980 = vrcp.pop %v1979
  %v1981 = vmul.f32 %v1979, %v1980
  %v1982 = vsub.f32 1.0, %v1981
  %v1983 = vmul.f32 %v1980, %v1982
  %v1984 = vadd.f32 %v1980, %v1983
  %vm1985 = vweird.f32 %v1979
  %vm1986 = vweird.f32 %v1980
  %vm1987 = vmor %vm1985, %vm1986
  %v1988 = vsel %vm1987, %v1980, %v1984
  %v1989 = vand.u32 2147483647, %v1979
  %vm1990 = vcmp.eq.f32.partialorder %v1989, 8.507059e+37
  %v1991 = vand.u32 %v1979, 2147483648
  %v1992 = vor.u32 1.1754944e-38, %v1991
  %v1993 = vsel %vm1990, %v1992, %v1988
  %v1994 = vmul.f32 1.0, %v1993
  %v1995 = vtanh.pop %v1945
  %v1996 = vmul.f32 %v1994, %v1862
  %1998 = vrot.lane.b32.xlu0 %v1995, 32
  %v1999 = vpop.permute.xlu0 %1998
  %v2001 = vmul.f32 %v1994, %v1999
  %2003 = vrot.lane.b32.xlu0 %v2001, 32
  %v2004 = vpop.permute.xlu0 %2003
  %v2006 = vadd.f32 %v1996, %v2004
  %v2007 = vtanh.pop %v2006
  %2009 = vrot.lane.b32.xlu0 %v2007, 32
  %v2010 = vpop.permute.xlu0 %2009
  %v2012 = vmul.f32 %v1994, %v2010
  %v2013 = vxor.u32 %v1975, 2147483648
  %v2014 = vmul.f32 %v2013, 1.442695
  %v2015 = vpow.pop %v2014
  %v2016 = vadd.f32 %v2015, 1.0
  %v2017 = vrcp.pop %v2016
  %v2018 = vmul.f32 %v2016, %v2017
  %v2019 = vsub.f32 1.0, %v2018
  %v2020 = vmul.f32 %v2017, %v2019
  %v2021 = vadd.f32 %v2017, %v2020
  %vm2022 = vweird.f32 %v2016
  %vm2023 = vweird.f32 %v2017
  %vm2024 = vmor %vm2022, %vm2023
  %v2025 = vsel %vm2024, %v2017, %v2021
  %v2026 = vand.u32 2147483647, %v2016
  %vm2027 = vcmp.eq.f32.partialorder %v2026, 8.507059e+37
  %v2028 = vand.u32 %v2016, 2147483648
  %v2029 = vor.u32 1.1754944e-38, %v2028
  %v2030 = vsel %vm2027, %v2029, %v2025
  %v2031 = vmul.f32 1.0, %v2030
  %v2032 = vtanh.pop %v1975
  %v2033 = vmul.f32 %v2031, %v1899
  %2035 = vrot.lane.b32.xlu0 %v2032, 32
  %v2036 = vpop.permute.xlu0 %2035
  %v2038 = vmul.f32 %v2031, %v2036
  %2040 = vrot.lane.b32.xlu0 %v2038, 32
  %v2041 = vpop.permute.xlu0 %2040
  %v2043 = vadd.f32 %v2033, %v2041
  %v2044 = vtanh.pop %v2043
  %2046 = vrot.lane.b32.xlu0 %v2044, 32
  %v2047 = vpop.permute.xlu0 %2046
  %v2049 = vmul.f32 %v2031, %v2047
  %2051 = vrot.lane.b32.xlu0 %v2012, 64
  %v2052 = vpop.permute.xlu0 %2051
  %s2054 = scalar_lea.vmem [#allocation4], 24
  %2055 = vst.msk [vmem:[%s2054] sm:$0xff] %vm69, %v2052
  %2057 = vrot.lane.b32.xlu0 %v2049, 96
  %v2058 = vpop.permute.xlu0 %2057
  %s2060 = scalar_lea.vmem [#allocation4], 32
  %2061 = vst.msk [vmem:[%s2060] sm:$0xff] %vm332, %v2058
  %v2062 = vld [vmem:[%s655] sm:$0xff]
  %v2063 = vld [vmem:[%s7] sm:$0xff]
  %v2064 = vld [vmem:[%s7 + $0x8] sm:$0xff]
  %v2065 = vld [vmem:[%s7 + $0x10] sm:$0xff]
  %v2066 = vld [vmem:[%s7 + $0x18] sm:$0xff]
  %v2067 = vsel %vm69, %v2052, 0
  %2069 = vmatpush.msra.mxu0 0.0
  %2070 = vmatpush.msra.mxu0 0.0
  %2071 = vmatpush.msra.mxu0 0.0
  %2072 = vmatpush.msra.mxu0 0.0
  %2073 = vmatpush.msra.mxu0 0.0
  %2074 = vmatpush.msra.mxu0 0.0
  %2075 = vmatpush.msra.mxu0 0.0
  %2076 = vmatpush.msra.mxu0 0.0
  %2077 = vmatpush.msra.mxu0 0.0
  %2078 = vmatpush.msra.mxu0 0.0
  %2079 = vmatpush.msra.mxu0 0.0
  %2080 = vmatpush.msra.mxu0 0.0
  %2081 = vmatpush.msra.mxu0 %v2066
  %2082 = vmatpush.msra.mxu0 %v2065
  %2083 = vmatpush.msra.mxu0 %v2064
  %2084 = vmatpush.msra.mxu0 %v2063
  %2085 = vmatmul.f32.gmra.mxu0 %v2067
  %v2086 = vpop.f32.mrf.mxu0
  %v2087 = vadd.f32 0.0, %v2086
  %2088 = vdwg.mxu0
  %v2089 = vadd.f32 %v2062, %v2087
  %v2090 = vld [vmem:[%s626 + $0x8] sm:$0xff]
  %v2091 = vld [vmem:[%s8] sm:$0xff]
  %v2092 = vld [vmem:[%s8 + $0x8] sm:$0xff]
  %v2093 = vld [vmem:[%s8 + $0x10] sm:$0xff]
  %v2094 = vld [vmem:[%s8 + $0x18] sm:$0xff]
  %2095 = vrot.lane.b32.xlu0 %v2049, 64
  %v2096 = vpop.permute.xlu0 %2095
  %v2097 = vsel %vm69, %v2096, 0
  %2099 = vmatpush.msra.mxu0 0.0
  %2100 = vmatpush.msra.mxu0 0.0
  %2101 = vmatpush.msra.mxu0 0.0
  %2102 = vmatpush.msra.mxu0 0.0
  %2103 = vmatpush.msra.mxu0 0.0
  %2104 = vmatpush.msra.mxu0 0.0
  %2105 = vmatpush.msra.mxu0 0.0
  %2106 = vmatpush.msra.mxu0 0.0
  %2107 = vmatpush.msra.mxu0 0.0
  %2108 = vmatpush.msra.mxu0 0.0
  %2109 = vmatpush.msra.mxu0 0.0
  %2110 = vmatpush.msra.mxu0 0.0
  %2111 = vmatpush.msra.mxu0 %v2094
  %2112 = vmatpush.msra.mxu0 %v2093
  %2113 = vmatpush.msra.mxu0 %v2092
  %2114 = vmatpush.msra.mxu0 %v2091
  %2115 = vmatmul.f32.gmra.mxu0 %v2097
  %v2116 = vpop.f32.mrf.mxu0
  %v2117 = vadd.f32 0.0, %v2116
  %2118 = vdwg.mxu0
  %v2119 = vadd.f32 %v2090, %v2117
  %v2120 = vxor.u32 %v2089, 2147483648
  %v2121 = vmul.f32 %v2120, 1.442695
  %v2122 = vpow.pop %v2121
  %v2123 = vadd.f32 %v2122, 1.0
  %v2124 = vrcp.pop %v2123
  %v2125 = vmul.f32 %v2123, %v2124
  %v2126 = vsub.f32 1.0, %v2125
  %v2127 = vmul.f32 %v2124, %v2126
  %v2128 = vadd.f32 %v2124, %v2127
  %vm2129 = vweird.f32 %v2123
  %vm2130 = vweird.f32 %v2124
  %vm2131 = vmor %vm2129, %vm2130
  %v2132 = vsel %vm2131, %v2124, %v2128
  %v2133 = vand.u32 2147483647, %v2123
  %vm2134 = vcmp.eq.f32.partialorder %v2133, 8.507059e+37
  %v2135 = vand.u32 %v2123, 2147483648
  %v2136 = vor.u32 1.1754944e-38, %v2135
  %v2137 = vsel %vm2134, %v2136, %v2132
  %v2138 = vmul.f32 1.0, %v2137
  %v2139 = vtanh.pop %v2089
  %v2140 = vmul.f32 %v2138, %v2006
  %2142 = vrot.lane.b32.xlu0 %v2139, 32
  %v2143 = vpop.permute.xlu0 %2142
  %v2145 = vmul.f32 %v2138, %v2143
  %2147 = vrot.lane.b32.xlu0 %v2145, 32
  %v2148 = vpop.permute.xlu0 %2147
  %v2150 = vadd.f32 %v2140, %v2148
  %v2151 = vtanh.pop %v2150
  %2153 = vrot.lane.b32.xlu0 %v2151, 32
  %v2154 = vpop.permute.xlu0 %2153
  %v2156 = vmul.f32 %v2138, %v2154
  %v2157 = vxor.u32 %v2119, 2147483648
  %v2158 = vmul.f32 %v2157, 1.442695
  %v2159 = vpow.pop %v2158
  %v2160 = vadd.f32 %v2159, 1.0
  %v2161 = vrcp.pop %v2160
  %v2162 = vmul.f32 %v2160, %v2161
  %v2163 = vsub.f32 1.0, %v2162
  %v2164 = vmul.f32 %v2161, %v2163
  %v2165 = vadd.f32 %v2161, %v2164
  %vm2166 = vweird.f32 %v2160
  %vm2167 = vweird.f32 %v2161
  %vm2168 = vmor %vm2166, %vm2167
  %v2169 = vsel %vm2168, %v2161, %v2165
  %v2170 = vand.u32 2147483647, %v2160
  %vm2171 = vcmp.eq.f32.partialorder %v2170, 8.507059e+37
  %v2172 = vand.u32 %v2160, 2147483648
  %v2173 = vor.u32 1.1754944e-38, %v2172
  %v2174 = vsel %vm2171, %v2173, %v2169
  %v2175 = vmul.f32 1.0, %v2174
  %v2176 = vtanh.pop %v2119
  %v2177 = vmul.f32 %v2175, %v2043
  %2179 = vrot.lane.b32.xlu0 %v2176, 32
  %v2180 = vpop.permute.xlu0 %2179
  %v2182 = vmul.f32 %v2175, %v2180
  %2184 = vrot.lane.b32.xlu0 %v2182, 32
  %v2185 = vpop.permute.xlu0 %2184
  %v2187 = vadd.f32 %v2177, %v2185
  %v2188 = vtanh.pop %v2187
  %2190 = vrot.lane.b32.xlu0 %v2188, 32
  %v2191 = vpop.permute.xlu0 %2190
  %v2193 = vmul.f32 %v2175, %v2191
  %2195 = vrot.lane.b32.xlu0 %v2156, 64
  %v2196 = vpop.permute.xlu0 %2195
  %2198 = vst.msk [vmem:[%s2060] sm:$0xff] %vm69, %v2196
  %2200 = vrot.lane.b32.xlu0 %v2193, 96
  %v2201 = vpop.permute.xlu0 %2200
  %2203 = vst.msk [vmem:[%s2054] sm:$0xff] %vm332, %v2201
  %v2204 = vld [vmem:[%s509] sm:$0xff]
  %v2205 = vld [vmem:[%s7] sm:$0xff]
  %v2206 = vld [vmem:[%s7 + $0x8] sm:$0xff]
  %v2207 = vld [vmem:[%s7 + $0x10] sm:$0xff]
  %v2208 = vld [vmem:[%s7 + $0x18] sm:$0xff]
  %v2209 = vsel %vm69, %v2196, 0
  %2211 = vmatpush.msra.mxu0 0.0
  %2212 = vmatpush.msra.mxu0 0.0
  %2213 = vmatpush.msra.mxu0 0.0
  %2214 = vmatpush.msra.mxu0 0.0
  %2215 = vmatpush.msra.mxu0 0.0
  %2216 = vmatpush.msra.mxu0 0.0
  %2217 = vmatpush.msra.mxu0 0.0
  %2218 = vmatpush.msra.mxu0 0.0
  %2219 = vmatpush.msra.mxu0 0.0
  %2220 = vmatpush.msra.mxu0 0.0
  %2221 = vmatpush.msra.mxu0 0.0
  %2222 = vmatpush.msra.mxu0 0.0
  %2223 = vmatpush.msra.mxu0 %v2208
  %2224 = vmatpush.msra.mxu0 %v2207
  %2225 = vmatpush.msra.mxu0 %v2206
  %2226 = vmatpush.msra.mxu0 %v2205
  %2227 = vmatmul.f32.gmra.mxu0 %v2209
  %v2228 = vpop.f32.mrf.mxu0
  %v2229 = vadd.f32 0.0, %v2228
  %2230 = vdwg.mxu0
  %v2231 = vadd.f32 %v2204, %v2229
  %v2232 = vld [vmem:[%s480 + $0x8] sm:$0xff]
  %v2233 = vld [vmem:[%s8] sm:$0xff]
  %v2234 = vld [vmem:[%s8 + $0x8] sm:$0xff]
  %v2235 = vld [vmem:[%s8 + $0x10] sm:$0xff]
  %v2236 = vld [vmem:[%s8 + $0x18] sm:$0xff]
  %2237 = vrot.lane.b32.xlu0 %v2193, 64
  %v2238 = vpop.permute.xlu0 %2237
  %v2239 = vsel %vm69, %v2238, 0
  %2241 = vmatpush.msra.mxu0 0.0
  %2242 = vmatpush.msra.mxu0 0.0
  %2243 = vmatpush.msra.mxu0 0.0
  %2244 = vmatpush.msra.mxu0 0.0
  %2245 = vmatpush.msra.mxu0 0.0
  %2246 = vmatpush.msra.mxu0 0.0
  %2247 = vmatpush.msra.mxu0 0.0
  %2248 = vmatpush.msra.mxu0 0.0
  %2249 = vmatpush.msra.mxu0 0.0
  %2250 = vmatpush.msra.mxu0 0.0
  %2251 = vmatpush.msra.mxu0 0.0
  %2252 = vmatpush.msra.mxu0 0.0
  %2253 = vmatpush.msra.mxu0 %v2236
  %2254 = vmatpush.msra.mxu0 %v2235
  %2255 = vmatpush.msra.mxu0 %v2234
  %2256 = vmatpush.msra.mxu0 %v2233
  %2257 = vmatmul.f32.gmra.mxu0 %v2239
  %v2258 = vpop.f32.mrf.mxu0
  %v2259 = vadd.f32 0.0, %v2258
  %2260 = vdwg.mxu0
  %v2261 = vadd.f32 %v2232, %v2259
  %v2262 = vxor.u32 %v2231, 2147483648
  %v2263 = vmul.f32 %v2262, 1.442695
  %v2264 = vpow.pop %v2263
  %v2265 = vadd.f32 %v2264, 1.0
  %v2266 = vrcp.pop %v2265
  %v2267 = vmul.f32 %v2265, %v2266
  %v2268 = vsub.f32 1.0, %v2267
  %v2269 = vmul.f32 %v2266, %v2268
  %v2270 = vadd.f32 %v2266, %v2269
  %vm2271 = vweird.f32 %v2265
  %vm2272 = vweird.f32 %v2266
  %vm2273 = vmor %vm2271, %vm2272
  %v2274 = vsel %vm2273, %v2266, %v2270
  %v2275 = vand.u32 2147483647, %v2265
  %vm2276 = vcmp.eq.f32.partialorder %v2275, 8.507059e+37
  %v2277 = vand.u32 %v2265, 2147483648
  %v2278 = vor.u32 1.1754944e-38, %v2277
  %v2279 = vsel %vm2276, %v2278, %v2274
  %v2280 = vmul.f32 1.0, %v2279
  %v2281 = vtanh.pop %v2231
  %v2282 = vmul.f32 %v2280, %v2150
  %2284 = vrot.lane.b32.xlu0 %v2281, 32
  %v2285 = vpop.permute.xlu0 %2284
  %v2287 = vmul.f32 %v2280, %v2285
  %2289 = vrot.lane.b32.xlu0 %v2287, 32
  %v2290 = vpop.permute.xlu0 %2289
  %v2292 = vadd.f32 %v2282, %v2290
  %v2293 = vtanh.pop %v2292
  %2295 = vrot.lane.b32.xlu0 %v2293, 32
  %v2296 = vpop.permute.xlu0 %2295
  %v2298 = vmul.f32 %v2280, %v2296
  %v2299 = vxor.u32 %v2261, 2147483648
  %v2300 = vmul.f32 %v2299, 1.442695
  %v2301 = vpow.pop %v2300
  %v2302 = vadd.f32 %v2301, 1.0
  %v2303 = vrcp.pop %v2302
  %v2304 = vmul.f32 %v2302, %v2303
  %v2305 = vsub.f32 1.0, %v2304
  %v2306 = vmul.f32 %v2303, %v2305
  %v2307 = vadd.f32 %v2303, %v2306
  %vm2308 = vweird.f32 %v2302
  %vm2309 = vweird.f32 %v2303
  %vm2310 = vmor %vm2308, %vm2309
  %v2311 = vsel %vm2310, %v2303, %v2307
  %v2312 = vand.u32 2147483647, %v2302
  %vm2313 = vcmp.eq.f32.partialorder %v2312, 8.507059e+37
  %v2314 = vand.u32 %v2302, 2147483648
  %v2315 = vor.u32 1.1754944e-38, %v2314
  %v2316 = vsel %vm2313, %v2315, %v2311
  %v2317 = vmul.f32 1.0, %v2316
  %v2318 = vtanh.pop %v2261
  %v2319 = vmul.f32 %v2317, %v2187
  %2321 = vrot.lane.b32.xlu0 %v2318, 32
  %v2322 = vpop.permute.xlu0 %2321
  %v2324 = vmul.f32 %v2317, %v2322
  %2326 = vrot.lane.b32.xlu0 %v2324, 32
  %v2327 = vpop.permute.xlu0 %2326
  %v2329 = vadd.f32 %v2319, %v2327
  %v2330 = vtanh.pop %v2329
  %2332 = vrot.lane.b32.xlu0 %v2330, 32
  %v2333 = vpop.permute.xlu0 %2332
  %v2335 = vmul.f32 %v2317, %v2333
  %2337 = vrot.lane.b32.xlu0 %v2298, 64
  %v2338 = vpop.permute.xlu0 %2337
  %2340 = vst.msk [vmem:[%s1916] sm:$0xff] %vm69, %v2338
  %2342 = vrot.lane.b32.xlu0 %v2335, 96
  %v2343 = vpop.permute.xlu0 %2342
  %2345 = vst.msk [vmem:[%s1910] sm:$0xff] %vm332, %v2343
  %v2346 = vld [vmem:[%s363] sm:$0xff]
  %v2347 = vld [vmem:[%s7] sm:$0xff]
  %v2348 = vld [vmem:[%s7 + $0x8] sm:$0xff]
  %v2349 = vld [vmem:[%s7 + $0x10] sm:$0xff]
  %v2350 = vld [vmem:[%s7 + $0x18] sm:$0xff]
  %v2351 = vsel %vm69, %v2338, 0
  %2353 = vmatpush.msra.mxu0 0.0
  %2354 = vmatpush.msra.mxu0 0.0
  %2355 = vmatpush.msra.mxu0 0.0
  %2356 = vmatpush.msra.mxu0 0.0
  %2357 = vmatpush.msra.mxu0 0.0
  %2358 = vmatpush.msra.mxu0 0.0
  %2359 = vmatpush.msra.mxu0 0.0
  %2360 = vmatpush.msra.mxu0 0.0
  %2361 = vmatpush.msra.mxu0 0.0
  %2362 = vmatpush.msra.mxu0 0.0
  %2363 = vmatpush.msra.mxu0 0.0
  %2364 = vmatpush.msra.mxu0 0.0
  %2365 = vmatpush.msra.mxu0 %v2350
  %2366 = vmatpush.msra.mxu0 %v2349
  %2367 = vmatpush.msra.mxu0 %v2348
  %2368 = vmatpush.msra.mxu0 %v2347
  %2369 = vmatmul.f32.gmra.mxu0 %v2351
  %v2370 = vpop.f32.mrf.mxu0
  %v2371 = vadd.f32 0.0, %v2370
  %2372 = vdwg.mxu0
  %v2373 = vadd.f32 %v2346, %v2371
  %v2374 = vld [vmem:[%s334 + $0x8] sm:$0xff]
  %v2375 = vld [vmem:[%s8] sm:$0xff]
  %v2376 = vld [vmem:[%s8 + $0x8] sm:$0xff]
  %v2377 = vld [vmem:[%s8 + $0x10] sm:$0xff]
  %v2378 = vld [vmem:[%s8 + $0x18] sm:$0xff]
  %2379 = vrot.lane.b32.xlu0 %v2335, 64
  %v2380 = vpop.permute.xlu0 %2379
  %v2381 = vsel %vm69, %v2380, 0
  %2383 = vmatpush.msra.mxu0 0.0
  %2384 = vmatpush.msra.mxu0 0.0
  %2385 = vmatpush.msra.mxu0 0.0
  %2386 = vmatpush.msra.mxu0 0.0
  %2387 = vmatpush.msra.mxu0 0.0
  %2388 = vmatpush.msra.mxu0 0.0
  %2389 = vmatpush.msra.mxu0 0.0
  %2390 = vmatpush.msra.mxu0 0.0
  %2391 = vmatpush.msra.mxu0 0.0
  %2392 = vmatpush.msra.mxu0 0.0
  %2393 = vmatpush.msra.mxu0 0.0
  %2394 = vmatpush.msra.mxu0 0.0
  %2395 = vmatpush.msra.mxu0 %v2378
  %2396 = vmatpush.msra.mxu0 %v2377
  %2397 = vmatpush.msra.mxu0 %v2376
  %2398 = vmatpush.msra.mxu0 %v2375
  %2399 = vmatmul.f32.gmra.mxu0 %v2381
  %v2400 = vpop.f32.mrf.mxu0
  %v2401 = vadd.f32 0.0, %v2400
  %2402 = vdwg.mxu0
  %v2403 = vadd.f32 %v2374, %v2401
  %v2404 = vxor.u32 %v2373, 2147483648
  %v2405 = vmul.f32 %v2404, 1.442695
  %v2406 = vpow.pop %v2405
  %v2407 = vadd.f32 %v2406, 1.0
  %v2408 = vrcp.pop %v2407
  %v2409 = vmul.f32 %v2407, %v2408
  %v2410 = vsub.f32 1.0, %v2409
  %v2411 = vmul.f32 %v2408, %v2410
  %v2412 = vadd.f32 %v2408, %v2411
  %vm2413 = vweird.f32 %v2407
  %vm2414 = vweird.f32 %v2408
  %vm2415 = vmor %vm2413, %vm2414
  %v2416 = vsel %vm2415, %v2408, %v2412
  %v2417 = vand.u32 2147483647, %v2407
  %vm2418 = vcmp.eq.f32.partialorder %v2417, 8.507059e+37
  %v2419 = vand.u32 %v2407, 2147483648
  %v2420 = vor.u32 1.1754944e-38, %v2419
  %v2421 = vsel %vm2418, %v2420, %v2416
  %v2422 = vmul.f32 1.0, %v2421
  %v2423 = vtanh.pop %v2373
  %v2424 = vmul.f32 %v2422, %v2292
  %2426 = vrot.lane.b32.xlu0 %v2423, 32
  %v2427 = vpop.permute.xlu0 %2426
  %v2429 = vmul.f32 %v2422, %v2427
  %2431 = vrot.lane.b32.xlu0 %v2429, 32
  %v2432 = vpop.permute.xlu0 %2431
  %v2434 = vadd.f32 %v2424, %v2432
  %v2435 = vtanh.pop %v2434
  %2437 = vrot.lane.b32.xlu0 %v2435, 32
  %v2438 = vpop.permute.xlu0 %2437
  %v2440 = vmul.f32 %v2422, %v2438
  %v2441 = vxor.u32 %v2403, 2147483648
  %v2442 = vmul.f32 %v2441, 1.442695
  %v2443 = vpow.pop %v2442
  %v2444 = vadd.f32 %v2443, 1.0
  %v2445 = vrcp.pop %v2444
  %v2446 = vmul.f32 %v2444, %v2445
  %v2447 = vsub.f32 1.0, %v2446
  %v2448 = vmul.f32 %v2445, %v2447
  %v2449 = vadd.f32 %v2445, %v2448
  %vm2450 = vweird.f32 %v2444
  %vm2451 = vweird.f32 %v2445
  %vm2452 = vmor %vm2450, %vm2451
  %v2453 = vsel %vm2452, %v2445, %v2449
  %v2454 = vand.u32 2147483647, %v2444
  %vm2455 = vcmp.eq.f32.partialorder %v2454, 8.507059e+37
  %v2456 = vand.u32 %v2444, 2147483648
  %v2457 = vor.u32 1.1754944e-38, %v2456
  %v2458 = vsel %vm2455, %v2457, %v2453
  %v2459 = vmul.f32 1.0, %v2458
  %v2460 = vtanh.pop %v2403
  %v2461 = vmul.f32 %v2459, %v2329
  %2463 = vrot.lane.b32.xlu0 %v2460, 32
  %v2464 = vpop.permute.xlu0 %2463
  %v2466 = vmul.f32 %v2459, %v2464
  %2468 = vrot.lane.b32.xlu0 %v2466, 32
  %v2469 = vpop.permute.xlu0 %2468
  %v2471 = vadd.f32 %v2461, %v2469
  %v2472 = vtanh.pop %v2471
  %2474 = vrot.lane.b32.xlu0 %v2472, 32
  %v2475 = vpop.permute.xlu0 %2474
  %v2477 = vmul.f32 %v2459, %v2475
  %2479 = vrot.lane.b32.xlu0 %v2440, 64
  %v2480 = vpop.permute.xlu0 %2479
  %2482 = vst.msk [vmem:[%s1772] sm:$0xff] %vm69, %v2480
  %2484 = vrot.lane.b32.xlu0 %v2477, 96
  %v2485 = vpop.permute.xlu0 %2484
  %2487 = vst.msk [vmem:[%s1766] sm:$0xff] %vm332, %v2485
  %v2488 = vld [vmem:[%s221] sm:$0xff]
  %v2489 = vld [vmem:[%s7] sm:$0xff]
  %v2490 = vld [vmem:[%s7 + $0x8] sm:$0xff]
  %v2491 = vld [vmem:[%s7 + $0x10] sm:$0xff]
  %v2492 = vld [vmem:[%s7 + $0x18] sm:$0xff]
  %v2493 = vsel %vm69, %v2480, 0
  %2495 = vmatpush.msra.mxu0 0.0
  %2496 = vmatpush.msra.mxu0 0.0
  %2497 = vmatpush.msra.mxu0 0.0
  %2498 = vmatpush.msra.mxu0 0.0
  %2499 = vmatpush.msra.mxu0 0.0
  %2500 = vmatpush.msra.mxu0 0.0
  %2501 = vmatpush.msra.mxu0 0.0
  %2502 = vmatpush.msra.mxu0 0.0
  %2503 = vmatpush.msra.mxu0 0.0
  %2504 = vmatpush.msra.mxu0 0.0
  %2505 = vmatpush.msra.mxu0 0.0
  %2506 = vmatpush.msra.mxu0 0.0
  %2507 = vmatpush.msra.mxu0 %v2492
  %2508 = vmatpush.msra.mxu0 %v2491
  %2509 = vmatpush.msra.mxu0 %v2490
  %2510 = vmatpush.msra.mxu0 %v2489
  %2511 = vmatmul.f32.gmra.mxu0 %v2493
  %v2512 = vpop.f32.mrf.mxu0
  %v2513 = vadd.f32 0.0, %v2512
  %2514 = vdwg.mxu0
  %v2515 = vadd.f32 %v2488, %v2513
  %v2516 = vld [vmem:[#allocation2 + $0x8] sm:$0xff]
  %v2517 = vld [vmem:[%s8] sm:$0xff]
  %v2518 = vld [vmem:[%s8 + $0x8] sm:$0xff]
  %v2519 = vld [vmem:[%s8 + $0x10] sm:$0xff]
  %v2520 = vld [vmem:[%s8 + $0x18] sm:$0xff]
  %2521 = vrot.lane.b32.xlu0 %v2477, 64
  %v2522 = vpop.permute.xlu0 %2521
  %v2523 = vsel %vm69, %v2522, 0
  %2525 = vmatpush.msra.mxu0 0.0
  %2526 = vmatpush.msra.mxu0 0.0
  %2527 = vmatpush.msra.mxu0 0.0
  %2528 = vmatpush.msra.mxu0 0.0
  %2529 = vmatpush.msra.mxu0 0.0
  %2530 = vmatpush.msra.mxu0 0.0
  %2531 = vmatpush.msra.mxu0 0.0
  %2532 = vmatpush.msra.mxu0 0.0
  %2533 = vmatpush.msra.mxu0 0.0
  %2534 = vmatpush.msra.mxu0 0.0
  %2535 = vmatpush.msra.mxu0 0.0
  %2536 = vmatpush.msra.mxu0 0.0
  %2537 = vmatpush.msra.mxu0 %v2520
  %2538 = vmatpush.msra.mxu0 %v2519
  %2539 = vmatpush.msra.mxu0 %v2518
  %2540 = vmatpush.msra.mxu0 %v2517
  %2541 = vmatmul.f32.gmra.mxu0 %v2523
  %v2542 = vpop.f32.mrf.mxu0
  %v2543 = vadd.f32 0.0, %v2542
  %2544 = vdwg.mxu0
  %v2545 = vadd.f32 %v2516, %v2543
  %v2546 = vxor.u32 %v2515, 2147483648
  %v2547 = vmul.f32 %v2546, 1.442695
  %v2548 = vpow.pop %v2547
  %v2549 = vadd.f32 %v2548, 1.0
  %v2550 = vrcp.pop %v2549
  %v2551 = vmul.f32 %v2549, %v2550
  %v2552 = vsub.f32 1.0, %v2551
  %v2553 = vmul.f32 %v2550, %v2552
  %v2554 = vadd.f32 %v2550, %v2553
  %vm2555 = vweird.f32 %v2549
  %vm2556 = vweird.f32 %v2550
  %vm2557 = vmor %vm2555, %vm2556
  %v2558 = vsel %vm2557, %v2550, %v2554
  %v2559 = vand.u32 2147483647, %v2549
  %vm2560 = vcmp.eq.f32.partialorder %v2559, 8.507059e+37
  %v2561 = vand.u32 %v2549, 2147483648
  %v2562 = vor.u32 1.1754944e-38, %v2561
  %v2563 = vsel %vm2560, %v2562, %v2558
  %v2564 = vmul.f32 1.0, %v2563
  %v2565 = vtanh.pop %v2515
  %v2566 = vmul.f32 %v2564, %v2434
  %2568 = vrot.lane.b32.xlu0 %v2565, 32
  %v2569 = vpop.permute.xlu0 %2568
  %v2571 = vmul.f32 %v2564, %v2569
  %2573 = vrot.lane.b32.xlu0 %v2571, 32
  %v2574 = vpop.permute.xlu0 %2573
  %v2576 = vadd.f32 %v2566, %v2574
  %v2577 = vtanh.pop %v2576
  %2579 = vrot.lane.b32.xlu0 %v2577, 32
  %v2580 = vpop.permute.xlu0 %2579
  %v2582 = vmul.f32 %v2564, %v2580
  %v2583 = vxor.u32 %v2545, 2147483648
  %v2584 = vmul.f32 %v2583, 1.442695
  %v2585 = vpow.pop %v2584
  %v2586 = vadd.f32 %v2585, 1.0
  %v2587 = vrcp.pop %v2586
  %v2588 = vmul.f32 %v2586, %v2587
  %v2589 = vsub.f32 1.0, %v2588
  %v2590 = vmul.f32 %v2587, %v2589
  %v2591 = vadd.f32 %v2587, %v2590
  %vm2592 = vweird.f32 %v2586
  %vm2593 = vweird.f32 %v2587
  %vm2594 = vmor %vm2592, %vm2593
  %v2595 = vsel %vm2594, %v2587, %v2591
  %v2596 = vand.u32 2147483647, %v2586
  %vm2597 = vcmp.eq.f32.partialorder %v2596, 8.507059e+37
  %v2598 = vand.u32 %v2586, 2147483648
  %v2599 = vor.u32 1.1754944e-38, %v2598
  %v2600 = vsel %vm2597, %v2599, %v2595
  %v2601 = vmul.f32 1.0, %v2600
  %v2602 = vtanh.pop %v2545
  %v2603 = vmul.f32 %v2601, %v2471
  %2605 = vrot.lane.b32.xlu0 %v2602, 32
  %v2606 = vpop.permute.xlu0 %2605
  %v2608 = vmul.f32 %v2601, %v2606
  %2610 = vrot.lane.b32.xlu0 %v2608, 32
  %v2611 = vpop.permute.xlu0 %2610
  %v2613 = vadd.f32 %v2603, %v2611
  %v2614 = vtanh.pop %v2613
  %2616 = vrot.lane.b32.xlu0 %v2614, 32
  %v2617 = vpop.permute.xlu0 %2616
  %v2619 = vmul.f32 %v2601, %v2617
  %2621 = vrot.lane.b32.xlu0 %v2582, 64
  %v2622 = vpop.permute.xlu0 %2621
  %2624 = vst.msk [vmem:[%s1628] sm:$0xff] %vm69, %v2622
  %2626 = vrot.lane.b32.xlu0 %v2619, 96
  %v2627 = vpop.permute.xlu0 %2626
  %2629 = vst.msk [vmem:[#allocation4] sm:$0xff] %vm332, %v2627
  %v2630 = vld [vmem:[#allocation4] sm:$0xff]
  %v2631 = vld [vmem:[#allocation4 + $0x8] sm:$0xff]
  %v2632 = vld [vmem:[#allocation4 + $0x10] sm:$0xff]
  %v2633 = vld [vmem:[#allocation4 + $0x18] sm:$0xff]
  %v2634 = vld [vmem:[#allocation4 + $0x20] sm:$0xff]
  %v2635 = vld [vmem:[#allocation4 + $0x28] sm:$0xff]
  %v2636 = vld [vmem:[#allocation4 + $0x30] sm:$0xff]
  %v2637 = vld [vmem:[#allocation4 + $0x38] sm:$0xff]
  %v2638 = vld [vmem:[%s9] sm:$0xff]
  %v2639 = vld [vmem:[%s9 + $0x8] sm:$0xff]
  %v2640 = vld [vmem:[%s9 + $0x10] sm:$0xff]
  %v2641 = vld [vmem:[%s9 + $0x18] sm:$0xff]
  %v2642 = vld [vmem:[%s9 + $0x20] sm:$0xff]
  %v2643 = vld [vmem:[%s9 + $0x28] sm:$0xff]
  %v2644 = vld [vmem:[%s9 + $0x30] sm:$0xff]
  %v2645 = vld [vmem:[%s9 + $0x38] sm:$0xff]
  %v2646 = vld [vmem:[%s10] sm:$0xff]
  %v2647 = vld [vmem:[%s10 + $0x8] sm:$0xff]
  %v2648 = vld [vmem:[%s10 + $0x10] sm:$0xff]
  %v2649 = vld [vmem:[%s10 + $0x18] sm:$0xff]
  %2650 = vmatpush.msra.mxu0 0.0
  %2651 = vmatpush.msra.mxu0 0.0
  %2652 = vmatpush.msra.mxu0 0.0
  %2653 = vmatpush.msra.mxu0 0.0
  %2654 = vmatpush.msra.mxu0 0.0
  %2655 = vmatpush.msra.mxu0 0.0
  %2656 = vmatpush.msra.mxu0 0.0
  %2657 = vmatpush.msra.mxu0 0.0
  %2658 = vmatpush.msra.mxu0 0.0
  %2659 = vmatpush.msra.mxu0 0.0
  %2660 = vmatpush.msra.mxu0 0.0
  %2661 = vmatpush.msra.mxu0 0.0
  %2662 = vmatpush.msra.mxu0 %v2649
  %2663 = vmatpush.msra.mxu0 %v2648
  %2664 = vmatpush.msra.mxu0 %v2647
  %2665 = vmatpush.msra.mxu0 %v2646
  %2666 = vmatmul.f32.gmra.mxu0 %v71
  %v2667 = vpop.f32.mrf.mxu0
  %v2668 = vadd.f32 0.0, %v2667
  %2669 = vmatmul.f32.gmra.mxu0 %v74
  %v2670 = vpop.f32.mrf.mxu0
  %v2671 = vadd.f32 0.0, %v2670
  %2672 = vmatmul.f32.gmra.mxu0 %v77
  %v2673 = vpop.f32.mrf.mxu0
  %v2674 = vadd.f32 0.0, %v2673
  %2675 = vmatmul.f32.gmra.mxu0 %v80
  %v2676 = vpop.f32.mrf.mxu0
  %v2677 = vadd.f32 0.0, %v2676
  %2678 = vmatmul.f32.gmra.mxu0 %v83
  %v2679 = vpop.f32.mrf.mxu0
  %v2680 = vadd.f32 0.0, %v2679
  %2681 = vmatmul.f32.gmra.mxu0 %v86
  %v2682 = vpop.f32.mrf.mxu0
  %v2683 = vadd.f32 0.0, %v2682
  %2684 = vmatmul.f32.gmra.mxu0 %v89
  %v2685 = vpop.f32.mrf.mxu0
  %v2686 = vadd.f32 0.0, %v2685
  %2687 = vmatmul.f32.gmra.mxu0 %v92
  %v2688 = vpop.f32.mrf.mxu0
  %v2689 = vadd.f32 0.0, %v2688
  %2690 = vdwg.mxu0
  %v2692 = vsel %vm1370, %v2630, 0
  %v2695 = vsel %vm1370, %v2631, 0
  %v2698 = vsel %vm1370, %v2632, 0
  %v2701 = vsel %vm1370, %v2633, 0
  %v2704 = vsel %vm1370, %v2634, 0
  %v2707 = vsel %vm1370, %v2635, 0
  %v2710 = vsel %vm1370, %v2636, 0
  %v2713 = vsel %vm1370, %v2637, 0
  %2715 = vmatpush.msra.mxu0 0.0
  %2716 = vmatpush.msra.mxu0 0.0
  %2717 = vmatpush.msra.mxu0 0.0
  %2718 = vmatpush.msra.mxu0 0.0
  %2719 = vmatpush.msra.mxu0 0.0
  %2720 = vmatpush.msra.mxu0 0.0
  %2721 = vmatpush.msra.mxu0 0.0
  %2722 = vmatpush.msra.mxu0 0.0
  %2723 = vmatpush.msra.mxu0 %v2645
  %2724 = vmatpush.msra.mxu0 %v2644
  %2725 = vmatpush.msra.mxu0 %v2643
  %2726 = vmatpush.msra.mxu0 %v2642
  %2727 = vmatpush.msra.mxu0 %v2641
  %2728 = vmatpush.msra.mxu0 %v2640
  %2729 = vmatpush.msra.mxu0 %v2639
  %2730 = vmatpush.msra.mxu0 %v2638
  %2731 = vmatmul.f32.gmra.mxu0 %v2692
  %v2732 = vpop.f32.mrf.mxu0
  %v2733 = vadd.f32 %v2668, %v2732
  %2734 = vmatmul.f32.gmra.mxu0 %v2695
  %v2735 = vpop.f32.mrf.mxu0
  %v2736 = vadd.f32 %v2671, %v2735
  %2737 = vmatmul.f32.gmra.mxu0 %v2698
  %v2738 = vpop.f32.mrf.mxu0
  %v2739 = vadd.f32 %v2674, %v2738
  %2740 = vmatmul.f32.gmra.mxu0 %v2701
  %v2741 = vpop.f32.mrf.mxu0
  %v2742 = vadd.f32 %v2677, %v2741
  %2743 = vmatmul.f32.gmra.mxu0 %v2704
  %v2744 = vpop.f32.mrf.mxu0
  %v2745 = vadd.f32 %v2680, %v2744
  %2746 = vmatmul.f32.gmra.mxu0 %v2707
  %v2747 = vpop.f32.mrf.mxu0
  %v2748 = vadd.f32 %v2683, %v2747
  %2749 = vmatmul.f32.gmra.mxu0 %v2710
  %v2750 = vpop.f32.mrf.mxu0
  %v2751 = vadd.f32 %v2686, %v2750
  %2752 = vmatmul.f32.gmra.mxu0 %v2713
  %v2753 = vpop.f32.mrf.mxu0
  %v2754 = vadd.f32 %v2689, %v2753
  %2755 = vdwg.mxu0
  %v2756 = vld [vmem:[%s11] sm:$0x1]
  %v2758 = vperm.slane %v2756, 0
  %v2760 = vadd.f32 %v2733, %v2758
  %v2761 = vadd.f32 %v2736, %v2758
  %v2762 = vadd.f32 %v2739, %v2758
  %v2763 = vadd.f32 %v2742, %v2758
  %v2764 = vadd.f32 %v2745, %v2758
  %v2765 = vadd.f32 %v2748, %v2758
  %v2766 = vadd.f32 %v2751, %v2758
  %v2767 = vadd.f32 %v2754, %v2758
  %v2768 = vmax.f32 %v2760, 0.0
  %v2769 = vmax.f32 %v2761, 0.0
  %v2770 = vmax.f32 %v2762, 0.0
  %v2771 = vmax.f32 %v2763, 0.0
  %v2772 = vmax.f32 %v2764, 0.0
  %v2773 = vmax.f32 %v2765, 0.0
  %v2774 = vmax.f32 %v2766, 0.0
  %v2775 = vmax.f32 %v2767, 0.0
  %v2776 = vsel %vm69, %v2768, -inf
  %v2777 = vsel %vm69, %v2769, -inf
  %v2778 = vsel %vm69, %v2770, -inf
  %v2779 = vsel %vm69, %v2771, -inf
  %v2780 = vsel %vm69, %v2772, -inf
  %v2781 = vmax.f32 %v2776, %v2780
  %v2782 = vsel %vm69, %v2773, -inf
  %v2783 = vmax.f32 %v2777, %v2782
  %v2784 = vsel %vm69, %v2774, -inf
  %v2785 = vmax.f32 %v2778, %v2784
  %v2786 = vsel %vm69, %v2775, -inf
  %v2787 = vmax.f32 %v2779, %v2786
  %v2788 = vmax.f32 %v2781, %v2783
  %v2789 = vmax.f32 %v2785, %v2787
  %v2790 = vmax.f32 %v2788, %v2789
  %v2791 = vld [vmem:[%s12] sm:$0xff]
  %v2792 = vld [vmem:[%s12 + $0x8] sm:$0xff]
  %v2793 = vld [vmem:[%s12 + $0x10] sm:$0xff]
  %v2794 = vld [vmem:[%s12 + $0x18] sm:$0xff]
  %v2795 = vld [vmem:[%s13] sm:$0x1]
  %v2797 = vperm.slane %v2795, 0
  %v2800 = vsel %vm69, %v2790, 0
  %2802 = vmatpush.msra.mxu0 0.0
  %2803 = vmatpush.msra.mxu0 0.0
  %2804 = vmatpush.msra.mxu0 0.0
  %2805 = vmatpush.msra.mxu0 0.0
  %2806 = vmatpush.msra.mxu0 0.0
  %2807 = vmatpush.msra.mxu0 0.0
  %2808 = vmatpush.msra.mxu0 0.0
  %2809 = vmatpush.msra.mxu0 0.0
  %2810 = vmatpush.msra.mxu0 0.0
  %2811 = vmatpush.msra.mxu0 0.0
  %2812 = vmatpush.msra.mxu0 0.0
  %2813 = vmatpush.msra.mxu0 0.0
  %2814 = vmatpush.msra.mxu0 %v2794
  %2815 = vmatpush.msra.mxu0 %v2793
  %2816 = vmatpush.msra.mxu0 %v2792
  %2817 = vmatpush.msra.mxu0 %v2791
  %2818 = vmatmul.f32.gmra.mxu0 %v2800
  %v2819 = vpop.f32.mrf.mxu0
  %v2820 = vadd.f32 %v2797, %v2819
  %2821 = vdwg.mxu0
  %v2822 = vxor.u32 %v2820, 2147483648
  %v2823 = vmul.f32 %v2822, 1.442695
  %v2824 = vpow.pop %v2823
  %v2825 = vadd.f32 %v2824, 1.0
  %v2826 = vrcp.pop %v2825
  %v2827 = vmul.f32 %v2825, %v2826
  %v2828 = vsub.f32 1.0, %v2827
  %v2829 = vmul.f32 %v2826, %v2828
  %v2830 = vadd.f32 %v2826, %v2829
  %vm2831 = vweird.f32 %v2825
  %vm2832 = vweird.f32 %v2826
  %vm2833 = vmor %vm2831, %vm2832
  %v2834 = vsel %vm2833, %v2826, %v2830
  %v2835 = vand.u32 2147483647, %v2825
  %vm2836 = vcmp.eq.f32.partialorder %v2835, 8.507059e+37
  %v2837 = vand.u32 %v2825, 2147483648
  %v2838 = vor.u32 1.1754944e-38, %v2837
  %v2839 = vsel %vm2836, %v2838, %v2834
  %v2840 = vmul.f32 1.0, %v2839
  %vm2841 = vcmask 15360
  %2842 = vst.msk [vmem:[%s14] sm:$0xff] %vm2841, %v2840
  // Predicated region
  $region58: #{rcnn_forward.1} parent=0 // pred_check
    _
  $region59: #{rcnn_forward.1} parent=0 // pred_check_branch
    %2844 = sbr.rel (0) target = $region61
  $region60: #{rcnn_forward.1} parent=0 // pred_region
    _
  $region61: #{rcnn_forward.1} parent=0 // pred_fallthru
    _
  // Predicated region
  $region62: #{rcnn_forward.1} parent=0 // pred_check
    _
  $region63: #{rcnn_forward.1} parent=0 // pred_check_branch
    %2846 = sbr.rel (0) target = $region65
  $region64: #{rcnn_forward.1} parent=0 // pred_region
    _
  $region65: #{rcnn_forward.1} parent=0 // pred_fallthru
    _

</llo_original>
